<compile_context>
chip_gen: v7x
topology: tpu7x:2x2x1
jax: 0.10.0
libtpu: 0.0.40
codegen_flags: <defaults>
</compile_context>

<pallas_src>
import jax
import jax.numpy as jnp
from jax.experimental import pallas as pl
from jax.experimental.pallas import tpu as pltpu

# ---- module hyper-parameters (small, consistent with the nn.Module) ----
EMBED = 32          # embed_size
HEADS = 4           # heads
PER_DIM = EMBED // HEADS
FWD_EXP = 2         # forward_expansion
TIME_NUM = 16       # time_num (>= T)
EPS = 1e-5          # LayerNorm eps (PyTorch default)


def transformer_kernel(x_ref, emb_ref,
                       wq_ref, wk_ref, wv_ref, wfc_ref, w1_ref, w2_ref,
                       consts_ref, b1_ref,
                       out_ref):
    # x_ref block: (BN_TILE, T, C) -- many (batch, node) slabs per grid step.
    bn, T, C = x_ref.shape
    rows = bn * T

    consts = consts_ref[...]                     # (9 + HEADS, C), packed vectors
    bq, bk, bv = consts[0:1], consts[1:2], consts[2:3]
    bfc = consts[3:4]
    g1, be1 = consts[4:5], consts[5:6]
    g2, be2 = consts[6:7], consts[7:8]
    b2 = consts[8:9]

    # x = D_T + query  (temporal embedding broadcast over the bn axis)
    x3 = x_ref[...] + emb_ref[...]               # (bn, T, C)
    x2 = x3.reshape(rows, C)                     # leading-dim merge only (no relayout)

    # Full-width block-diagonal QKV projections (scale already folded into Wq/bq).
    q2 = jnp.dot(x2, wq_ref[...], preferred_element_type=jnp.float32) + bq
    k2 = jnp.dot(x2, wk_ref[...], preferred_element_type=jnp.float32) + bk
    v2 = jnp.dot(x2, wv_ref[...], preferred_element_type=jnp.float32) + bv
    q3 = q2.reshape(bn, T, C)
    k3 = k2.reshape(bn, T, C)
    v3 = v2.reshape(bn, T, C)

    # Head-expanded K / V: row h*T + k holds k3/v3 row k restricted to the
    # head-h lane range (cheap VPU masks; concat at full sublane-tile bounds).
    k_exp = jnp.concatenate(
        [k3 * consts[9 + h:10 + h] for h in range(HEADS)], axis=1)   # (bn, H*T, C)
    v_exp = jnp.concatenate(
        [v3 * consts[9 + h:10 + h] for h in range(HEADS)], axis=1)   # (bn, H*T, C)

    # All heads' scores in ONE batched matmul:
    #   s[b, q, h*T + k] = sum_{c in head h} q3[b,q,c] * k3[b,k,c]
    s = jnp.einsum('bqc,bKc->bqK', q3, k_exp,
                   preferred_element_type=jnp.float32)               # (bn, T, H*T)

    # NOTE: the PyTorch module softmaxes dim=2 of (B,N,q,k,h), i.e. the QUERY
    # axis -> axis 1 here (independent per (k, h) column).
    m = jnp.max(s, axis=1, keepdims=True)
    e = jnp.exp(s - m)
    inv = pl.reciprocal(jnp.sum(e, axis=1, keepdims=True), approx=False)
    attn = e * inv                                                   # (bn, T, H*T)

    # All heads' outputs in ONE batched matmul (V already head-masked, so only
    # the matching head's K-rows contribute to each output lane).
    o3 = jnp.einsum('bqK,bKc->bqc', attn, v_exp,
                    preferred_element_type=jnp.float32)              # (bn, T, C)
    o2 = o3.reshape(rows, C)
    attn_out = jnp.dot(o2, wfc_ref[...], preferred_element_type=jnp.float32) + bfc

    # M_t = dropout(norm1(attention + x))   (dropout == identity, eval mode)
    res1 = attn_out + x2
    mu1 = jnp.mean(res1, axis=-1, keepdims=True)
    var1 = jnp.mean((res1 - mu1) ** 2, axis=-1, keepdims=True)
    m_t = (res1 - mu1) * jax.lax.rsqrt(var1 + EPS) * g1 + be1

    # feed_forward = Linear -> ReLU -> Linear (weights pre-transposed)
    h1 = jnp.maximum(
        jnp.dot(m_t, w1_ref[...], preferred_element_type=jnp.float32) + b1_ref[...],
        0.0)
    ff = jnp.dot(h1, w2_ref[...], preferred_element_type=jnp.float32) + b2

    # U_t = dropout(norm2(M_t + feedforward))
    res2 = m_t + ff
    mu2 = jnp.mean(res2, axis=-1, keepdims=True)
    var2 = jnp.mean((res2 - mu2) ** 2, axis=-1, keepdims=True)
    u_t = (res2 - mu2) * jax.lax.rsqrt(var2 + EPS) * g2 + be2

    out2 = u_t + x2 + m_t                        # (rows, C)
    out3 = out2.reshape(bn, T, C)
    # Lane-dense store: assemble a (bn, T*C) slab (last dim 256 = 2*128) so the
    # output path uses unmasked full-lane stores and dense HBM writeback DMA.
    out_ref[...] = jnp.concatenate([out3[:, t, :] for t in range(T)], axis=-1)


def transformer_forward(query, params, bn_tile=None):
    B, N, T, C = query.shape
    assert C == EMBED
    H, d = HEADS, PER_DIM
    BN = B * N

    if bn_tile is None:
        # Large tiles amortize per-step overhead; keep >=2 grid steps when
        # possible (v7x megacore) and stay well under the 32 MiB scoped-VMEM
        # default so the same tiling is safe on v5e/v6e (128 MiB) and v7x (64 MiB).
        half = pl.cdiv(BN, 2)
        bn_tile = max(8, min(128, 8 * pl.cdiv(half, 8)))
    num_tiles = pl.cdiv(BN, bn_tile)
    BN_pad = num_tiles * bn_tile

    x = query.reshape(BN, T, C).astype(jnp.float32)
    if BN_pad != BN:
        x = jnp.concatenate(
            [x, jnp.zeros((BN_pad - BN, T, C), jnp.float32)], axis=0)

    # ---- wrapper-side weight preprocessing (done once, outside the kernel) ----
    scale = 1.0 / (float(EMBED) ** 0.5)                         # module's /sqrt(embed_size)
    emb = params["emb"][:T].astype(jnp.float32)                 # (T, C), rows for arange(T)
    eye_h = jnp.eye(H, dtype=jnp.float32)
    wq_bd = jnp.kron(eye_h, params["wq"].T) * scale             # scale folded into Q proj
    wk_bd = jnp.kron(eye_h, params["wk"].T)                     # (C, C) block-diagonal
    wv_bd = jnp.kron(eye_h, params["wv"].T)
    wfc_t = params["wfc"].T                                     # (C, C)
    w1_t = params["w1"].T                                       # (C, F*C)
    w2_t = params["w2"].T                                       # (F*C, C)

    def row(v):
        return v.reshape(1, C)

    head_mask = jnp.repeat(eye_h, d, axis=1)                    # (H, C)
    consts = jnp.concatenate(
        [row(jnp.tile(params["bq"].reshape(-1), H) * scale),
         row(jnp.tile(params["bk"].reshape(-1), H)),
         row(jnp.tile(params["bv"].reshape(-1), H)),
         row(params["bfc"].reshape(-1)),
         row(params["g1"].reshape(-1)), row(params["be1"].reshape(-1)),
         row(params["g2"].reshape(-1)), row(params["be2"].reshape(-1)),
         row(params["b2"].reshape(-1)),
         head_mask], axis=0)                                    # (9 + H, C)
    b1 = params["b1"].reshape(1, -1)                            # (1, F*C)

    weights = (emb, wq_bd, wk_bd, wv_bd, wfc_t, w1_t, w2_t, consts, b1)

    def full_spec(a):
        return pl.BlockSpec(a.shape, lambda i, _nd=a.ndim: (0,) * _nd)

    out_flat = pl.pallas_call(
        transformer_kernel,
        out_shape=jax.ShapeDtypeStruct((BN_pad, T * C), jnp.float32),
        grid=(num_tiles,),
        in_specs=([pl.BlockSpec((bn_tile, T, C), lambda i: (i, 0, 0))]
                  + [full_spec(a) for a in weights]),
        out_specs=pl.BlockSpec((bn_tile, T * C), lambda i: (i, 0)),
        compiler_params=pltpu.CompilerParams(
            dimension_semantics=("parallel",)),
    )(x, *weights)

    return out_flat[:BN].reshape(B, N, T, C)


# ----------------------- pure-JAX reference (faithful to the nn.Module) -----
def layernorm_ref(x, g, b):
    mu = jnp.mean(x, axis=-1, keepdims=True)
    var = jnp.mean((x - mu) ** 2, axis=-1, keepdims=True)
    return (x - mu) * jax.lax.rsqrt(var + EPS) * g + b


def reference_forward(query, params):
    B, N, T, C = query.shape
    H, d = HEADS, PER_DIM
    x = query + params["emb"][:T][None, None]
    xh = x.reshape(B, N, T, H, d)
    q = xh @ params["wq"].T + params["bq"][0]
    k = xh @ params["wk"].T + params["bk"][0]
    v = xh @ params["wv"].T + params["bv"][0]
    s = jnp.einsum("bnqhd,bnkhd->bnqkh", q, k) / (float(EMBED) ** 0.5)
    attn = jax.nn.softmax(s, axis=2)                 # query-axis softmax (module quirk)
    o = jnp.einsum("bnqkh,bnkhd->bnqhd", attn, v).reshape(B, N, T, C)
    attn_out = o @ params["wfc"].T + params["bfc"][0]
    m_t = layernorm_ref(attn_out + x, params["g1"][0], params["be1"][0])
    ff = jnp.maximum(m_t @ params["w1"].T + params["b1"][0], 0.0) @ params["w2"].T + params["b2"][0]
    u_t = layernorm_ref(m_t + ff, params["g2"][0], params["be2"][0])
    return u_t + x + m_t


def make_params(key):
    C, d, F = EMBED, PER_DIM, FWD_EXP
    ks = jax.random.split(key, 12)
    return {
        "emb": jax.random.normal(ks[0], (TIME_NUM, C), jnp.float32),
        "wq": 0.1 * jax.random.normal(ks[1], (d, d), jnp.float32),
        "bq": 0.1 * jax.random.normal(ks[2], (1, d), jnp.float32),
        "wk": 0.1 * jax.random.normal(ks[3], (d, d), jnp.float32),
        "bk": 0.1 * jax.random.normal(ks[4], (1, d), jnp.float32),
        "wv": 0.1 * jax.random.normal(ks[5], (d, d), jnp.float32),
        "bv": 0.1 * jax.random.normal(ks[6], (1, d), jnp.float32),
        "wfc": 0.1 * jax.random.normal(ks[7], (C, C), jnp.float32),
        "bfc": 0.1 * jax.random.normal(ks[8], (1, C), jnp.float32),
        "g1": jnp.ones((1, C), jnp.float32),
        "be1": jnp.zeros((1, C), jnp.float32),
        "g2": jnp.ones((1, C), jnp.float32),
        "be2": jnp.zeros((1, C), jnp.float32),
        "w1": 0.1 * jax.random.normal(ks[9], (F * C, C), jnp.float32),
        "b1": 0.1 * jax.random.normal(ks[10], (1, F * C), jnp.float32),
        "w2": 0.1 * jax.random.normal(ks[11], (C, F * C), jnp.float32),
        "b2": jnp.zeros((1, C), jnp.float32),
    }


if __name__ == "__main__":
    key = jax.random.PRNGKey(0)
    k_x, k_p = jax.random.split(key)
    B, N, T, C = 2, 16, 8, EMBED        # BN = 32 -> bn_tile = 16, grid = (2,)
    query = jax.random.normal(k_x, (B, N, T, C), jnp.float32)
    params = make_params(k_p)

    fwd = jax.jit(transformer_forward)
    out = jax.block_until_ready(fwd(query, params))

    ref = reference_forward(query, params)
    assert out.shape == (B, N, T, C)
    assert jnp.allclose(out, ref, atol=2e-4, rtol=2e-4), "mismatch vs JAX reference"
    print("KERNEL_OK")
</pallas_src>

<mosaic_0001>
module attributes {stable_mosaic.version = 11 : i64} {
  func.func @transformer_kernel(%arg0: i32, %arg1: memref<16x8x32xf32, #tpu.memory_space<vmem>>, %arg2: memref<8x32xf32, #tpu.memory_space<vmem>>, %arg3: memref<32x32xf32, #tpu.memory_space<vmem>>, %arg4: memref<32x32xf32, #tpu.memory_space<vmem>>, %arg5: memref<32x32xf32, #tpu.memory_space<vmem>>, %arg6: memref<32x32xf32, #tpu.memory_space<vmem>>, %arg7: memref<32x64xf32, #tpu.memory_space<vmem>>, %arg8: memref<64x32xf32, #tpu.memory_space<vmem>>, %arg9: memref<13x32xf32, #tpu.memory_space<vmem>>, %arg10: memref<1x64xf32, #tpu.memory_space<vmem>>, %arg11: memref<16x256xf32, #tpu.memory_space<vmem>>) attributes {dimension_semantics = [#tpu.dimension_semantics<parallel>], iteration_bounds = array<i64: 2>, scalar_prefetch = 0 : i64, scratch_operands = 0 : i64, tpu.core_type = #tpu.core_type<tc>, window_params = [{transform_indices = @transform_0, window_bounds = array<i64: 16, 8, 32>}, {pipeline_mode = #tpu.pipeline_mode<synchronous>, transform_indices = @transform_1, window_bounds = array<i64: 8, 32>}, {pipeline_mode = #tpu.pipeline_mode<synchronous>, transform_indices = @transform_2, window_bounds = array<i64: 32, 32>}, {pipeline_mode = #tpu.pipeline_mode<synchronous>, transform_indices = @transform_3, window_bounds = array<i64: 32, 32>}, {pipeline_mode = #tpu.pipeline_mode<synchronous>, transform_indices = @transform_4, window_bounds = array<i64: 32, 32>}, {pipeline_mode = #tpu.pipeline_mode<synchronous>, transform_indices = @transform_5, window_bounds = array<i64: 32, 32>}, {pipeline_mode = #tpu.pipeline_mode<synchronous>, transform_indices = @transform_6, window_bounds = array<i64: 32, 64>}, {pipeline_mode = #tpu.pipeline_mode<synchronous>, transform_indices = @transform_7, window_bounds = array<i64: 64, 32>}, {pipeline_mode = #tpu.pipeline_mode<synchronous>, transform_indices = @transform_8, window_bounds = array<i64: 13, 32>}, {pipeline_mode = #tpu.pipeline_mode<synchronous>, transform_indices = @transform_9, window_bounds = array<i64: 1, 64>}, {transform_indices = @transform_10, window_bounds = array<i64: 16, 256>}]} {
    %c0 = arith.constant 0 : index
    %c0_0 = arith.constant 0 : index
    %0 = vector.load %arg9[%c0, %c0_0] : memref<13x32xf32, #tpu.memory_space<vmem>>, vector<13x32xf32>
    %1 = vector.extract_strided_slice %0 {offsets = [0, 0], sizes = [1, 32], strides = [1, 1]} : vector<13x32xf32> to vector<1x32xf32>
    %2 = vector.extract_strided_slice %0 {offsets = [1, 0], sizes = [1, 32], strides = [1, 1]} : vector<13x32xf32> to vector<1x32xf32>
    %3 = vector.extract_strided_slice %0 {offsets = [2, 0], sizes = [1, 32], strides = [1, 1]} : vector<13x32xf32> to vector<1x32xf32>
    %4 = vector.extract_strided_slice %0 {offsets = [3, 0], sizes = [1, 32], strides = [1, 1]} : vector<13x32xf32> to vector<1x32xf32>
    %5 = vector.extract_strided_slice %0 {offsets = [4, 0], sizes = [1, 32], strides = [1, 1]} : vector<13x32xf32> to vector<1x32xf32>
    %6 = vector.extract_strided_slice %0 {offsets = [5, 0], sizes = [1, 32], strides = [1, 1]} : vector<13x32xf32> to vector<1x32xf32>
    %7 = vector.extract_strided_slice %0 {offsets = [6, 0], sizes = [1, 32], strides = [1, 1]} : vector<13x32xf32> to vector<1x32xf32>
    %8 = vector.extract_strided_slice %0 {offsets = [7, 0], sizes = [1, 32], strides = [1, 1]} : vector<13x32xf32> to vector<1x32xf32>
    %9 = vector.extract_strided_slice %0 {offsets = [8, 0], sizes = [1, 32], strides = [1, 1]} : vector<13x32xf32> to vector<1x32xf32>
    %c0_1 = arith.constant 0 : index
    %c0_2 = arith.constant 0 : index
    %c0_3 = arith.constant 0 : index
    %10 = vector.load %arg1[%c0_1, %c0_2, %c0_3] : memref<16x8x32xf32, #tpu.memory_space<vmem>>, vector<16x8x32xf32>
    %c0_4 = arith.constant 0 : index
    %c0_5 = arith.constant 0 : index
    %11 = vector.load %arg2[%c0_4, %c0_5] : memref<8x32xf32, #tpu.memory_space<vmem>>, vector<8x32xf32>
    %12 = vector.shape_cast %11 : vector<8x32xf32> to vector<1x8x32xf32>
    %13 = vector.broadcast %12 : vector<1x8x32xf32> to vector<16x8x32xf32>
    %14 = arith.addf %10, %13 : vector<16x8x32xf32>
    %15 = vector.shape_cast %14 : vector<16x8x32xf32> to vector<128x32xf32>
    %c0_6 = arith.constant 0 : index
    %c0_7 = arith.constant 0 : index
    %16 = vector.load %arg3[%c0_6, %c0_7] : memref<32x32xf32, #tpu.memory_space<vmem>>, vector<32x32xf32>
    %cst = arith.constant dense<0.000000e+00> : vector<128x32xf32>
    %17 = tpu.matmul %15, %16, %cst {dimension_numbers = #tpu.dot_dimension_numbers<[1], [0], [0], [1], [0, 0, 1, 1], [], []>} : vector<128x32xf32>, vector<32x32xf32>, vector<128x32xf32> -> vector<128x32xf32>
    %18 = vector.broadcast %1 : vector<1x32xf32> to vector<128x32xf32>
    %19 = arith.addf %17, %18 : vector<128x32xf32>
    %c0_8 = arith.constant 0 : index
    %c0_9 = arith.constant 0 : index
    %20 = vector.load %arg4[%c0_8, %c0_9] : memref<32x32xf32, #tpu.memory_space<vmem>>, vector<32x32xf32>
    %cst_10 = arith.constant dense<0.000000e+00> : vector<128x32xf32>
    %21 = tpu.matmul %15, %20, %cst_10 {dimension_numbers = #tpu.dot_dimension_numbers<[1], [0], [0], [1], [0, 0, 1, 1], [], []>} : vector<128x32xf32>, vector<32x32xf32>, vector<128x32xf32> -> vector<128x32xf32>
    %22 = vector.broadcast %2 : vector<1x32xf32> to vector<128x32xf32>
    %23 = arith.addf %21, %22 : vector<128x32xf32>
    %c0_11 = arith.constant 0 : index
    %c0_12 = arith.constant 0 : index
    %24 = vector.load %arg5[%c0_11, %c0_12] : memref<32x32xf32, #tpu.memory_space<vmem>>, vector<32x32xf32>
    %cst_13 = arith.constant dense<0.000000e+00> : vector<128x32xf32>
    %25 = tpu.matmul %15, %24, %cst_13 {dimension_numbers = #tpu.dot_dimension_numbers<[1], [0], [0], [1], [0, 0, 1, 1], [], []>} : vector<128x32xf32>, vector<32x32xf32>, vector<128x32xf32> -> vector<128x32xf32>
    %26 = vector.broadcast %3 : vector<1x32xf32> to vector<128x32xf32>
    %27 = arith.addf %25, %26 : vector<128x32xf32>
    %28 = vector.shape_cast %19 : vector<128x32xf32> to vector<16x8x32xf32>
    %29 = vector.shape_cast %23 : vector<128x32xf32> to vector<16x8x32xf32>
    %30 = vector.shape_cast %27 : vector<128x32xf32> to vector<16x8x32xf32>
    %31 = vector.extract_strided_slice %0 {offsets = [9, 0], sizes = [1, 32], strides = [1, 1]} : vector<13x32xf32> to vector<1x32xf32>
    %32 = vector.shape_cast %31 : vector<1x32xf32> to vector<1x1x32xf32>
    %33 = vector.broadcast %32 : vector<1x1x32xf32> to vector<16x8x32xf32>
    %34 = arith.mulf %29, %33 : vector<16x8x32xf32>
    %35 = vector.extract_strided_slice %0 {offsets = [10, 0], sizes = [1, 32], strides = [1, 1]} : vector<13x32xf32> to vector<1x32xf32>
    %36 = vector.shape_cast %35 : vector<1x32xf32> to vector<1x1x32xf32>
    %37 = vector.broadcast %36 : vector<1x1x32xf32> to vector<16x8x32xf32>
    %38 = arith.mulf %29, %37 : vector<16x8x32xf32>
    %39 = vector.extract_strided_slice %0 {offsets = [11, 0], sizes = [1, 32], strides = [1, 1]} : vector<13x32xf32> to vector<1x32xf32>
    %40 = vector.shape_cast %39 : vector<1x32xf32> to vector<1x1x32xf32>
    %41 = vector.broadcast %40 : vector<1x1x32xf32> to vector<16x8x32xf32>
    %42 = arith.mulf %29, %41 : vector<16x8x32xf32>
    %43 = vector.extract_strided_slice %0 {offsets = [12, 0], sizes = [1, 32], strides = [1, 1]} : vector<13x32xf32> to vector<1x32xf32>
    %44 = vector.shape_cast %43 : vector<1x32xf32> to vector<1x1x32xf32>
    %45 = vector.broadcast %44 : vector<1x1x32xf32> to vector<16x8x32xf32>
    %46 = arith.mulf %29, %45 : vector<16x8x32xf32>
    %47 = tpu.concatenate %34, %38, %42, %46 in 1 : vector<16x8x32xf32>, vector<16x8x32xf32>, vector<16x8x32xf32>, vector<16x8x32xf32> -> vector<16x32x32xf32>
    %48 = vector.extract_strided_slice %0 {offsets = [9, 0], sizes = [1, 32], strides = [1, 1]} : vector<13x32xf32> to vector<1x32xf32>
    %49 = vector.shape_cast %48 : vector<1x32xf32> to vector<1x1x32xf32>
    %50 = vector.broadcast %49 : vector<1x1x32xf32> to vector<16x8x32xf32>
    %51 = arith.mulf %30, %50 : vector<16x8x32xf32>
    %52 = vector.extract_strided_slice %0 {offsets = [10, 0], sizes = [1, 32], strides = [1, 1]} : vector<13x32xf32> to vector<1x32xf32>
    %53 = vector.shape_cast %52 : vector<1x32xf32> to vector<1x1x32xf32>
    %54 = vector.broadcast %53 : vector<1x1x32xf32> to vector<16x8x32xf32>
    %55 = arith.mulf %30, %54 : vector<16x8x32xf32>
    %56 = vector.extract_strided_slice %0 {offsets = [11, 0], sizes = [1, 32], strides = [1, 1]} : vector<13x32xf32> to vector<1x32xf32>
    %57 = vector.shape_cast %56 : vector<1x32xf32> to vector<1x1x32xf32>
    %58 = vector.broadcast %57 : vector<1x1x32xf32> to vector<16x8x32xf32>
    %59 = arith.mulf %30, %58 : vector<16x8x32xf32>
    %60 = vector.extract_strided_slice %0 {offsets = [12, 0], sizes = [1, 32], strides = [1, 1]} : vector<13x32xf32> to vector<1x32xf32>
    %61 = vector.shape_cast %60 : vector<1x32xf32> to vector<1x1x32xf32>
    %62 = vector.broadcast %61 : vector<1x1x32xf32> to vector<16x8x32xf32>
    %63 = arith.mulf %30, %62 : vector<16x8x32xf32>
    %64 = tpu.concatenate %51, %55, %59, %63 in 1 : vector<16x8x32xf32>, vector<16x8x32xf32>, vector<16x8x32xf32>, vector<16x8x32xf32> -> vector<16x32x32xf32>
    "tpu.trace_start"() <{level = 10 : i32, message = "bqc,bKc->bqK"}> : () -> ()
    %cst_14 = arith.constant dense<0.000000e+00> : vector<16x8x32xf32>
    %65 = tpu.matmul %28, %47, %cst_14 {dimension_numbers = #tpu.dot_dimension_numbers<[2], [2], [1], [1], [0, 0, 0, 1, 1, 1], [0], [0]>} : vector<16x8x32xf32>, vector<16x32x32xf32>, vector<16x8x32xf32> -> vector<16x8x32xf32>
    "tpu.trace_stop"() : () -> ()
    %cst_15 = arith.constant dense<0xFF800000> : vector<16x32xf32>
    %66 = vector.multi_reduction <maximumf>, %65, %cst_15 [1] : vector<16x8x32xf32> to vector<16x32xf32>
    %67 = vector.shape_cast %66 : vector<16x32xf32> to vector<16x1x32xf32>
    %68 = vector.broadcast %67 : vector<16x1x32xf32> to vector<16x8x32xf32>
    %69 = arith.subf %65, %68 : vector<16x8x32xf32>
    %70 = math.exp %69 : vector<16x8x32xf32>
    %cst_16 = arith.constant dense<0.000000e+00> : vector<16x32xf32>
    %71 = vector.multi_reduction <add>, %70, %cst_16 [1] : vector<16x8x32xf32> to vector<16x32xf32>
    %72 = vector.shape_cast %71 : vector<16x32xf32> to vector<16x1x32xf32>
    %73 = tpu.reciprocal %72 : vector<16x1x32xf32> -> vector<16x1x32xf32>
    %74 = vector.broadcast %73 : vector<16x1x32xf32> to vector<16x8x32xf32>
    %75 = arith.mulf %70, %74 : vector<16x8x32xf32>
    "tpu.trace_start"() <{level = 10 : i32, message = "bqK,bKc->bqc"}> : () -> ()
    %cst_17 = arith.constant dense<0.000000e+00> : vector<16x8x32xf32>
    %76 = tpu.matmul %75, %64, %cst_17 {dimension_numbers = #tpu.dot_dimension_numbers<[2], [1], [1], [2], [0, 0, 0, 1, 1, 2], [0], [0]>} : vector<16x8x32xf32>, vector<16x32x32xf32>, vector<16x8x32xf32> -> vector<16x8x32xf32>
    "tpu.trace_stop"() : () -> ()
    %77 = vector.shape_cast %76 : vector<16x8x32xf32> to vector<128x32xf32>
    %c0_18 = arith.constant 0 : index
    %c0_19 = arith.constant 0 : index
    %78 = vector.load %arg6[%c0_18, %c0_19] : memref<32x32xf32, #tpu.memory_space<vmem>>, vector<32x32xf32>
    %cst_20 = arith.constant dense<0.000000e+00> : vector<128x32xf32>
    %79 = tpu.matmul %77, %78, %cst_20 {dimension_numbers = #tpu.dot_dimension_numbers<[1], [0], [0], [1], [0, 0, 1, 1], [], []>} : vector<128x32xf32>, vector<32x32xf32>, vector<128x32xf32> -> vector<128x32xf32>
    %80 = vector.broadcast %4 : vector<1x32xf32> to vector<128x32xf32>
    %81 = arith.addf %79, %80 : vector<128x32xf32>
    %82 = arith.addf %81, %15 : vector<128x32xf32>
    %cst_21 = arith.constant dense<0.000000e+00> : vector<128xf32>
    %83 = vector.multi_reduction <add>, %82, %cst_21 [1] : vector<128x32xf32> to vector<128xf32>
    %84 = vector.shape_cast %83 : vector<128xf32> to vector<128x1xf32>
    %cst_22 = arith.constant 3.200000e+01 : f32
    %85 = vector.broadcast %cst_22 : f32 to vector<128x1xf32>
    %86 = arith.divf %84, %85 : vector<128x1xf32>
    %87 = vector.broadcast %86 : vector<128x1xf32> to vector<128x32xf32>
    %88 = arith.subf %82, %87 : vector<128x32xf32>
    %89 = arith.mulf %88, %88 : vector<128x32xf32>
    %cst_23 = arith.constant dense<0.000000e+00> : vector<128xf32>
    %90 = vector.multi_reduction <add>, %89, %cst_23 [1] : vector<128x32xf32> to vector<128xf32>
    %91 = vector.shape_cast %90 : vector<128xf32> to vector<128x1xf32>
    %cst_24 = arith.constant 3.200000e+01 : f32
    %92 = vector.broadcast %cst_24 : f32 to vector<128x1xf32>
    %93 = arith.divf %91, %92 : vector<128x1xf32>
    %94 = vector.broadcast %86 : vector<128x1xf32> to vector<128x32xf32>
    %95 = arith.subf %82, %94 : vector<128x32xf32>
    %cst_25 = arith.constant 9.99999974E-6 : f32
    %96 = vector.broadcast %cst_25 : f32 to vector<128x1xf32>
    %97 = arith.addf %93, %96 : vector<128x1xf32>
    %98 = math.rsqrt %97 : vector<128x1xf32>
    %99 = vector.broadcast %98 : vector<128x1xf32> to vector<128x32xf32>
    %100 = arith.mulf %95, %99 : vector<128x32xf32>
    %101 = vector.broadcast %5 : vector<1x32xf32> to vector<128x32xf32>
    %102 = arith.mulf %100, %101 : vector<128x32xf32>
    %103 = vector.broadcast %6 : vector<1x32xf32> to vector<128x32xf32>
    %104 = arith.addf %102, %103 : vector<128x32xf32>
    %c0_26 = arith.constant 0 : index
    %c0_27 = arith.constant 0 : index
    %105 = vector.load %arg7[%c0_26, %c0_27] : memref<32x64xf32, #tpu.memory_space<vmem>>, vector<32x64xf32>
    %cst_28 = arith.constant dense<0.000000e+00> : vector<128x64xf32>
    %106 = tpu.matmul %104, %105, %cst_28 {dimension_numbers = #tpu.dot_dimension_numbers<[1], [0], [0], [1], [0, 0, 1, 1], [], []>} : vector<128x32xf32>, vector<32x64xf32>, vector<128x64xf32> -> vector<128x64xf32>
    %c0_29 = arith.constant 0 : index
    %c0_30 = arith.constant 0 : index
    %107 = vector.load %arg10[%c0_29, %c0_30] : memref<1x64xf32, #tpu.memory_space<vmem>>, vector<1x64xf32>
    %108 = vector.broadcast %107 : vector<1x64xf32> to vector<128x64xf32>
    %109 = arith.addf %106, %108 : vector<128x64xf32>
    %cst_31 = arith.constant 0.000000e+00 : f32
    %110 = vector.broadcast %cst_31 : f32 to vector<128x64xf32>
    %111 = arith.maximumf %109, %110 : vector<128x64xf32>
    %c0_32 = arith.constant 0 : index
    %c0_33 = arith.constant 0 : index
    %112 = vector.load %arg8[%c0_32, %c0_33] : memref<64x32xf32, #tpu.memory_space<vmem>>, vector<64x32xf32>
    %cst_34 = arith.constant dense<0.000000e+00> : vector<128x32xf32>
    %113 = tpu.matmul %111, %112, %cst_34 {dimension_numbers = #tpu.dot_dimension_numbers<[1], [0], [0], [1], [0, 0, 1, 1], [], []>} : vector<128x64xf32>, vector<64x32xf32>, vector<128x32xf32> -> vector<128x32xf32>
    %114 = vector.broadcast %9 : vector<1x32xf32> to vector<128x32xf32>
    %115 = arith.addf %113, %114 : vector<128x32xf32>
    %116 = arith.addf %104, %115 : vector<128x32xf32>
    %cst_35 = arith.constant dense<0.000000e+00> : vector<128xf32>
    %117 = vector.multi_reduction <add>, %116, %cst_35 [1] : vector<128x32xf32> to vector<128xf32>
    %118 = vector.shape_cast %117 : vector<128xf32> to vector<128x1xf32>
    %cst_36 = arith.constant 3.200000e+01 : f32
    %119 = vector.broadcast %cst_36 : f32 to vector<128x1xf32>
    %120 = arith.divf %118, %119 : vector<128x1xf32>
    %121 = vector.broadcast %120 : vector<128x1xf32> to vector<128x32xf32>
    %122 = arith.subf %116, %121 : vector<128x32xf32>
    %123 = arith.mulf %122, %122 : vector<128x32xf32>
    %cst_37 = arith.constant dense<0.000000e+00> : vector<128xf32>
    %124 = vector.multi_reduction <add>, %123, %cst_37 [1] : vector<128x32xf32> to vector<128xf32>
    %125 = vector.shape_cast %124 : vector<128xf32> to vector<128x1xf32>
    %cst_38 = arith.constant 3.200000e+01 : f32
    %126 = vector.broadcast %cst_38 : f32 to vector<128x1xf32>
    %127 = arith.divf %125, %126 : vector<128x1xf32>
    %128 = vector.broadcast %120 : vector<128x1xf32> to vector<128x32xf32>
    %129 = arith.subf %116, %128 : vector<128x32xf32>
    %cst_39 = arith.constant 9.99999974E-6 : f32
    %130 = vector.broadcast %cst_39 : f32 to vector<128x1xf32>
    %131 = arith.addf %127, %130 : vector<128x1xf32>
    %132 = math.rsqrt %131 : vector<128x1xf32>
    %133 = vector.broadcast %132 : vector<128x1xf32> to vector<128x32xf32>
    %134 = arith.mulf %129, %133 : vector<128x32xf32>
    %135 = vector.broadcast %7 : vector<1x32xf32> to vector<128x32xf32>
    %136 = arith.mulf %134, %135 : vector<128x32xf32>
    %137 = vector.broadcast %8 : vector<1x32xf32> to vector<128x32xf32>
    %138 = arith.addf %136, %137 : vector<128x32xf32>
    %139 = arith.addf %138, %15 : vector<128x32xf32>
    %140 = arith.addf %139, %104 : vector<128x32xf32>
    %141 = vector.shape_cast %140 : vector<128x32xf32> to vector<16x8x32xf32>
    %142 = vector.extract_strided_slice %141 {offsets = [0, 0, 0], sizes = [16, 1, 32], strides = [1, 1, 1]} : vector<16x8x32xf32> to vector<16x1x32xf32>
    %143 = vector.shape_cast %142 : vector<16x1x32xf32> to vector<16x32xf32>
    %144 = vector.extract_strided_slice %141 {offsets = [0, 1, 0], sizes = [16, 1, 32], strides = [1, 1, 1]} : vector<16x8x32xf32> to vector<16x1x32xf32>
    %145 = vector.shape_cast %144 : vector<16x1x32xf32> to vector<16x32xf32>
    %146 = vector.extract_strided_slice %141 {offsets = [0, 2, 0], sizes = [16, 1, 32], strides = [1, 1, 1]} : vector<16x8x32xf32> to vector<16x1x32xf32>
    %147 = vector.shape_cast %146 : vector<16x1x32xf32> to vector<16x32xf32>
    %148 = vector.extract_strided_slice %141 {offsets = [0, 3, 0], sizes = [16, 1, 32], strides = [1, 1, 1]} : vector<16x8x32xf32> to vector<16x1x32xf32>
    %149 = vector.shape_cast %148 : vector<16x1x32xf32> to vector<16x32xf32>
    %150 = vector.extract_strided_slice %141 {offsets = [0, 4, 0], sizes = [16, 1, 32], strides = [1, 1, 1]} : vector<16x8x32xf32> to vector<16x1x32xf32>
    %151 = vector.shape_cast %150 : vector<16x1x32xf32> to vector<16x32xf32>
    %152 = vector.extract_strided_slice %141 {offsets = [0, 5, 0], sizes = [16, 1, 32], strides = [1, 1, 1]} : vector<16x8x32xf32> to vector<16x1x32xf32>
    %153 = vector.shape_cast %152 : vector<16x1x32xf32> to vector<16x32xf32>
    %154 = vector.extract_strided_slice %141 {offsets = [0, 6, 0], sizes = [16, 1, 32], strides = [1, 1, 1]} : vector<16x8x32xf32> to vector<16x1x32xf32>
    %155 = vector.shape_cast %154 : vector<16x1x32xf32> to vector<16x32xf32>
    %156 = vector.extract_strided_slice %141 {offsets = [0, 7, 0], sizes = [16, 1, 32], strides = [1, 1, 1]} : vector<16x8x32xf32> to vector<16x1x32xf32>
    %157 = vector.shape_cast %156 : vector<16x1x32xf32> to vector<16x32xf32>
    %158 = tpu.concatenate %143, %145, %147, %149, %151, %153, %155, %157 in 1 : vector<16x32xf32>, vector<16x32xf32>, vector<16x32xf32>, vector<16x32xf32>, vector<16x32xf32>, vector<16x32xf32>, vector<16x32xf32>, vector<16x32xf32> -> vector<16x256xf32>
    %c0_40 = arith.constant 0 : index
    %c0_41 = arith.constant 0 : index
    %159 = vector.load %arg11[%c0_40, %c0_41] : memref<16x256xf32, #tpu.memory_space<vmem>>, vector<16x256xf32>
    tpu.vector_store %arg11[%c0_40, %c0_41], %158 {strides = array<i32>} : memref<16x256xf32, #tpu.memory_space<vmem>>, vector<16x256xf32>,
    return
  }
  func.func @transform_0(%arg0: i32) -> (i32, i32, i32) {
    %c0_i32 = arith.constant 0 : i32
    %c0_i32_0 = arith.constant 0 : i32
    %c0_i32_1 = arith.constant 0 : i32
    return %arg0, %c0_i32, %c0_i32_0 : i32, i32, i32
  }
  func.func @transform_1(%arg0: i32) -> (i32, i32) {
    %c0_i32 = arith.constant 0 : i32
    %c0_i32_0 = arith.constant 0 : i32
    %c0_i32_1 = arith.constant 0 : i32
    return %c0_i32, %c0_i32_0 : i32, i32
  }
  func.func @transform_2(%arg0: i32) -> (i32, i32) {
    %c0_i32 = arith.constant 0 : i32
    %c0_i32_0 = arith.constant 0 : i32
    %c0_i32_1 = arith.constant 0 : i32
    return %c0_i32, %c0_i32_0 : i32, i32
  }
  func.func @transform_3(%arg0: i32) -> (i32, i32) {
    %c0_i32 = arith.constant 0 : i32
    %c0_i32_0 = arith.constant 0 : i32
    %c0_i32_1 = arith.constant 0 : i32
    return %c0_i32, %c0_i32_0 : i32, i32
  }
  func.func @transform_4(%arg0: i32) -> (i32, i32) {
    %c0_i32 = arith.constant 0 : i32
    %c0_i32_0 = arith.constant 0 : i32
    %c0_i32_1 = arith.constant 0 : i32
    return %c0_i32, %c0_i32_0 : i32, i32
  }
  func.func @transform_5(%arg0: i32) -> (i32, i32) {
    %c0_i32 = arith.constant 0 : i32
    %c0_i32_0 = arith.constant 0 : i32
    %c0_i32_1 = arith.constant 0 : i32
    return %c0_i32, %c0_i32_0 : i32, i32
  }
  func.func @transform_6(%arg0: i32) -> (i32, i32) {
    %c0_i32 = arith.constant 0 : i32
    %c0_i32_0 = arith.constant 0 : i32
    %c0_i32_1 = arith.constant 0 : i32
    return %c0_i32, %c0_i32_0 : i32, i32
  }
  func.func @transform_7(%arg0: i32) -> (i32, i32) {
    %c0_i32 = arith.constant 0 : i32
    %c0_i32_0 = arith.constant 0 : i32
    %c0_i32_1 = arith.constant 0 : i32
    return %c0_i32, %c0_i32_0 : i32, i32
  }
  func.func @transform_8(%arg0: i32) -> (i32, i32) {
    %c0_i32 = arith.constant 0 : i32
    %c0_i32_0 = arith.constant 0 : i32
    %c0_i32_1 = arith.constant 0 : i32
    return %c0_i32, %c0_i32_0 : i32, i32
  }
  func.func @transform_9(%arg0: i32) -> (i32, i32) {
    %c0_i32 = arith.constant 0 : i32
    %c0_i32_0 = arith.constant 0 : i32
    %c0_i32_1 = arith.constant 0 : i32
    return %c0_i32, %c0_i32_0 : i32, i32
  }
  func.func @transform_10(%arg0: i32) -> (i32, i32) {
    %c0_i32 = arith.constant 0 : i32
    %c0_i32_0 = arith.constant 0 : i32
    return %arg0, %c0_i32 : i32, i32
  }
}

</mosaic_0001>

<llo_original>
// kernel: transformer_forward.1
$region0: #{transformer_forward.1}
  #allocation0 [shape = 'u32[]', space=smem, size = 0x4, offset = 0x4, fixed_abs, tag = 'smem constant byte address 0x4 - core index']
  #allocation1 [shape = 'u32[144,128]{1,0:T(1,128)}', space=vmem, size = 0x12000, scoped, tag = 'internal scratch']
  %s0 = inlined_call_operand.vmem [shape: f32[32,8,32], index: 0, kind: input, shape index: {}]
  %s1 = inlined_call_operand.vmem [shape: f32[8,32], index: 1, kind: input, shape index: {}]
  %s2 = inlined_call_operand.vmem [shape: f32[32,32], index: 2, kind: input, shape index: {}]
  %s3 = inlined_call_operand.vmem [shape: f32[32,32], index: 3, kind: input, shape index: {}]
  %s4 = inlined_call_operand.vmem [shape: f32[32,32], index: 4, kind: input, shape index: {}]
  %s5 = inlined_call_operand.vmem [shape: f32[32,32], index: 5, kind: input, shape index: {}]
  %s6 = inlined_call_operand.vmem [shape: f32[32,64], index: 6, kind: input, shape index: {}]
  %s7 = inlined_call_operand.vmem [shape: f32[64,32], index: 7, kind: input, shape index: {}]
  %s8 = inlined_call_operand.vmem [shape: f32[13,32], index: 8, kind: input, shape index: {}]
  %s9 = inlined_call_operand.vmem [shape: f32[1,64], index: 9, kind: input, shape index: {}]
  %s10 = inlined_call_operand.vmem [shape: f32[32,256], index: 10, kind: output, shape index: {}]
  %s11 = sld [smem:[#allocation0]]
  $region73: #{transformer_forward.1} parent=0
    _
  %s13 = ssub.s32 1, %s11
  %s14 = scalar_select 0, %s13, %s11
  loop: start=0, step=1, limit=4
  $region2: #{transformer_forward.1} parent=0 // loop_pre_header
    _
  $region3: #{transformer_forward.1} parent=0 // loop_header
    %s16 = sphi 0, %s20
    %p17 = scmp.ge.s32.totalorder %s16, 4
    %s26 = sphi 0, %s28
    %s29 = sphi 0, %s26
    %s30 = sphi 0, %s29
    %s46 = sphi 0, %s30
    %s50 = sphi 0, %s50
    %s52 = sphi 0, %s50
    %s53 = sphi 0, %s52
    %s67 = sphi 0, %s53
    %s71 = sphi 0, %s71
    %s73 = sphi 0, %s71
    %s74 = sphi 0, %s73
    %s88 = sphi 0, %s74
    %s92 = sphi 0, %s92
    %s94 = sphi 0, %s92
    %s95 = sphi 0, %s94
    %s109 = sphi 0, %s95
    %s113 = sphi 0, %s113
    %s115 = sphi 0, %s113
    %s116 = sphi 0, %s115
    %s130 = sphi 0, %s116
    %s134 = sphi 0, %s134
    %s136 = sphi 0, %s134
    %s137 = sphi 0, %s136
    %s151 = sphi 0, %s137
    %s155 = sphi 0, %s155
    %s157 = sphi 0, %s155
    %s158 = sphi 0, %s157
    %s172 = sphi 0, %s158
    %s176 = sphi 0, %s176
    %s178 = sphi 0, %s176
    %s179 = sphi 0, %s178
    %s193 = sphi 0, %s179
    %s197 = sphi 0, %s197
    %s199 = sphi 0, %s197
    %s200 = sphi 0, %s199
    %s214 = sphi 0, %s200
    %s218 = sphi 0, %s218
    %s220 = sphi 0, %s218
    %s221 = sphi 0, %s220
    %s235 = sphi 0, %s221
    %s241 = sphi 0, %s243
    %s244 = sphi 0, %s241
    %s245 = sphi 0, %s244
    %s261 = sphi 0, %s245
  $region4: #{transformer_forward.1} parent=0 // loop_header_branch
    %19 = sbr.rel (%p17) target = $region8
  $region5: #{transformer_forward.1} parent=0 // loop_body
    %s21 = ssub.s32 %s16, 1
    %s22 = ssub.s32 %s16, 2
    %s23 = sadd.s32 %s16, 1
    %s24 = ssub.s32 %s16, %s23
    %p25 = scmp.eq.s32.totalorder %s24, 0
    %s27 = sadd.s32 %s26, 1
    %s28 = scalar_select %p25, %s26, %s27
    %p31 = pneg %p25
    %p32 = scmp.eq.s32.totalorder %s16, 1
    %p33 = por %p31, %p32
    %p34 = scmp.ne.s32.totalorder %s26, %s29
    %p35 = scmp.eq.s32.totalorder %s16, 0
    %p36 = por %p34, %p35
    %p37 = scmp.ne.s32.totalorder %s26, %s29
    %p38 = scmp.eq.s32.totalorder %s21, 1
    %p39 = por %p37, %p38
    %p40 = scmp.ne.s32.totalorder %s29, %s30
    %p41 = scmp.eq.s32.totalorder %s21, 0
    %p42 = por %p40, %p41
    %p43 = scmp.ne.s32.totalorder %s29, %s30
    %p44 = scmp.eq.s32.totalorder %s22, 1
    %p45 = por %p43, %p44
    %p47 = scmp.ne.s32.totalorder %s30, %s46
    %p48 = scmp.eq.s32.totalorder %s22, 0
    %p49 = por %p47, %p48
    %s51 = sadd.s32 %s50, 1
    %p54 = scmp.eq.s32.totalorder %s16, 1
    %p55 = scmp.ne.s32.totalorder %s50, %s52
    %p56 = scmp.eq.s32.totalorder %s16, 0
    %p57 = por %p55, %p56
    %p58 = scmp.ne.s32.totalorder %s50, %s52
    %p59 = scmp.eq.s32.totalorder %s21, 1
    %p60 = por %p58, %p59
    %p61 = scmp.ne.s32.totalorder %s52, %s53
    %p62 = scmp.eq.s32.totalorder %s21, 0
    %p63 = por %p61, %p62
    %p64 = scmp.ne.s32.totalorder %s52, %s53
    %p65 = scmp.eq.s32.totalorder %s22, 1
    %p66 = por %p64, %p65
    %p68 = scmp.ne.s32.totalorder %s53, %s67
    %p69 = scmp.eq.s32.totalorder %s22, 0
    %p70 = por %p68, %p69
    %s72 = sadd.s32 %s71, 1
    %p75 = scmp.eq.s32.totalorder %s16, 1
    %p76 = scmp.ne.s32.totalorder %s71, %s73
    %p77 = scmp.eq.s32.totalorder %s16, 0
    %p78 = por %p76, %p77
    %p79 = scmp.ne.s32.totalorder %s71, %s73
    %p80 = scmp.eq.s32.totalorder %s21, 1
    %p81 = por %p79, %p80
    %p82 = scmp.ne.s32.totalorder %s73, %s74
    %p83 = scmp.eq.s32.totalorder %s21, 0
    %p84 = por %p82, %p83
    %p85 = scmp.ne.s32.totalorder %s73, %s74
    %p86 = scmp.eq.s32.totalorder %s22, 1
    %p87 = por %p85, %p86
    %p89 = scmp.ne.s32.totalorder %s74, %s88
    %p90 = scmp.eq.s32.totalorder %s22, 0
    %p91 = por %p89, %p90
    %s93 = sadd.s32 %s92, 1
    %p96 = scmp.eq.s32.totalorder %s16, 1
    %p97 = scmp.ne.s32.totalorder %s92, %s94
    %p98 = scmp.eq.s32.totalorder %s16, 0
    %p99 = por %p97, %p98
    %p100 = scmp.ne.s32.totalorder %s92, %s94
    %p101 = scmp.eq.s32.totalorder %s21, 1
    %p102 = por %p100, %p101
    %p103 = scmp.ne.s32.totalorder %s94, %s95
    %p104 = scmp.eq.s32.totalorder %s21, 0
    %p105 = por %p103, %p104
    %p106 = scmp.ne.s32.totalorder %s94, %s95
    %p107 = scmp.eq.s32.totalorder %s22, 1
    %p108 = por %p106, %p107
    %p110 = scmp.ne.s32.totalorder %s95, %s109
    %p111 = scmp.eq.s32.totalorder %s22, 0
    %p112 = por %p110, %p111
    %s114 = sadd.s32 %s113, 1
    %p117 = scmp.eq.s32.totalorder %s16, 1
    %p118 = scmp.ne.s32.totalorder %s113, %s115
    %p119 = scmp.eq.s32.totalorder %s16, 0
    %p120 = por %p118, %p119
    %p121 = scmp.ne.s32.totalorder %s113, %s115
    %p122 = scmp.eq.s32.totalorder %s21, 1
    %p123 = por %p121, %p122
    %p124 = scmp.ne.s32.totalorder %s115, %s116
    %p125 = scmp.eq.s32.totalorder %s21, 0
    %p126 = por %p124, %p125
    %p127 = scmp.ne.s32.totalorder %s115, %s116
    %p128 = scmp.eq.s32.totalorder %s22, 1
    %p129 = por %p127, %p128
    %p131 = scmp.ne.s32.totalorder %s116, %s130
    %p132 = scmp.eq.s32.totalorder %s22, 0
    %p133 = por %p131, %p132
    %s135 = sadd.s32 %s134, 1
    %p138 = scmp.eq.s32.totalorder %s16, 1
    %p139 = scmp.ne.s32.totalorder %s134, %s136
    %p140 = scmp.eq.s32.totalorder %s16, 0
    %p141 = por %p139, %p140
    %p142 = scmp.ne.s32.totalorder %s134, %s136
    %p143 = scmp.eq.s32.totalorder %s21, 1
    %p144 = por %p142, %p143
    %p145 = scmp.ne.s32.totalorder %s136, %s137
    %p146 = scmp.eq.s32.totalorder %s21, 0
    %p147 = por %p145, %p146
    %p148 = scmp.ne.s32.totalorder %s136, %s137
    %p149 = scmp.eq.s32.totalorder %s22, 1
    %p150 = por %p148, %p149
    %p152 = scmp.ne.s32.totalorder %s137, %s151
    %p153 = scmp.eq.s32.totalorder %s22, 0
    %p154 = por %p152, %p153
    %s156 = sadd.s32 %s155, 1
    %p159 = scmp.eq.s32.totalorder %s16, 1
    %p160 = scmp.ne.s32.totalorder %s155, %s157
    %p161 = scmp.eq.s32.totalorder %s16, 0
    %p162 = por %p160, %p161
    %p163 = scmp.ne.s32.totalorder %s155, %s157
    %p164 = scmp.eq.s32.totalorder %s21, 1
    %p165 = por %p163, %p164
    %p166 = scmp.ne.s32.totalorder %s157, %s158
    %p167 = scmp.eq.s32.totalorder %s21, 0
    %p168 = por %p166, %p167
    %p169 = scmp.ne.s32.totalorder %s157, %s158
    %p170 = scmp.eq.s32.totalorder %s22, 1
    %p171 = por %p169, %p170
    %p173 = scmp.ne.s32.totalorder %s158, %s172
    %p174 = scmp.eq.s32.totalorder %s22, 0
    %p175 = por %p173, %p174
    %s177 = sadd.s32 %s176, 1
    %p180 = scmp.eq.s32.totalorder %s16, 1
    %p181 = scmp.ne.s32.totalorder %s176, %s178
    %p182 = scmp.eq.s32.totalorder %s16, 0
    %p183 = por %p181, %p182
    %p184 = scmp.ne.s32.totalorder %s176, %s178
    %p185 = scmp.eq.s32.totalorder %s21, 1
    %p186 = por %p184, %p185
    %p187 = scmp.ne.s32.totalorder %s178, %s179
    %p188 = scmp.eq.s32.totalorder %s21, 0
    %p189 = por %p187, %p188
    %p190 = scmp.ne.s32.totalorder %s178, %s179
    %p191 = scmp.eq.s32.totalorder %s22, 1
    %p192 = por %p190, %p191
    %p194 = scmp.ne.s32.totalorder %s179, %s193
    %p195 = scmp.eq.s32.totalorder %s22, 0
    %p196 = por %p194, %p195
    %s198 = sadd.s32 %s197, 1
    %p201 = scmp.eq.s32.totalorder %s16, 1
    %p202 = scmp.ne.s32.totalorder %s197, %s199
    %p203 = scmp.eq.s32.totalorder %s16, 0
    %p204 = por %p202, %p203
    %p205 = scmp.ne.s32.totalorder %s197, %s199
    %p206 = scmp.eq.s32.totalorder %s21, 1
    %p207 = por %p205, %p206
    %p208 = scmp.ne.s32.totalorder %s199, %s200
    %p209 = scmp.eq.s32.totalorder %s21, 0
    %p210 = por %p208, %p209
    %p211 = scmp.ne.s32.totalorder %s199, %s200
    %p212 = scmp.eq.s32.totalorder %s22, 1
    %p213 = por %p211, %p212
    %p215 = scmp.ne.s32.totalorder %s200, %s214
    %p216 = scmp.eq.s32.totalorder %s22, 0
    %p217 = por %p215, %p216
    %s219 = sadd.s32 %s218, 1
    %p222 = scmp.eq.s32.totalorder %s16, 1
    %p223 = scmp.ne.s32.totalorder %s218, %s220
    %p224 = scmp.eq.s32.totalorder %s16, 0
    %p225 = por %p223, %p224
    %p226 = scmp.ne.s32.totalorder %s218, %s220
    %p227 = scmp.eq.s32.totalorder %s21, 1
    %p228 = por %p226, %p227
    %p229 = scmp.ne.s32.totalorder %s220, %s221
    %p230 = scmp.eq.s32.totalorder %s21, 0
    %p231 = por %p229, %p230
    %p232 = scmp.ne.s32.totalorder %s220, %s221
    %p233 = scmp.eq.s32.totalorder %s22, 1
    %p234 = por %p232, %p233
    %p236 = scmp.ne.s32.totalorder %s221, %s235
    %p237 = scmp.eq.s32.totalorder %s22, 0
    %p238 = por %p236, %p237
    %s239 = ssub.s32 %s16, %s23
    %p240 = scmp.eq.s32.totalorder %s239, 0
    %s242 = sadd.s32 %s241, 1
    %s243 = scalar_select %p240, %s241, %s242
    %p246 = pneg %p240
    %p247 = scmp.eq.s32.totalorder %s16, 1
    %p248 = por %p246, %p247
    %p249 = scmp.ne.s32.totalorder %s241, %s244
    %p250 = scmp.eq.s32.totalorder %s16, 0
    %p251 = por %p249, %p250
    %p252 = scmp.ne.s32.totalorder %s241, %s244
    %p253 = scmp.eq.s32.totalorder %s21, 1
    %p254 = por %p252, %p253
    %p255 = scmp.ne.s32.totalorder %s244, %s245
    %p256 = scmp.eq.s32.totalorder %s21, 0
    %p257 = por %p255, %p256
    %p258 = scmp.ne.s32.totalorder %s244, %s245
    %p259 = scmp.eq.s32.totalorder %s22, 1
    %p260 = por %p258, %p259
    %p262 = scmp.ne.s32.totalorder %s245, %s261
    %p263 = scmp.eq.s32.totalorder %s22, 0
    %p264 = por %p262, %p263
    %p265 = scmp.le.s32.totalorder 1, %s16
    %p266 = scmp.lt.s32.totalorder %s16, 3
    %p267 = pnand %p265, %p266
    %p268 = pneg %p267
    // Predicated region
    $region9: #{transformer_forward.1} parent=5 // pred_check
      _
    $region10: #{transformer_forward.1} parent=5 // pred_check_branch
      %270 = sbr.rel (%p267) target = $region12
    $region11: #{transformer_forward.1} parent=5 // pred_region
      %s271 = ssub.s32 %s16, 1
      // Predicated region
      $region13: #{transformer_forward.1} parent=11 // pred_check
        %p272 = pneg %p63
      $region14: #{transformer_forward.1} parent=11 // pred_check_branch
        %274 = sbr.rel (%p272) target = $region16
      $region15: #{transformer_forward.1} parent=11 // pred_region
        _
      $region16: #{transformer_forward.1} parent=11 // pred_fallthru
        _
      // Predicated region
      $region17: #{transformer_forward.1} parent=11 // pred_check
        %p275 = pneg %p84
      $region18: #{transformer_forward.1} parent=11 // pred_check_branch
        %277 = sbr.rel (%p275) target = $region20
      $region19: #{transformer_forward.1} parent=11 // pred_region
        _
      $region20: #{transformer_forward.1} parent=11 // pred_fallthru
        _
      // Predicated region
      $region21: #{transformer_forward.1} parent=11 // pred_check
        %p278 = pneg %p105
      $region22: #{transformer_forward.1} parent=11 // pred_check_branch
        %280 = sbr.rel (%p278) target = $region24
      $region23: #{transformer_forward.1} parent=11 // pred_region
        _
      $region24: #{transformer_forward.1} parent=11 // pred_fallthru
        _
      // Predicated region
      $region25: #{transformer_forward.1} parent=11 // pred_check
        %p281 = pneg %p126
      $region26: #{transformer_forward.1} parent=11 // pred_check_branch
        %283 = sbr.rel (%p281) target = $region28
      $region27: #{transformer_forward.1} parent=11 // pred_region
        _
      $region28: #{transformer_forward.1} parent=11 // pred_fallthru
        _
      // Predicated region
      $region29: #{transformer_forward.1} parent=11 // pred_check
        %p284 = pneg %p147
      $region30: #{transformer_forward.1} parent=11 // pred_check_branch
        %286 = sbr.rel (%p284) target = $region32
      $region31: #{transformer_forward.1} parent=11 // pred_region
        _
      $region32: #{transformer_forward.1} parent=11 // pred_fallthru
        _
      // Predicated region
      $region33: #{transformer_forward.1} parent=11 // pred_check
        %p287 = pneg %p168
      $region34: #{transformer_forward.1} parent=11 // pred_check_branch
        %289 = sbr.rel (%p287) target = $region36
      $region35: #{transformer_forward.1} parent=11 // pred_region
        _
      $region36: #{transformer_forward.1} parent=11 // pred_fallthru
        _
      // Predicated region
      $region37: #{transformer_forward.1} parent=11 // pred_check
        %p290 = pneg %p189
      $region38: #{transformer_forward.1} parent=11 // pred_check_branch
        %292 = sbr.rel (%p290) target = $region40
      $region39: #{transformer_forward.1} parent=11 // pred_region
        _
      $region40: #{transformer_forward.1} parent=11 // pred_fallthru
        _
      // Predicated region
      $region41: #{transformer_forward.1} parent=11 // pred_check
        %p293 = pneg %p210
      $region42: #{transformer_forward.1} parent=11 // pred_check_branch
        %295 = sbr.rel (%p293) target = $region44
      $region43: #{transformer_forward.1} parent=11 // pred_region
        _
      $region44: #{transformer_forward.1} parent=11 // pred_fallthru
        _
      // Predicated region
      $region45: #{transformer_forward.1} parent=11 // pred_check
        %p296 = pneg %p231
      $region46: #{transformer_forward.1} parent=11 // pred_check_branch
        %298 = sbr.rel (%p296) target = $region48
      $region47: #{transformer_forward.1} parent=11 // pred_region
        _
      $region48: #{transformer_forward.1} parent=11 // pred_fallthru
        _
    $region12: #{transformer_forward.1} parent=5 // pred_fallthru
      _
    %p299 = scmp.lt.s32.totalorder %s16, 2
    // Predicated region
    $region49: #{transformer_forward.1} parent=5 // pred_check
      %p300 = pneg %p299
    $region50: #{transformer_forward.1} parent=5 // pred_check_branch
      %302 = sbr.rel (%p300) target = $region52
    $region51: #{transformer_forward.1} parent=5 // pred_region
      // Predicated region
      $region53: #{transformer_forward.1} parent=51 // pred_check
        %p303 = pneg %p36
      $region54: #{transformer_forward.1} parent=51 // pred_check_branch
        %305 = sbr.rel (%p303) target = $region56
      $region55: #{transformer_forward.1} parent=51 // pred_region
        %s306 = smul.u32 16, %s16
        %p307 = scmp.lt.s32.totalorder %s306, 31
        %s308 = scalar_select %p307, %s306, 31
        %s309 = smul.addr %s308, 8
        %s310 = scalar_lea.vmem %s0, %s309
        %s311 = smul.u32 16, %s16
      $region56: #{transformer_forward.1} parent=51 // pred_fallthru
        _
    $region52: #{transformer_forward.1} parent=5 // pred_fallthru
      _
    %p312 = scmp.le.s32.totalorder 1, %s16
    %p313 = scmp.lt.s32.totalorder %s16, 3
    %p314 = pnand %p312, %p313
    %p315 = pneg %p314
    // Predicated region
    $region57: #{transformer_forward.1} parent=5 // pred_check
      _
    $region58: #{transformer_forward.1} parent=5 // pred_check_branch
      %317 = sbr.rel (%p314) target = $region60
    $region59: #{transformer_forward.1} parent=5 // pred_region
      %s318 = ssub.s32 %s16, 1
      %s319 = smul.u32 16, %s21
      %p320 = scmp.lt.s32.totalorder %s319, 31
      %s321 = scalar_select %p320, %s319, 31
      %s322 = smul.addr %s321, 8
      %s323 = scalar_lea.vmem %s0, %s322
      %p324 = pneg %p42
      %p325 = pneg %p39
      %p326 = pneg %p63
      %p327 = pneg %p60
      %p328 = pneg %p84
      %p329 = pneg %p81
      %p330 = pneg %p105
      %p331 = pneg %p102
      %p332 = pneg %p126
      %p333 = pneg %p123
      %p334 = pneg %p147
      %p335 = pneg %p144
      %p336 = pneg %p168
      %p337 = pneg %p165
      %p338 = pneg %p189
      %p339 = pneg %p186
      %p340 = pneg %p210
      %p341 = pneg %p207
      %p342 = pneg %p231
      %p343 = pneg %p228
      %p344 = pneg %p257
      %p345 = pneg %p254
      %s346 = smul.u32 2, %s21
      %p347 = scmp.lt.s32.totalorder %s346, 3
      %s348 = scalar_select %p347, %s346, 3
      %s349 = smul.addr %s348, 2
      %s350 = smul.addr %s349, 8
      %s351 = scalar_lea.vmem %s10, %s350
      %s352 = smul.u32 16, %s21
      %p353 = scmp.lt.s32.totalorder %s352, 31
      %s354 = scalar_select %p353, %s352, 31
      %s355 = smul.addr %s354, 8
      %s356 = scalar_lea.vmem %s0, %s355
      %s357 = smul.u32 16, %s21
      %s358 = smul.u32 2, %s21
      %p359 = scmp.lt.s32.totalorder %s358, 3
      %s360 = scalar_select %p359, %s358, 3
      %s361 = smul.addr %s360, 2
      %s362 = smul.addr %s361, 8
      %s363 = scalar_lea.vmem %s10, %s362
      %s364 = smul.u32 2, %s21
      %v365 = vld [vmem:[%s8] sm:$0xff]
      %v366 = vld [vmem:[%s8 + $0x8] sm:$0x1f]
      %v367 = vld [vmem:[%s356] sm:$0xff]
      %v368 = vld [vmem:[%s356 + $0x8] sm:$0xff]
      %v369 = vld [vmem:[%s356 + $0x10] sm:$0xff]
      %v370 = vld [vmem:[%s356 + $0x18] sm:$0xff]
      %v371 = vld [vmem:[%s356 + $0x20] sm:$0xff]
      %v372 = vld [vmem:[%s356 + $0x28] sm:$0xff]
      %v373 = vld [vmem:[%s356 + $0x30] sm:$0xff]
      %v374 = vld [vmem:[%s356 + $0x38] sm:$0xff]
      %v375 = vld [vmem:[%s356 + $0x40] sm:$0xff]
      %v376 = vld [vmem:[%s356 + $0x48] sm:$0xff]
      %v377 = vld [vmem:[%s356 + $0x50] sm:$0xff]
      %v378 = vld [vmem:[%s356 + $0x58] sm:$0xff]
      %v379 = vld [vmem:[%s356 + $0x60] sm:$0xff]
      %v380 = vld [vmem:[%s356 + $0x68] sm:$0xff]
      %v381 = vld [vmem:[%s356 + $0x70] sm:$0xff]
      %v382 = vld [vmem:[%s356 + $0x78] sm:$0xff]
      %v383 = vld [vmem:[%s1] sm:$0xff]
      %v384 = vadd.f32 %v367, %v383
      %v385 = vadd.f32 %v368, %v383
      %v386 = vadd.f32 %v369, %v383
      %v387 = vadd.f32 %v370, %v383
      %v388 = vadd.f32 %v371, %v383
      %v389 = vadd.f32 %v372, %v383
      %v390 = vadd.f32 %v373, %v383
      %v391 = vadd.f32 %v374, %v383
      %v392 = vadd.f32 %v375, %v383
      %v393 = vadd.f32 %v376, %v383
      %v394 = vadd.f32 %v377, %v383
      %v395 = vadd.f32 %v378, %v383
      %v396 = vadd.f32 %v379, %v383
      %v397 = vadd.f32 %v380, %v383
      %v398 = vadd.f32 %v381, %v383
      %v399 = vadd.f32 %v382, %v383
      %v400 = vld [vmem:[%s2] sm:$0xff]
      %v401 = vld [vmem:[%s2 + $0x8] sm:$0xff]
      %v402 = vld [vmem:[%s2 + $0x10] sm:$0xff]
      %v403 = vld [vmem:[%s2 + $0x18] sm:$0xff]
      %v404 = vlaneseq
      %v405 = vshrl.u32 %v404, 7
      %v406 = vsub.s32 0, %v405
      %v407 = vrot.slane %v365, %v406
      %vm408 = vcmask 261120
      %v410 = vsel %vm408, %v384, 0
      %v413 = vsel %vm408, %v385, 0
      %v416 = vsel %vm408, %v386, 0
      %v419 = vsel %vm408, %v387, 0
      %v422 = vsel %vm408, %v388, 0
      %v425 = vsel %vm408, %v389, 0
      %v428 = vsel %vm408, %v390, 0
      %v431 = vsel %vm408, %v391, 0
      %v434 = vsel %vm408, %v392, 0
      %v437 = vsel %vm408, %v393, 0
      %v440 = vsel %vm408, %v394, 0
      %v443 = vsel %vm408, %v395, 0
      %v446 = vsel %vm408, %v396, 0
      %v449 = vsel %vm408, %v397, 0
      %v452 = vsel %vm408, %v398, 0
      %v455 = vsel %vm408, %v399, 0
      %457 = vmatprep.subr.mxu0 0.0
      %458 = vmatpush1.msra.mxu0 %v400
      %459 = vmatprep.subr.mxu0 0.0
      %460 = vmatpush1.msra.mxu0 %v401
      %461 = vmatprep.subr.mxu0 0.0
      %462 = vmatpush1.msra.mxu0 %v402
      %463 = vmatprep.subr.mxu0 0.0
      %464 = vmatpush1.msra.mxu0 %v403
      %465 = vmatprep.subr.mxu0 0.0
      %466 = vmatpush1.msra.mxu0 0.0
      %467 = vmatprep.subr.mxu0 0.0
      %468 = vmatpush1.msra.mxu0 0.0
      %469 = vmatprep.subr.mxu0 0.0
      %470 = vmatpush1.msra.mxu0 0.0
      %471 = vmatprep.subr.mxu0 0.0
      %472 = vmatpush1.msra.mxu0 0.0
      %473 = vmatprep.subr.mxu0 0.0
      %474 = vmatpush1.msra.mxu0 0.0
      %475 = vmatprep.subr.mxu0 0.0
      %476 = vmatpush1.msra.mxu0 0.0
      %477 = vmatprep.subr.mxu0 0.0
      %478 = vmatpush1.msra.mxu0 0.0
      %479 = vmatprep.subr.mxu0 0.0
      %480 = vmatpush1.msra.mxu0 0.0
      %481 = vmatprep.subr.mxu0 0.0
      %482 = vmatpush1.msra.mxu0 0.0
      %483 = vmatprep.subr.mxu0 0.0
      %484 = vmatpush1.msra.mxu0 0.0
      %485 = vmatprep.subr.mxu0 0.0
      %486 = vmatpush1.msra.mxu0 0.0
      %487 = vmatprep.subr.mxu0 0.0
      %488 = vmatpush1.msra.mxu0 0.0
      %489 = vmatprep.subr.mxu0 0.0
      %490 = vmatpush1.msra.mxu0 0.0
      %491 = vmatprep.subr.mxu0 0.0
      %492 = vmatpush1.msra.mxu0 0.0
      %493 = vmatprep.subr.mxu0 0.0
      %494 = vmatpush1.msra.mxu0 0.0
      %495 = vmatprep.subr.mxu0 0.0
      %496 = vmatpush1.msra.mxu0 0.0
      %497 = vmatprep.subr.mxu0 0.0
      %498 = vmatpush1.msra.mxu0 0.0
      %499 = vmatprep.subr.mxu0 0.0
      %500 = vmatpush1.msra.mxu0 0.0
      %501 = vmatprep.subr.mxu0 0.0
      %502 = vmatpush1.msra.mxu0 0.0
      %503 = vmatprep.subr.mxu0 0.0
      %504 = vmatpush1.msra.mxu0 0.0
      %505 = vmatprep.subr.mxu0 0.0
      %506 = vmatpush1.msra.mxu0 0.0
      %507 = vmatprep.subr.mxu0 0.0
      %508 = vmatpush1.msra.mxu0 0.0
      %509 = vmatprep.subr.mxu0 0.0
      %510 = vmatpush1.msra.mxu0 0.0
      %511 = vmatprep.subr.mxu0 0.0
      %512 = vmatpush1.msra.mxu0 0.0
      %513 = vmatprep.subr.mxu0 0.0
      %514 = vmatpush1.msra.mxu0 0.0
      %515 = vmatprep.subr.mxu0 0.0
      %516 = vmatpush1.msra.mxu0 0.0
      %517 = vmatprep.subr.mxu0 0.0
      %518 = vmatpush1.msra.mxu0 0.0
      %519 = vmatprep.subr.mxu0 0.0
      %520 = vmatpush1.msra.mxu0 0.0
      %521 = vmatprep.mubr.f32.mxu0 0.0
      %522 = vmatmul.mubr.f32.gmra.mrb[0].mxu0 %v410
      %v523 = vpop.f32.mrb[0].mxu0
      %v524 = vadd.f32 %v407, %v523
      %v525 = vpop.f32.mrb[0].mxu0
      %526 = vmatprep.mubr.f32.mxu0 0.0
      %527 = vmatmul.mubr.f32.gmra.mrb[0].mxu0 %v413
      %v528 = vpop.f32.mrb[0].mxu0
      %v529 = vadd.f32 %v407, %v528
      %v530 = vpop.f32.mrb[0].mxu0
      %531 = vmatprep.mubr.f32.mxu0 0.0
      %532 = vmatmul.mubr.f32.gmra.mrb[0].mxu0 %v416
      %v533 = vpop.f32.mrb[0].mxu0
      %v534 = vadd.f32 %v407, %v533
      %v535 = vpop.f32.mrb[0].mxu0
      %536 = vmatprep.mubr.f32.mxu0 0.0
      %537 = vmatmul.mubr.f32.gmra.mrb[0].mxu0 %v419
      %v538 = vpop.f32.mrb[0].mxu0
      %v539 = vadd.f32 %v407, %v538
      %v540 = vpop.f32.mrb[0].mxu0
      %541 = vmatprep.mubr.f32.mxu0 0.0
      %542 = vmatmul.mubr.f32.gmra.mrb[0].mxu0 %v422
      %v543 = vpop.f32.mrb[0].mxu0
      %v544 = vadd.f32 %v407, %v543
      %v545 = vpop.f32.mrb[0].mxu0
      %546 = vmatprep.mubr.f32.mxu0 0.0
      %547 = vmatmul.mubr.f32.gmra.mrb[0].mxu0 %v425
      %v548 = vpop.f32.mrb[0].mxu0
      %v549 = vadd.f32 %v407, %v548
      %v550 = vpop.f32.mrb[0].mxu0
      %551 = vmatprep.mubr.f32.mxu0 0.0
      %552 = vmatmul.mubr.f32.gmra.mrb[0].mxu0 %v428
      %v553 = vpop.f32.mrb[0].mxu0
      %v554 = vadd.f32 %v407, %v553
      %v555 = vpop.f32.mrb[0].mxu0
      %556 = vmatprep.mubr.f32.mxu0 0.0
      %557 = vmatmul.mubr.f32.gmra.mrb[0].mxu0 %v431
      %v558 = vpop.f32.mrb[0].mxu0
      %v559 = vadd.f32 %v407, %v558
      %v560 = vpop.f32.mrb[0].mxu0
      %561 = vmatprep.mubr.f32.mxu0 0.0
      %562 = vmatmul.mubr.f32.gmra.mrb[0].mxu0 %v434
      %v563 = vpop.f32.mrb[0].mxu0
      %v564 = vadd.f32 %v407, %v563
      %v565 = vpop.f32.mrb[0].mxu0
      %566 = vmatprep.mubr.f32.mxu0 0.0
      %567 = vmatmul.mubr.f32.gmra.mrb[0].mxu0 %v437
      %v568 = vpop.f32.mrb[0].mxu0
      %v569 = vadd.f32 %v407, %v568
      %v570 = vpop.f32.mrb[0].mxu0
      %571 = vmatprep.mubr.f32.mxu0 0.0
      %572 = vmatmul.mubr.f32.gmra.mrb[0].mxu0 %v440
      %v573 = vpop.f32.mrb[0].mxu0
      %v574 = vadd.f32 %v407, %v573
      %v575 = vpop.f32.mrb[0].mxu0
      %576 = vmatprep.mubr.f32.mxu0 0.0
      %577 = vmatmul.mubr.f32.gmra.mrb[0].mxu0 %v443
      %v578 = vpop.f32.mrb[0].mxu0
      %v579 = vadd.f32 %v407, %v578
      %v580 = vpop.f32.mrb[0].mxu0
      %581 = vmatprep.mubr.f32.mxu0 0.0
      %582 = vmatmul.mubr.f32.gmra.mrb[0].mxu0 %v446
      %v583 = vpop.f32.mrb[0].mxu0
      %v584 = vadd.f32 %v407, %v583
      %v585 = vpop.f32.mrb[0].mxu0
      %586 = vmatprep.mubr.f32.mxu0 0.0
      %587 = vmatmul.mubr.f32.gmra.mrb[0].mxu0 %v449
      %v588 = vpop.f32.mrb[0].mxu0
      %v589 = vadd.f32 %v407, %v588
      %v590 = vpop.f32.mrb[0].mxu0
      %591 = vmatprep.mubr.f32.mxu0 0.0
      %592 = vmatmul.mubr.f32.gmra.mrb[0].mxu0 %v452
      %v593 = vpop.f32.mrb[0].mxu0
      %v594 = vadd.f32 %v407, %v593
      %v595 = vpop.f32.mrb[0].mxu0
      %596 = vmatprep.mubr.f32.mxu0 0.0
      %597 = vmatmul.mubr.f32.gmra.mrb[0].mxu0 %v455
      %v598 = vpop.f32.mrb[0].mxu0
      %v599 = vadd.f32 %v407, %v598
      %v600 = vpop.f32.mrb[0].mxu0
      %601 = vdwg.mxu0
      %v602 = vld [vmem:[%s3] sm:$0xff]
      %v603 = vld [vmem:[%s3 + $0x8] sm:$0xff]
      %v604 = vld [vmem:[%s3 + $0x10] sm:$0xff]
      %v605 = vld [vmem:[%s3 + $0x18] sm:$0xff]
      %v606 = vlaneseq
      %v607 = vshrl.u32 %v606, 7
      %v608 = vsub.s32 1, %v607
      %v609 = vrot.slane %v365, %v608
      %610 = vmatprep.subr.mxu0 0.0
      %611 = vmatpush1.msra.mxu0 %v602
      %612 = vmatprep.subr.mxu0 0.0
      %613 = vmatpush1.msra.mxu0 %v603
      %614 = vmatprep.subr.mxu0 0.0
      %615 = vmatpush1.msra.mxu0 %v604
      %616 = vmatprep.subr.mxu0 0.0
      %617 = vmatpush1.msra.mxu0 %v605
      %618 = vmatprep.subr.mxu0 0.0
      %619 = vmatpush1.msra.mxu0 0.0
      %620 = vmatprep.subr.mxu0 0.0
      %621 = vmatpush1.msra.mxu0 0.0
      %622 = vmatprep.subr.mxu0 0.0
      %623 = vmatpush1.msra.mxu0 0.0
      %624 = vmatprep.subr.mxu0 0.0
      %625 = vmatpush1.msra.mxu0 0.0
      %626 = vmatprep.subr.mxu0 0.0
      %627 = vmatpush1.msra.mxu0 0.0
      %628 = vmatprep.subr.mxu0 0.0
      %629 = vmatpush1.msra.mxu0 0.0
      %630 = vmatprep.subr.mxu0 0.0
      %631 = vmatpush1.msra.mxu0 0.0
      %632 = vmatprep.subr.mxu0 0.0
      %633 = vmatpush1.msra.mxu0 0.0
      %634 = vmatprep.subr.mxu0 0.0
      %635 = vmatpush1.msra.mxu0 0.0
      %636 = vmatprep.subr.mxu0 0.0
      %637 = vmatpush1.msra.mxu0 0.0
      %638 = vmatprep.subr.mxu0 0.0
      %639 = vmatpush1.msra.mxu0 0.0
      %640 = vmatprep.subr.mxu0 0.0
      %641 = vmatpush1.msra.mxu0 0.0
      %642 = vmatprep.subr.mxu0 0.0
      %643 = vmatpush1.msra.mxu0 0.0
      %644 = vmatprep.subr.mxu0 0.0
      %645 = vmatpush1.msra.mxu0 0.0
      %646 = vmatprep.subr.mxu0 0.0
      %647 = vmatpush1.msra.mxu0 0.0
      %648 = vmatprep.subr.mxu0 0.0
      %649 = vmatpush1.msra.mxu0 0.0
      %650 = vmatprep.subr.mxu0 0.0
      %651 = vmatpush1.msra.mxu0 0.0
      %652 = vmatprep.subr.mxu0 0.0
      %653 = vmatpush1.msra.mxu0 0.0
      %654 = vmatprep.subr.mxu0 0.0
      %655 = vmatpush1.msra.mxu0 0.0
      %656 = vmatprep.subr.mxu0 0.0
      %657 = vmatpush1.msra.mxu0 0.0
      %658 = vmatprep.subr.mxu0 0.0
      %659 = vmatpush1.msra.mxu0 0.0
      %660 = vmatprep.subr.mxu0 0.0
      %661 = vmatpush1.msra.mxu0 0.0
      %662 = vmatprep.subr.mxu0 0.0
      %663 = vmatpush1.msra.mxu0 0.0
      %664 = vmatprep.subr.mxu0 0.0
      %665 = vmatpush1.msra.mxu0 0.0
      %666 = vmatprep.subr.mxu0 0.0
      %667 = vmatpush1.msra.mxu0 0.0
      %668 = vmatprep.subr.mxu0 0.0
      %669 = vmatpush1.msra.mxu0 0.0
      %670 = vmatprep.subr.mxu0 0.0
      %671 = vmatpush1.msra.mxu0 0.0
      %672 = vmatprep.subr.mxu0 0.0
      %673 = vmatpush1.msra.mxu0 0.0
      %674 = vmatprep.mubr.f32.mxu0 0.0
      %675 = vmatmul.mubr.f32.gmra.mrb[0].mxu0 %v410
      %v676 = vpop.f32.mrb[0].mxu0
      %v677 = vadd.f32 %v609, %v676
      %v678 = vpop.f32.mrb[0].mxu0
      %679 = vmatprep.mubr.f32.mxu0 0.0
      %680 = vmatmul.mubr.f32.gmra.mrb[0].mxu0 %v413
      %v681 = vpop.f32.mrb[0].mxu0
      %v682 = vadd.f32 %v609, %v681
      %v683 = vpop.f32.mrb[0].mxu0
      %684 = vmatprep.mubr.f32.mxu0 0.0
      %685 = vmatmul.mubr.f32.gmra.mrb[0].mxu0 %v416
      %v686 = vpop.f32.mrb[0].mxu0
      %v687 = vadd.f32 %v609, %v686
      %v688 = vpop.f32.mrb[0].mxu0
      %689 = vmatprep.mubr.f32.mxu0 0.0
      %690 = vmatmul.mubr.f32.gmra.mrb[0].mxu0 %v419
      %v691 = vpop.f32.mrb[0].mxu0
      %v692 = vadd.f32 %v609, %v691
      %v693 = vpop.f32.mrb[0].mxu0
      %694 = vmatprep.mubr.f32.mxu0 0.0
      %695 = vmatmul.mubr.f32.gmra.mrb[0].mxu0 %v422
      %v696 = vpop.f32.mrb[0].mxu0
      %v697 = vadd.f32 %v609, %v696
      %v698 = vpop.f32.mrb[0].mxu0
      %699 = vmatprep.mubr.f32.mxu0 0.0
      %700 = vmatmul.mubr.f32.gmra.mrb[0].mxu0 %v425
      %v701 = vpop.f32.mrb[0].mxu0
      %v702 = vadd.f32 %v609, %v701
      %v703 = vpop.f32.mrb[0].mxu0
      %704 = vmatprep.mubr.f32.mxu0 0.0
      %705 = vmatmul.mubr.f32.gmra.mrb[0].mxu0 %v428
      %v706 = vpop.f32.mrb[0].mxu0
      %v707 = vadd.f32 %v609, %v706
      %v708 = vpop.f32.mrb[0].mxu0
      %709 = vmatprep.mubr.f32.mxu0 0.0
      %710 = vmatmul.mubr.f32.gmra.mrb[0].mxu0 %v431
      %v711 = vpop.f32.mrb[0].mxu0
      %v712 = vadd.f32 %v609, %v711
      %v713 = vpop.f32.mrb[0].mxu0
      %714 = vmatprep.mubr.f32.mxu0 0.0
      %715 = vmatmul.mubr.f32.gmra.mrb[0].mxu0 %v434
      %v716 = vpop.f32.mrb[0].mxu0
      %v717 = vadd.f32 %v609, %v716
      %v718 = vpop.f32.mrb[0].mxu0
      %719 = vmatprep.mubr.f32.mxu0 0.0
      %720 = vmatmul.mubr.f32.gmra.mrb[0].mxu0 %v437
      %v721 = vpop.f32.mrb[0].mxu0
      %v722 = vadd.f32 %v609, %v721
      %v723 = vpop.f32.mrb[0].mxu0
      %724 = vmatprep.mubr.f32.mxu0 0.0
      %725 = vmatmul.mubr.f32.gmra.mrb[0].mxu0 %v440
      %v726 = vpop.f32.mrb[0].mxu0
      %v727 = vadd.f32 %v609, %v726
      %v728 = vpop.f32.mrb[0].mxu0
      %729 = vmatprep.mubr.f32.mxu0 0.0
      %730 = vmatmul.mubr.f32.gmra.mrb[0].mxu0 %v443
      %v731 = vpop.f32.mrb[0].mxu0
      %v732 = vadd.f32 %v609, %v731
      %v733 = vpop.f32.mrb[0].mxu0
      %734 = vmatprep.mubr.f32.mxu0 0.0
      %735 = vmatmul.mubr.f32.gmra.mrb[0].mxu0 %v446
      %v736 = vpop.f32.mrb[0].mxu0
      %v737 = vadd.f32 %v609, %v736
      %v738 = vpop.f32.mrb[0].mxu0
      %739 = vmatprep.mubr.f32.mxu0 0.0
      %740 = vmatmul.mubr.f32.gmra.mrb[0].mxu0 %v449
      %v741 = vpop.f32.mrb[0].mxu0
      %v742 = vadd.f32 %v609, %v741
      %v743 = vpop.f32.mrb[0].mxu0
      %744 = vmatprep.mubr.f32.mxu0 0.0
      %745 = vmatmul.mubr.f32.gmra.mrb[0].mxu0 %v452
      %v746 = vpop.f32.mrb[0].mxu0
      %v747 = vadd.f32 %v609, %v746
      %v748 = vpop.f32.mrb[0].mxu0
      %749 = vmatprep.mubr.f32.mxu0 0.0
      %750 = vmatmul.mubr.f32.gmra.mrb[0].mxu0 %v455
      %v751 = vpop.f32.mrb[0].mxu0
      %v752 = vadd.f32 %v609, %v751
      %v753 = vpop.f32.mrb[0].mxu0
      %754 = vdwg.mxu0
      %v755 = vld [vmem:[%s4] sm:$0xff]
      %v756 = vld [vmem:[%s4 + $0x8] sm:$0xff]
      %v757 = vld [vmem:[%s4 + $0x10] sm:$0xff]
      %v758 = vld [vmem:[%s4 + $0x18] sm:$0xff]
      %v759 = vlaneseq
      %v760 = vshrl.u32 %v759, 7
      %v761 = vsub.s32 2, %v760
      %v762 = vrot.slane %v365, %v761
      %763 = vmatprep.subr.mxu0 0.0
      %764 = vmatpush1.msra.mxu0 %v755
      %765 = vmatprep.subr.mxu0 0.0
      %766 = vmatpush1.msra.mxu0 %v756
      %767 = vmatprep.subr.mxu0 0.0
      %768 = vmatpush1.msra.mxu0 %v757
      %769 = vmatprep.subr.mxu0 0.0
      %770 = vmatpush1.msra.mxu0 %v758
      %771 = vmatprep.subr.mxu0 0.0
      %772 = vmatpush1.msra.mxu0 0.0
      %773 = vmatprep.subr.mxu0 0.0
      %774 = vmatpush1.msra.mxu0 0.0
      %775 = vmatprep.subr.mxu0 0.0
      %776 = vmatpush1.msra.mxu0 0.0
      %777 = vmatprep.subr.mxu0 0.0
      %778 = vmatpush1.msra.mxu0 0.0
      %779 = vmatprep.subr.mxu0 0.0
      %780 = vmatpush1.msra.mxu0 0.0
      %781 = vmatprep.subr.mxu0 0.0
      %782 = vmatpush1.msra.mxu0 0.0
      %783 = vmatprep.subr.mxu0 0.0
      %784 = vmatpush1.msra.mxu0 0.0
      %785 = vmatprep.subr.mxu0 0.0
      %786 = vmatpush1.msra.mxu0 0.0
      %787 = vmatprep.subr.mxu0 0.0
      %788 = vmatpush1.msra.mxu0 0.0
      %789 = vmatprep.subr.mxu0 0.0
      %790 = vmatpush1.msra.mxu0 0.0
      %791 = vmatprep.subr.mxu0 0.0
      %792 = vmatpush1.msra.mxu0 0.0
      %793 = vmatprep.subr.mxu0 0.0
      %794 = vmatpush1.msra.mxu0 0.0
      %795 = vmatprep.subr.mxu0 0.0
      %796 = vmatpush1.msra.mxu0 0.0
      %797 = vmatprep.subr.mxu0 0.0
      %798 = vmatpush1.msra.mxu0 0.0
      %799 = vmatprep.subr.mxu0 0.0
      %800 = vmatpush1.msra.mxu0 0.0
      %801 = vmatprep.subr.mxu0 0.0
      %802 = vmatpush1.msra.mxu0 0.0
      %803 = vmatprep.subr.mxu0 0.0
      %804 = vmatpush1.msra.mxu0 0.0
      %805 = vmatprep.subr.mxu0 0.0
      %806 = vmatpush1.msra.mxu0 0.0
      %807 = vmatprep.subr.mxu0 0.0
      %808 = vmatpush1.msra.mxu0 0.0
      %809 = vmatprep.subr.mxu0 0.0
      %810 = vmatpush1.msra.mxu0 0.0
      %811 = vmatprep.subr.mxu0 0.0
      %812 = vmatpush1.msra.mxu0 0.0
      %813 = vmatprep.subr.mxu0 0.0
      %814 = vmatpush1.msra.mxu0 0.0
      %815 = vmatprep.subr.mxu0 0.0
      %816 = vmatpush1.msra.mxu0 0.0
      %817 = vmatprep.subr.mxu0 0.0
      %818 = vmatpush1.msra.mxu0 0.0
      %819 = vmatprep.subr.mxu0 0.0
      %820 = vmatpush1.msra.mxu0 0.0
      %821 = vmatprep.subr.mxu0 0.0
      %822 = vmatpush1.msra.mxu0 0.0
      %823 = vmatprep.subr.mxu0 0.0
      %824 = vmatpush1.msra.mxu0 0.0
      %825 = vmatprep.subr.mxu0 0.0
      %826 = vmatpush1.msra.mxu0 0.0
      %827 = vmatprep.mubr.f32.mxu0 0.0
      %828 = vmatmul.mubr.f32.gmra.mrb[0].mxu0 %v410
      %v829 = vpop.f32.mrb[0].mxu0
      %v830 = vadd.f32 %v762, %v829
      %v831 = vpop.f32.mrb[0].mxu0
      %832 = vmatprep.mubr.f32.mxu0 0.0
      %833 = vmatmul.mubr.f32.gmra.mrb[0].mxu0 %v413
      %v834 = vpop.f32.mrb[0].mxu0
      %v835 = vadd.f32 %v762, %v834
      %v836 = vpop.f32.mrb[0].mxu0
      %837 = vmatprep.mubr.f32.mxu0 0.0
      %838 = vmatmul.mubr.f32.gmra.mrb[0].mxu0 %v416
      %v839 = vpop.f32.mrb[0].mxu0
      %v840 = vadd.f32 %v762, %v839
      %v841 = vpop.f32.mrb[0].mxu0
      %842 = vmatprep.mubr.f32.mxu0 0.0
      %843 = vmatmul.mubr.f32.gmra.mrb[0].mxu0 %v419
      %v844 = vpop.f32.mrb[0].mxu0
      %v845 = vadd.f32 %v762, %v844
      %v846 = vpop.f32.mrb[0].mxu0
      %847 = vmatprep.mubr.f32.mxu0 0.0
      %848 = vmatmul.mubr.f32.gmra.mrb[0].mxu0 %v422
      %v849 = vpop.f32.mrb[0].mxu0
      %v850 = vadd.f32 %v762, %v849
      %v851 = vpop.f32.mrb[0].mxu0
      %852 = vmatprep.mubr.f32.mxu0 0.0
      %853 = vmatmul.mubr.f32.gmra.mrb[0].mxu0 %v425
      %v854 = vpop.f32.mrb[0].mxu0
      %v855 = vadd.f32 %v762, %v854
      %v856 = vpop.f32.mrb[0].mxu0
      %857 = vmatprep.mubr.f32.mxu0 0.0
      %858 = vmatmul.mubr.f32.gmra.mrb[0].mxu0 %v428
      %v859 = vpop.f32.mrb[0].mxu0
      %v860 = vadd.f32 %v762, %v859
      %v861 = vpop.f32.mrb[0].mxu0
      %862 = vmatprep.mubr.f32.mxu0 0.0
      %863 = vmatmul.mubr.f32.gmra.mrb[0].mxu0 %v431
      %v864 = vpop.f32.mrb[0].mxu0
      %v865 = vadd.f32 %v762, %v864
      %v866 = vpop.f32.mrb[0].mxu0
      %867 = vmatprep.mubr.f32.mxu0 0.0
      %868 = vmatmul.mubr.f32.gmra.mrb[0].mxu0 %v434
      %v869 = vpop.f32.mrb[0].mxu0
      %v870 = vadd.f32 %v762, %v869
      %v871 = vpop.f32.mrb[0].mxu0
      %872 = vmatprep.mubr.f32.mxu0 0.0
      %873 = vmatmul.mubr.f32.gmra.mrb[0].mxu0 %v437
      %v874 = vpop.f32.mrb[0].mxu0
      %v875 = vadd.f32 %v762, %v874
      %v876 = vpop.f32.mrb[0].mxu0
      %877 = vmatprep.mubr.f32.mxu0 0.0
      %878 = vmatmul.mubr.f32.gmra.mrb[0].mxu0 %v440
      %v879 = vpop.f32.mrb[0].mxu0
      %v880 = vadd.f32 %v762, %v879
      %v881 = vpop.f32.mrb[0].mxu0
      %882 = vmatprep.mubr.f32.mxu0 0.0
      %883 = vmatmul.mubr.f32.gmra.mrb[0].mxu0 %v443
      %v884 = vpop.f32.mrb[0].mxu0
      %v885 = vadd.f32 %v762, %v884
      %v886 = vpop.f32.mrb[0].mxu0
      %887 = vmatprep.mubr.f32.mxu0 0.0
      %888 = vmatmul.mubr.f32.gmra.mrb[0].mxu0 %v446
      %v889 = vpop.f32.mrb[0].mxu0
      %v890 = vadd.f32 %v762, %v889
      %v891 = vpop.f32.mrb[0].mxu0
      %892 = vmatprep.mubr.f32.mxu0 0.0
      %893 = vmatmul.mubr.f32.gmra.mrb[0].mxu0 %v449
      %v894 = vpop.f32.mrb[0].mxu0
      %v895 = vadd.f32 %v762, %v894
      %v896 = vpop.f32.mrb[0].mxu0
      %897 = vmatprep.mubr.f32.mxu0 0.0
      %898 = vmatmul.mubr.f32.gmra.mrb[0].mxu0 %v452
      %v899 = vpop.f32.mrb[0].mxu0
      %v900 = vadd.f32 %v762, %v899
      %v901 = vpop.f32.mrb[0].mxu0
      %902 = vmatprep.mubr.f32.mxu0 0.0
      %903 = vmatmul.mubr.f32.gmra.mrb[0].mxu0 %v455
      %v904 = vpop.f32.mrb[0].mxu0
      %v905 = vadd.f32 %v762, %v904
      %v906 = vpop.f32.mrb[0].mxu0
      %907 = vdwg.mxu0
      %v908 = vlaneseq
      %v909 = vshrl.u32 %v908, 7
      %v910 = vsub.s32 1, %v909
      %v911 = vrot.slane %v366, %v910
      %v912 = vmul.f32 %v677, %v911
      %v913 = vmul.f32 %v682, %v911
      %v914 = vmul.f32 %v687, %v911
      %v915 = vmul.f32 %v692, %v911
      %v916 = vmul.f32 %v697, %v911
      %v917 = vmul.f32 %v702, %v911
      %v918 = vmul.f32 %v707, %v911
      %v919 = vmul.f32 %v712, %v911
      %v920 = vmul.f32 %v717, %v911
      %v921 = vmul.f32 %v722, %v911
      %v922 = vmul.f32 %v727, %v911
      %v923 = vmul.f32 %v732, %v911
      %v924 = vmul.f32 %v737, %v911
      %v925 = vmul.f32 %v742, %v911
      %v926 = vmul.f32 %v747, %v911
      %v927 = vmul.f32 %v752, %v911
      %v928 = vlaneseq
      %v929 = vshrl.u32 %v928, 7
      %v930 = vsub.s32 2, %v929
      %v931 = vrot.slane %v366, %v930
      %v932 = vmul.f32 %v677, %v931
      %v933 = vmul.f32 %v682, %v931
      %v934 = vmul.f32 %v687, %v931
      %v935 = vmul.f32 %v692, %v931
      %v936 = vmul.f32 %v697, %v931
      %v937 = vmul.f32 %v702, %v931
      %v938 = vmul.f32 %v707, %v931
      %v939 = vmul.f32 %v712, %v931
      %v940 = vmul.f32 %v717, %v931
      %v941 = vmul.f32 %v722, %v931
      %v942 = vmul.f32 %v727, %v931
      %v943 = vmul.f32 %v732, %v931
      %v944 = vmul.f32 %v737, %v931
      %v945 = vmul.f32 %v742, %v931
      %v946 = vmul.f32 %v747, %v931
      %v947 = vmul.f32 %v752, %v931
      %v948 = vlaneseq
      %v949 = vshrl.u32 %v948, 7
      %v950 = vsub.s32 3, %v949
      %v951 = vrot.slane %v366, %v950
      %v952 = vmul.f32 %v677, %v951
      %v953 = vmul.f32 %v682, %v951
      %v954 = vmul.f32 %v687, %v951
      %v955 = vmul.f32 %v692, %v951
      %v956 = vmul.f32 %v697, %v951
      %v957 = vmul.f32 %v702, %v951
      %v958 = vmul.f32 %v707, %v951
      %v959 = vmul.f32 %v712, %v951
      %v960 = vmul.f32 %v717, %v951
      %v961 = vmul.f32 %v722, %v951
      %v962 = vmul.f32 %v727, %v951
      %v963 = vmul.f32 %v732, %v951
      %v964 = vmul.f32 %v737, %v951
      %v965 = vmul.f32 %v742, %v951
      %v966 = vmul.f32 %v747, %v951
      %v967 = vmul.f32 %v752, %v951
      %v968 = vlaneseq
      %v969 = vshrl.u32 %v968, 7
      %v970 = vsub.s32 4, %v969
      %v971 = vrot.slane %v366, %v970
      %v972 = vmul.f32 %v677, %v971
      %v973 = vmul.f32 %v682, %v971
      %v974 = vmul.f32 %v687, %v971
      %v975 = vmul.f32 %v692, %v971
      %v976 = vmul.f32 %v697, %v971
      %v977 = vmul.f32 %v702, %v971
      %v978 = vmul.f32 %v707, %v971
      %v979 = vmul.f32 %v712, %v971
      %v980 = vmul.f32 %v717, %v971
      %v981 = vmul.f32 %v722, %v971
      %v982 = vmul.f32 %v727, %v971
      %v983 = vmul.f32 %v732, %v971
      %v984 = vmul.f32 %v737, %v971
      %v985 = vmul.f32 %v742, %v971
      %v986 = vmul.f32 %v747, %v971
      %v987 = vmul.f32 %v752, %v971
      %v988 = vmul.f32 %v830, %v911
      %v989 = vmul.f32 %v835, %v911
      %v990 = vmul.f32 %v840, %v911
      %v991 = vmul.f32 %v845, %v911
      %v992 = vmul.f32 %v850, %v911
      %v993 = vmul.f32 %v855, %v911
      %v994 = vmul.f32 %v860, %v911
      %v995 = vmul.f32 %v865, %v911
      %v996 = vmul.f32 %v870, %v911
      %v997 = vmul.f32 %v875, %v911
      %v998 = vmul.f32 %v880, %v911
      %v999 = vmul.f32 %v885, %v911
      %v1000 = vmul.f32 %v890, %v911
      %v1001 = vmul.f32 %v895, %v911
      %v1002 = vmul.f32 %v900, %v911
      %v1003 = vmul.f32 %v905, %v911
      %v1004 = vmul.f32 %v830, %v931
      %v1005 = vmul.f32 %v835, %v931
      %v1006 = vmul.f32 %v840, %v931
      %v1007 = vmul.f32 %v845, %v931
      %v1008 = vmul.f32 %v850, %v931
      %v1009 = vmul.f32 %v855, %v931
      %v1010 = vmul.f32 %v860, %v931
      %v1011 = vmul.f32 %v865, %v931
      %v1012 = vmul.f32 %v870, %v931
      %v1013 = vmul.f32 %v875, %v931
      %v1014 = vmul.f32 %v880, %v931
      %v1015 = vmul.f32 %v885, %v931
      %v1016 = vmul.f32 %v890, %v931
      %v1017 = vmul.f32 %v895, %v931
      %v1018 = vmul.f32 %v900, %v931
      %v1019 = vmul.f32 %v905, %v931
      %v1020 = vmul.f32 %v830, %v951
      %v1021 = vmul.f32 %v835, %v951
      %v1022 = vmul.f32 %v840, %v951
      %v1023 = vmul.f32 %v845, %v951
      %v1024 = vmul.f32 %v850, %v951
      %v1025 = vmul.f32 %v855, %v951
      %v1026 = vmul.f32 %v860, %v951
      %v1027 = vmul.f32 %v865, %v951
      %v1028 = vmul.f32 %v870, %v951
      %v1029 = vmul.f32 %v875, %v951
      %v1030 = vmul.f32 %v880, %v951
      %v1031 = vmul.f32 %v885, %v951
      %v1032 = vmul.f32 %v890, %v951
      %v1033 = vmul.f32 %v895, %v951
      %v1034 = vmul.f32 %v900, %v951
      %v1035 = vmul.f32 %v905, %v951
      %v1036 = vmul.f32 %v830, %v971
      %v1037 = vmul.f32 %v835, %v971
      %v1038 = vmul.f32 %v840, %v971
      %v1039 = vmul.f32 %v845, %v971
      %v1040 = vmul.f32 %v850, %v971
      %v1041 = vmul.f32 %v855, %v971
      %v1042 = vmul.f32 %v860, %v971
      %v1043 = vmul.f32 %v865, %v971
      %v1044 = vmul.f32 %v870, %v971
      %v1045 = vmul.f32 %v875, %v971
      %v1046 = vmul.f32 %v880, %v971
      %v1047 = vmul.f32 %v885, %v971
      %v1048 = vmul.f32 %v890, %v971
      %v1049 = vmul.f32 %v895, %v971
      %v1050 = vmul.f32 %v900, %v971
      %v1051 = vmul.f32 %v905, %v971
      %v1053 = vsel %vm408, %v524, 0
      %v1056 = vsel %vm408, %v912, 0
      %v1059 = vsel %vm408, %v932, 0
      %v1062 = vsel %vm408, %v952, 0
      %v1065 = vsel %vm408, %v972, 0
      %1067 = vmatprep.subr.mxu0 0.0
      %1068 = vmatpush1.xpose.msra.mxu0 %v1056
      %1069 = vmatprep.subr.mxu0 0.0
      %1070 = vmatpush1.xpose.msra.mxu0 %v1059
      %1071 = vmatprep.subr.mxu0 0.0
      %1072 = vmatpush1.xpose.msra.mxu0 %v1062
      %1073 = vmatprep.subr.mxu0 0.0
      %1074 = vmatpush1.xpose.msra.mxu0 %v1065
      %1075 = vmatprep.subr.mxu0 0.0
      %1076 = vmatpush1.xpose.msra.mxu0 0.0
      %1077 = vmatprep.subr.mxu0 0.0
      %1078 = vmatpush1.xpose.msra.mxu0 0.0
      %1079 = vmatprep.subr.mxu0 0.0
      %1080 = vmatpush1.xpose.msra.mxu0 0.0
      %1081 = vmatprep.subr.mxu0 0.0
      %1082 = vmatpush1.xpose.msra.mxu0 0.0
      %1083 = vmatprep.subr.mxu0 0.0
      %1084 = vmatpush1.xpose.msra.mxu0 0.0
      %1085 = vmatprep.subr.mxu0 0.0
      %1086 = vmatpush1.xpose.msra.mxu0 0.0
      %1087 = vmatprep.subr.mxu0 0.0
      %1088 = vmatpush1.xpose.msra.mxu0 0.0
      %1089 = vmatprep.subr.mxu0 0.0
      %1090 = vmatpush1.xpose.msra.mxu0 0.0
      %1091 = vmatprep.subr.mxu0 0.0
      %1092 = vmatpush1.xpose.msra.mxu0 0.0
      %1093 = vmatprep.subr.mxu0 0.0
      %1094 = vmatpush1.xpose.msra.mxu0 0.0
      %1095 = vmatprep.subr.mxu0 0.0
      %1096 = vmatpush1.xpose.msra.mxu0 0.0
      %1097 = vmatprep.subr.mxu0 0.0
      %1098 = vmatpush1.xpose.msra.mxu0 0.0
      %1099 = vmatprep.subr.mxu0 0.0
      %1100 = vmatpush1.xpose.msra.mxu0 0.0
      %1101 = vmatprep.subr.mxu0 0.0
      %1102 = vmatpush1.xpose.msra.mxu0 0.0
      %1103 = vmatprep.subr.mxu0 0.0
      %1104 = vmatpush1.xpose.msra.mxu0 0.0
      %1105 = vmatprep.subr.mxu0 0.0
      %1106 = vmatpush1.xpose.msra.mxu0 0.0
      %1107 = vmatprep.subr.mxu0 0.0
      %1108 = vmatpush1.xpose.msra.mxu0 0.0
      %1109 = vmatprep.subr.mxu0 0.0
      %1110 = vmatpush1.xpose.msra.mxu0 0.0
      %1111 = vmatprep.subr.mxu0 0.0
      %1112 = vmatpush1.xpose.msra.mxu0 0.0
      %1113 = vmatprep.subr.mxu0 0.0
      %1114 = vmatpush1.xpose.msra.mxu0 0.0
      %1115 = vmatprep.subr.mxu0 0.0
      %1116 = vmatpush1.xpose.msra.mxu0 0.0
      %1117 = vmatprep.subr.mxu0 0.0
      %1118 = vmatpush1.xpose.msra.mxu0 0.0
      %1119 = vmatprep.subr.mxu0 0.0
      %1120 = vmatpush1.xpose.msra.mxu0 0.0
      %1121 = vmatprep.subr.mxu0 0.0
      %1122 = vmatpush1.xpose.msra.mxu0 0.0
      %1123 = vmatprep.subr.mxu0 0.0
      %1124 = vmatpush1.xpose.msra.mxu0 0.0
      %1125 = vmatprep.subr.mxu0 0.0
      %1126 = vmatpush1.xpose.msra.mxu0 0.0
      %1127 = vmatprep.subr.mxu0 0.0
      %1128 = vmatpush1.xpose.msra.mxu0 0.0
      %1129 = vmatprep.subr.mxu0 0.0
      %1130 = vmatpush1.xpose.msra.mxu0 0.0
      %1131 = vmatprep.mubr.f32.mxu0 0.0
      %1132 = vmatmul.mubr.f32.gmra.mrb[0].mxu0 %v1053
      %v1133 = vpop.f32.mrb[0].mxu0
      %v1134 = vadd.f32 0.0, %v1133
      %v1135 = vpop.f32.mrb[0].mxu0
      %1136 = vdwg.mxu0
      %v1138 = vsel %vm408, %v529, 0
      %v1141 = vsel %vm408, %v913, 0
      %v1144 = vsel %vm408, %v933, 0
      %v1147 = vsel %vm408, %v953, 0
      %v1150 = vsel %vm408, %v973, 0
      %1152 = vmatprep.subr.mxu0 0.0
      %1153 = vmatpush1.xpose.msra.mxu0 %v1141
      %1154 = vmatprep.subr.mxu0 0.0
      %1155 = vmatpush1.xpose.msra.mxu0 %v1144
      %1156 = vmatprep.subr.mxu0 0.0
      %1157 = vmatpush1.xpose.msra.mxu0 %v1147
      %1158 = vmatprep.subr.mxu0 0.0
      %1159 = vmatpush1.xpose.msra.mxu0 %v1150
      %1160 = vmatprep.subr.mxu0 0.0
      %1161 = vmatpush1.xpose.msra.mxu0 0.0
      %1162 = vmatprep.subr.mxu0 0.0
      %1163 = vmatpush1.xpose.msra.mxu0 0.0
      %1164 = vmatprep.subr.mxu0 0.0
      %1165 = vmatpush1.xpose.msra.mxu0 0.0
      %1166 = vmatprep.subr.mxu0 0.0
      %1167 = vmatpush1.xpose.msra.mxu0 0.0
      %1168 = vmatprep.subr.mxu0 0.0
      %1169 = vmatpush1.xpose.msra.mxu0 0.0
      %1170 = vmatprep.subr.mxu0 0.0
      %1171 = vmatpush1.xpose.msra.mxu0 0.0
      %1172 = vmatprep.subr.mxu0 0.0
      %1173 = vmatpush1.xpose.msra.mxu0 0.0
      %1174 = vmatprep.subr.mxu0 0.0
      %1175 = vmatpush1.xpose.msra.mxu0 0.0
      %1176 = vmatprep.subr.mxu0 0.0
      %1177 = vmatpush1.xpose.msra.mxu0 0.0
      %1178 = vmatprep.subr.mxu0 0.0
      %1179 = vmatpush1.xpose.msra.mxu0 0.0
      %1180 = vmatprep.subr.mxu0 0.0
      %1181 = vmatpush1.xpose.msra.mxu0 0.0
      %1182 = vmatprep.subr.mxu0 0.0
      %1183 = vmatpush1.xpose.msra.mxu0 0.0
      %1184 = vmatprep.subr.mxu0 0.0
      %1185 = vmatpush1.xpose.msra.mxu0 0.0
      %1186 = vmatprep.subr.mxu0 0.0
      %1187 = vmatpush1.xpose.msra.mxu0 0.0
      %1188 = vmatprep.subr.mxu0 0.0
      %1189 = vmatpush1.xpose.msra.mxu0 0.0
      %1190 = vmatprep.subr.mxu0 0.0
      %1191 = vmatpush1.xpose.msra.mxu0 0.0
      %1192 = vmatprep.subr.mxu0 0.0
      %1193 = vmatpush1.xpose.msra.mxu0 0.0
      %1194 = vmatprep.subr.mxu0 0.0
      %1195 = vmatpush1.xpose.msra.mxu0 0.0
      %1196 = vmatprep.subr.mxu0 0.0
      %1197 = vmatpush1.xpose.msra.mxu0 0.0
      %1198 = vmatprep.subr.mxu0 0.0
      %1199 = vmatpush1.xpose.msra.mxu0 0.0
      %1200 = vmatprep.subr.mxu0 0.0
      %1201 = vmatpush1.xpose.msra.mxu0 0.0
      %1202 = vmatprep.subr.mxu0 0.0
      %1203 = vmatpush1.xpose.msra.mxu0 0.0
      %1204 = vmatprep.subr.mxu0 0.0
      %1205 = vmatpush1.xpose.msra.mxu0 0.0
      %1206 = vmatprep.subr.mxu0 0.0
      %1207 = vmatpush1.xpose.msra.mxu0 0.0
      %1208 = vmatprep.subr.mxu0 0.0
      %1209 = vmatpush1.xpose.msra.mxu0 0.0
      %1210 = vmatprep.subr.mxu0 0.0
      %1211 = vmatpush1.xpose.msra.mxu0 0.0
      %1212 = vmatprep.subr.mxu0 0.0
      %1213 = vmatpush1.xpose.msra.mxu0 0.0
      %1214 = vmatprep.subr.mxu0 0.0
      %1215 = vmatpush1.xpose.msra.mxu0 0.0
      %1216 = vmatprep.mubr.f32.mxu0 0.0
      %1217 = vmatmul.mubr.f32.gmra.mrb[0].mxu0 %v1138
      %v1218 = vpop.f32.mrb[0].mxu0
      %v1219 = vadd.f32 0.0, %v1218
      %v1220 = vpop.f32.mrb[0].mxu0
      %1221 = vdwg.mxu0
      %v1223 = vsel %vm408, %v534, 0
      %v1226 = vsel %vm408, %v914, 0
      %v1229 = vsel %vm408, %v934, 0
      %v1232 = vsel %vm408, %v954, 0
      %v1235 = vsel %vm408, %v974, 0
      %1237 = vmatprep.subr.mxu0 0.0
      %1238 = vmatpush1.xpose.msra.mxu0 %v1226
      %1239 = vmatprep.subr.mxu0 0.0
      %1240 = vmatpush1.xpose.msra.mxu0 %v1229
      %1241 = vmatprep.subr.mxu0 0.0
      %1242 = vmatpush1.xpose.msra.mxu0 %v1232
      %1243 = vmatprep.subr.mxu0 0.0
      %1244 = vmatpush1.xpose.msra.mxu0 %v1235
      %1245 = vmatprep.subr.mxu0 0.0
      %1246 = vmatpush1.xpose.msra.mxu0 0.0
      %1247 = vmatprep.subr.mxu0 0.0
      %1248 = vmatpush1.xpose.msra.mxu0 0.0
      %1249 = vmatprep.subr.mxu0 0.0
      %1250 = vmatpush1.xpose.msra.mxu0 0.0
      %1251 = vmatprep.subr.mxu0 0.0
      %1252 = vmatpush1.xpose.msra.mxu0 0.0
      %1253 = vmatprep.subr.mxu0 0.0
      %1254 = vmatpush1.xpose.msra.mxu0 0.0
      %1255 = vmatprep.subr.mxu0 0.0
      %1256 = vmatpush1.xpose.msra.mxu0 0.0
      %1257 = vmatprep.subr.mxu0 0.0
      %1258 = vmatpush1.xpose.msra.mxu0 0.0
      %1259 = vmatprep.subr.mxu0 0.0
      %1260 = vmatpush1.xpose.msra.mxu0 0.0
      %1261 = vmatprep.subr.mxu0 0.0
      %1262 = vmatpush1.xpose.msra.mxu0 0.0
      %1263 = vmatprep.subr.mxu0 0.0
      %1264 = vmatpush1.xpose.msra.mxu0 0.0
      %1265 = vmatprep.subr.mxu0 0.0
      %1266 = vmatpush1.xpose.msra.mxu0 0.0
      %1267 = vmatprep.subr.mxu0 0.0
      %1268 = vmatpush1.xpose.msra.mxu0 0.0
      %1269 = vmatprep.subr.mxu0 0.0
      %1270 = vmatpush1.xpose.msra.mxu0 0.0
      %1271 = vmatprep.subr.mxu0 0.0
      %1272 = vmatpush1.xpose.msra.mxu0 0.0
      %1273 = vmatprep.subr.mxu0 0.0
      %1274 = vmatpush1.xpose.msra.mxu0 0.0
      %1275 = vmatprep.subr.mxu0 0.0
      %1276 = vmatpush1.xpose.msra.mxu0 0.0
      %1277 = vmatprep.subr.mxu0 0.0
      %1278 = vmatpush1.xpose.msra.mxu0 0.0
      %1279 = vmatprep.subr.mxu0 0.0
      %1280 = vmatpush1.xpose.msra.mxu0 0.0
      %1281 = vmatprep.subr.mxu0 0.0
      %1282 = vmatpush1.xpose.msra.mxu0 0.0
      %1283 = vmatprep.subr.mxu0 0.0
      %1284 = vmatpush1.xpose.msra.mxu0 0.0
      %1285 = vmatprep.subr.mxu0 0.0
      %1286 = vmatpush1.xpose.msra.mxu0 0.0
      %1287 = vmatprep.subr.mxu0 0.0
      %1288 = vmatpush1.xpose.msra.mxu0 0.0
      %1289 = vmatprep.subr.mxu0 0.0
      %1290 = vmatpush1.xpose.msra.mxu0 0.0
      %1291 = vmatprep.subr.mxu0 0.0
      %1292 = vmatpush1.xpose.msra.mxu0 0.0
      %1293 = vmatprep.subr.mxu0 0.0
      %1294 = vmatpush1.xpose.msra.mxu0 0.0
      %1295 = vmatprep.subr.mxu0 0.0
      %1296 = vmatpush1.xpose.msra.mxu0 0.0
      %1297 = vmatprep.subr.mxu0 0.0
      %1298 = vmatpush1.xpose.msra.mxu0 0.0
      %1299 = vmatprep.subr.mxu0 0.0
      %1300 = vmatpush1.xpose.msra.mxu0 0.0
      %1301 = vmatprep.mubr.f32.mxu0 0.0
      %1302 = vmatmul.mubr.f32.gmra.mrb[0].mxu0 %v1223
      %v1303 = vpop.f32.mrb[0].mxu0
      %v1304 = vadd.f32 0.0, %v1303
      %v1305 = vpop.f32.mrb[0].mxu0
      %1306 = vdwg.mxu0
      %v1308 = vsel %vm408, %v539, 0
      %v1311 = vsel %vm408, %v915, 0
      %v1314 = vsel %vm408, %v935, 0
      %v1317 = vsel %vm408, %v955, 0
      %v1320 = vsel %vm408, %v975, 0
      %1322 = vmatprep.subr.mxu0 0.0
      %1323 = vmatpush1.xpose.msra.mxu0 %v1311
      %1324 = vmatprep.subr.mxu0 0.0
      %1325 = vmatpush1.xpose.msra.mxu0 %v1314
      %1326 = vmatprep.subr.mxu0 0.0
      %1327 = vmatpush1.xpose.msra.mxu0 %v1317
      %1328 = vmatprep.subr.mxu0 0.0
      %1329 = vmatpush1.xpose.msra.mxu0 %v1320
      %1330 = vmatprep.subr.mxu0 0.0
      %1331 = vmatpush1.xpose.msra.mxu0 0.0
      %1332 = vmatprep.subr.mxu0 0.0
      %1333 = vmatpush1.xpose.msra.mxu0 0.0
      %1334 = vmatprep.subr.mxu0 0.0
      %1335 = vmatpush1.xpose.msra.mxu0 0.0
      %1336 = vmatprep.subr.mxu0 0.0
      %1337 = vmatpush1.xpose.msra.mxu0 0.0
      %1338 = vmatprep.subr.mxu0 0.0
      %1339 = vmatpush1.xpose.msra.mxu0 0.0
      %1340 = vmatprep.subr.mxu0 0.0
      %1341 = vmatpush1.xpose.msra.mxu0 0.0
      %1342 = vmatprep.subr.mxu0 0.0
      %1343 = vmatpush1.xpose.msra.mxu0 0.0
      %1344 = vmatprep.subr.mxu0 0.0
      %1345 = vmatpush1.xpose.msra.mxu0 0.0
      %1346 = vmatprep.subr.mxu0 0.0
      %1347 = vmatpush1.xpose.msra.mxu0 0.0
      %1348 = vmatprep.subr.mxu0 0.0
      %1349 = vmatpush1.xpose.msra.mxu0 0.0
      %1350 = vmatprep.subr.mxu0 0.0
      %1351 = vmatpush1.xpose.msra.mxu0 0.0
      %1352 = vmatprep.subr.mxu0 0.0
      %1353 = vmatpush1.xpose.msra.mxu0 0.0
      %1354 = vmatprep.subr.mxu0 0.0
      %1355 = vmatpush1.xpose.msra.mxu0 0.0
      %1356 = vmatprep.subr.mxu0 0.0
      %1357 = vmatpush1.xpose.msra.mxu0 0.0
      %1358 = vmatprep.subr.mxu0 0.0
      %1359 = vmatpush1.xpose.msra.mxu0 0.0
      %1360 = vmatprep.subr.mxu0 0.0
      %1361 = vmatpush1.xpose.msra.mxu0 0.0
      %1362 = vmatprep.subr.mxu0 0.0
      %1363 = vmatpush1.xpose.msra.mxu0 0.0
      %1364 = vmatprep.subr.mxu0 0.0
      %1365 = vmatpush1.xpose.msra.mxu0 0.0
      %1366 = vmatprep.subr.mxu0 0.0
      %1367 = vmatpush1.xpose.msra.mxu0 0.0
      %1368 = vmatprep.subr.mxu0 0.0
      %1369 = vmatpush1.xpose.msra.mxu0 0.0
      %1370 = vmatprep.subr.mxu0 0.0
      %1371 = vmatpush1.xpose.msra.mxu0 0.0
      %1372 = vmatprep.subr.mxu0 0.0
      %1373 = vmatpush1.xpose.msra.mxu0 0.0
      %1374 = vmatprep.subr.mxu0 0.0
      %1375 = vmatpush1.xpose.msra.mxu0 0.0
      %1376 = vmatprep.subr.mxu0 0.0
      %1377 = vmatpush1.xpose.msra.mxu0 0.0
      %1378 = vmatprep.subr.mxu0 0.0
      %1379 = vmatpush1.xpose.msra.mxu0 0.0
      %1380 = vmatprep.subr.mxu0 0.0
      %1381 = vmatpush1.xpose.msra.mxu0 0.0
      %1382 = vmatprep.subr.mxu0 0.0
      %1383 = vmatpush1.xpose.msra.mxu0 0.0
      %1384 = vmatprep.subr.mxu0 0.0
      %1385 = vmatpush1.xpose.msra.mxu0 0.0
      %1386 = vmatprep.mubr.f32.mxu0 0.0
      %1387 = vmatmul.mubr.f32.gmra.mrb[0].mxu0 %v1308
      %v1388 = vpop.f32.mrb[0].mxu0
      %v1389 = vadd.f32 0.0, %v1388
      %v1390 = vpop.f32.mrb[0].mxu0
      %1391 = vdwg.mxu0
      %v1393 = vsel %vm408, %v544, 0
      %v1396 = vsel %vm408, %v916, 0
      %v1399 = vsel %vm408, %v936, 0
      %v1402 = vsel %vm408, %v956, 0
      %v1405 = vsel %vm408, %v976, 0
      %1407 = vmatprep.subr.mxu0 0.0
      %1408 = vmatpush1.xpose.msra.mxu0 %v1396
      %1409 = vmatprep.subr.mxu0 0.0
      %1410 = vmatpush1.xpose.msra.mxu0 %v1399
      %1411 = vmatprep.subr.mxu0 0.0
      %1412 = vmatpush1.xpose.msra.mxu0 %v1402
      %1413 = vmatprep.subr.mxu0 0.0
      %1414 = vmatpush1.xpose.msra.mxu0 %v1405
      %1415 = vmatprep.subr.mxu0 0.0
      %1416 = vmatpush1.xpose.msra.mxu0 0.0
      %1417 = vmatprep.subr.mxu0 0.0
      %1418 = vmatpush1.xpose.msra.mxu0 0.0
      %1419 = vmatprep.subr.mxu0 0.0
      %1420 = vmatpush1.xpose.msra.mxu0 0.0
      %1421 = vmatprep.subr.mxu0 0.0
      %1422 = vmatpush1.xpose.msra.mxu0 0.0
      %1423 = vmatprep.subr.mxu0 0.0
      %1424 = vmatpush1.xpose.msra.mxu0 0.0
      %1425 = vmatprep.subr.mxu0 0.0
      %1426 = vmatpush1.xpose.msra.mxu0 0.0
      %1427 = vmatprep.subr.mxu0 0.0
      %1428 = vmatpush1.xpose.msra.mxu0 0.0
      %1429 = vmatprep.subr.mxu0 0.0
      %1430 = vmatpush1.xpose.msra.mxu0 0.0
      %1431 = vmatprep.subr.mxu0 0.0
      %1432 = vmatpush1.xpose.msra.mxu0 0.0
      %1433 = vmatprep.subr.mxu0 0.0
      %1434 = vmatpush1.xpose.msra.mxu0 0.0
      %1435 = vmatprep.subr.mxu0 0.0
      %1436 = vmatpush1.xpose.msra.mxu0 0.0
      %1437 = vmatprep.subr.mxu0 0.0
      %1438 = vmatpush1.xpose.msra.mxu0 0.0
      %1439 = vmatprep.subr.mxu0 0.0
      %1440 = vmatpush1.xpose.msra.mxu0 0.0
      %1441 = vmatprep.subr.mxu0 0.0
      %1442 = vmatpush1.xpose.msra.mxu0 0.0
      %1443 = vmatprep.subr.mxu0 0.0
      %1444 = vmatpush1.xpose.msra.mxu0 0.0
      %1445 = vmatprep.subr.mxu0 0.0
      %1446 = vmatpush1.xpose.msra.mxu0 0.0
      %1447 = vmatprep.subr.mxu0 0.0
      %1448 = vmatpush1.xpose.msra.mxu0 0.0
      %1449 = vmatprep.subr.mxu0 0.0
      %1450 = vmatpush1.xpose.msra.mxu0 0.0
      %1451 = vmatprep.subr.mxu0 0.0
      %1452 = vmatpush1.xpose.msra.mxu0 0.0
      %1453 = vmatprep.subr.mxu0 0.0
      %1454 = vmatpush1.xpose.msra.mxu0 0.0
      %1455 = vmatprep.subr.mxu0 0.0
      %1456 = vmatpush1.xpose.msra.mxu0 0.0
      %1457 = vmatprep.subr.mxu0 0.0
      %1458 = vmatpush1.xpose.msra.mxu0 0.0
      %1459 = vmatprep.subr.mxu0 0.0
      %1460 = vmatpush1.xpose.msra.mxu0 0.0
      %1461 = vmatprep.subr.mxu0 0.0
      %1462 = vmatpush1.xpose.msra.mxu0 0.0
      %1463 = vmatprep.subr.mxu0 0.0
      %1464 = vmatpush1.xpose.msra.mxu0 0.0
      %1465 = vmatprep.subr.mxu0 0.0
      %1466 = vmatpush1.xpose.msra.mxu0 0.0
      %1467 = vmatprep.subr.mxu0 0.0
      %1468 = vmatpush1.xpose.msra.mxu0 0.0
      %1469 = vmatprep.subr.mxu0 0.0
      %1470 = vmatpush1.xpose.msra.mxu0 0.0
      %1471 = vmatprep.mubr.f32.mxu0 0.0
      %1472 = vmatmul.mubr.f32.gmra.mrb[0].mxu0 %v1393
      %v1473 = vpop.f32.mrb[0].mxu0
      %v1474 = vadd.f32 0.0, %v1473
      %v1475 = vpop.f32.mrb[0].mxu0
      %1476 = vdwg.mxu0
      %v1478 = vsel %vm408, %v549, 0
      %v1481 = vsel %vm408, %v917, 0
      %v1484 = vsel %vm408, %v937, 0
      %v1487 = vsel %vm408, %v957, 0
      %v1490 = vsel %vm408, %v977, 0
      %1492 = vmatprep.subr.mxu0 0.0
      %1493 = vmatpush1.xpose.msra.mxu0 %v1481
      %1494 = vmatprep.subr.mxu0 0.0
      %1495 = vmatpush1.xpose.msra.mxu0 %v1484
      %1496 = vmatprep.subr.mxu0 0.0
      %1497 = vmatpush1.xpose.msra.mxu0 %v1487
      %1498 = vmatprep.subr.mxu0 0.0
      %1499 = vmatpush1.xpose.msra.mxu0 %v1490
      %1500 = vmatprep.subr.mxu0 0.0
      %1501 = vmatpush1.xpose.msra.mxu0 0.0
      %1502 = vmatprep.subr.mxu0 0.0
      %1503 = vmatpush1.xpose.msra.mxu0 0.0
      %1504 = vmatprep.subr.mxu0 0.0
      %1505 = vmatpush1.xpose.msra.mxu0 0.0
      %1506 = vmatprep.subr.mxu0 0.0
      %1507 = vmatpush1.xpose.msra.mxu0 0.0
      %1508 = vmatprep.subr.mxu0 0.0
      %1509 = vmatpush1.xpose.msra.mxu0 0.0
      %1510 = vmatprep.subr.mxu0 0.0
      %1511 = vmatpush1.xpose.msra.mxu0 0.0
      %1512 = vmatprep.subr.mxu0 0.0
      %1513 = vmatpush1.xpose.msra.mxu0 0.0
      %1514 = vmatprep.subr.mxu0 0.0
      %1515 = vmatpush1.xpose.msra.mxu0 0.0
      %1516 = vmatprep.subr.mxu0 0.0
      %1517 = vmatpush1.xpose.msra.mxu0 0.0
      %1518 = vmatprep.subr.mxu0 0.0
      %1519 = vmatpush1.xpose.msra.mxu0 0.0
      %1520 = vmatprep.subr.mxu0 0.0
      %1521 = vmatpush1.xpose.msra.mxu0 0.0
      %1522 = vmatprep.subr.mxu0 0.0
      %1523 = vmatpush1.xpose.msra.mxu0 0.0
      %1524 = vmatprep.subr.mxu0 0.0
      %1525 = vmatpush1.xpose.msra.mxu0 0.0
      %1526 = vmatprep.subr.mxu0 0.0
      %1527 = vmatpush1.xpose.msra.mxu0 0.0
      %1528 = vmatprep.subr.mxu0 0.0
      %1529 = vmatpush1.xpose.msra.mxu0 0.0
      %1530 = vmatprep.subr.mxu0 0.0
      %1531 = vmatpush1.xpose.msra.mxu0 0.0
      %1532 = vmatprep.subr.mxu0 0.0
      %1533 = vmatpush1.xpose.msra.mxu0 0.0
      %1534 = vmatprep.subr.mxu0 0.0
      %1535 = vmatpush1.xpose.msra.mxu0 0.0
      %1536 = vmatprep.subr.mxu0 0.0
      %1537 = vmatpush1.xpose.msra.mxu0 0.0
      %1538 = vmatprep.subr.mxu0 0.0
      %1539 = vmatpush1.xpose.msra.mxu0 0.0
      %1540 = vmatprep.subr.mxu0 0.0
      %1541 = vmatpush1.xpose.msra.mxu0 0.0
      %1542 = vmatprep.subr.mxu0 0.0
      %1543 = vmatpush1.xpose.msra.mxu0 0.0
      %1544 = vmatprep.subr.mxu0 0.0
      %1545 = vmatpush1.xpose.msra.mxu0 0.0
      %1546 = vmatprep.subr.mxu0 0.0
      %1547 = vmatpush1.xpose.msra.mxu0 0.0
      %1548 = vmatprep.subr.mxu0 0.0
      %1549 = vmatpush1.xpose.msra.mxu0 0.0
      %1550 = vmatprep.subr.mxu0 0.0
      %1551 = vmatpush1.xpose.msra.mxu0 0.0
      %1552 = vmatprep.subr.mxu0 0.0
      %1553 = vmatpush1.xpose.msra.mxu0 0.0
      %1554 = vmatprep.subr.mxu0 0.0
      %1555 = vmatpush1.xpose.msra.mxu0 0.0
      %1556 = vmatprep.mubr.f32.mxu0 0.0
      %1557 = vmatmul.mubr.f32.gmra.mrb[0].mxu0 %v1478
      %v1558 = vpop.f32.mrb[0].mxu0
      %v1559 = vadd.f32 0.0, %v1558
      %v1560 = vpop.f32.mrb[0].mxu0
      %1561 = vdwg.mxu0
      %v1563 = vsel %vm408, %v554, 0
      %v1566 = vsel %vm408, %v918, 0
      %v1569 = vsel %vm408, %v938, 0
      %v1572 = vsel %vm408, %v958, 0
      %v1575 = vsel %vm408, %v978, 0
      %1577 = vmatprep.subr.mxu0 0.0
      %1578 = vmatpush1.xpose.msra.mxu0 %v1566
      %1579 = vmatprep.subr.mxu0 0.0
      %1580 = vmatpush1.xpose.msra.mxu0 %v1569
      %1581 = vmatprep.subr.mxu0 0.0
      %1582 = vmatpush1.xpose.msra.mxu0 %v1572
      %1583 = vmatprep.subr.mxu0 0.0
      %1584 = vmatpush1.xpose.msra.mxu0 %v1575
      %1585 = vmatprep.subr.mxu0 0.0
      %1586 = vmatpush1.xpose.msra.mxu0 0.0
      %1587 = vmatprep.subr.mxu0 0.0
      %1588 = vmatpush1.xpose.msra.mxu0 0.0
      %1589 = vmatprep.subr.mxu0 0.0
      %1590 = vmatpush1.xpose.msra.mxu0 0.0
      %1591 = vmatprep.subr.mxu0 0.0
      %1592 = vmatpush1.xpose.msra.mxu0 0.0
      %1593 = vmatprep.subr.mxu0 0.0
      %1594 = vmatpush1.xpose.msra.mxu0 0.0
      %1595 = vmatprep.subr.mxu0 0.0
      %1596 = vmatpush1.xpose.msra.mxu0 0.0
      %1597 = vmatprep.subr.mxu0 0.0
      %1598 = vmatpush1.xpose.msra.mxu0 0.0
      %1599 = vmatprep.subr.mxu0 0.0
      %1600 = vmatpush1.xpose.msra.mxu0 0.0
      %1601 = vmatprep.subr.mxu0 0.0
      %1602 = vmatpush1.xpose.msra.mxu0 0.0
      %1603 = vmatprep.subr.mxu0 0.0
      %1604 = vmatpush1.xpose.msra.mxu0 0.0
      %1605 = vmatprep.subr.mxu0 0.0
      %1606 = vmatpush1.xpose.msra.mxu0 0.0
      %1607 = vmatprep.subr.mxu0 0.0
      %1608 = vmatpush1.xpose.msra.mxu0 0.0
      %1609 = vmatprep.subr.mxu0 0.0
      %1610 = vmatpush1.xpose.msra.mxu0 0.0
      %1611 = vmatprep.subr.mxu0 0.0
      %1612 = vmatpush1.xpose.msra.mxu0 0.0
      %1613 = vmatprep.subr.mxu0 0.0
      %1614 = vmatpush1.xpose.msra.mxu0 0.0
      %1615 = vmatprep.subr.mxu0 0.0
      %1616 = vmatpush1.xpose.msra.mxu0 0.0
      %1617 = vmatprep.subr.mxu0 0.0
      %1618 = vmatpush1.xpose.msra.mxu0 0.0
      %1619 = vmatprep.subr.mxu0 0.0
      %1620 = vmatpush1.xpose.msra.mxu0 0.0
      %1621 = vmatprep.subr.mxu0 0.0
      %1622 = vmatpush1.xpose.msra.mxu0 0.0
      %1623 = vmatprep.subr.mxu0 0.0
      %1624 = vmatpush1.xpose.msra.mxu0 0.0
      %1625 = vmatprep.subr.mxu0 0.0
      %1626 = vmatpush1.xpose.msra.mxu0 0.0
      %1627 = vmatprep.subr.mxu0 0.0
      %1628 = vmatpush1.xpose.msra.mxu0 0.0
      %1629 = vmatprep.subr.mxu0 0.0
      %1630 = vmatpush1.xpose.msra.mxu0 0.0
      %1631 = vmatprep.subr.mxu0 0.0
      %1632 = vmatpush1.xpose.msra.mxu0 0.0
      %1633 = vmatprep.subr.mxu0 0.0
      %1634 = vmatpush1.xpose.msra.mxu0 0.0
      %1635 = vmatprep.subr.mxu0 0.0
      %1636 = vmatpush1.xpose.msra.mxu0 0.0
      %1637 = vmatprep.subr.mxu0 0.0
      %1638 = vmatpush1.xpose.msra.mxu0 0.0
      %1639 = vmatprep.subr.mxu0 0.0
      %1640 = vmatpush1.xpose.msra.mxu0 0.0
      %1641 = vmatprep.mubr.f32.mxu0 0.0
      %1642 = vmatmul.mubr.f32.gmra.mrb[0].mxu0 %v1563
      %v1643 = vpop.f32.mrb[0].mxu0
      %v1644 = vadd.f32 0.0, %v1643
      %v1645 = vpop.f32.mrb[0].mxu0
      %1646 = vdwg.mxu0
      %v1648 = vsel %vm408, %v559, 0
      %v1651 = vsel %vm408, %v919, 0
      %v1654 = vsel %vm408, %v939, 0
      %v1657 = vsel %vm408, %v959, 0
      %v1660 = vsel %vm408, %v979, 0
      %1662 = vmatprep.subr.mxu0 0.0
      %1663 = vmatpush1.xpose.msra.mxu0 %v1651
      %1664 = vmatprep.subr.mxu0 0.0
      %1665 = vmatpush1.xpose.msra.mxu0 %v1654
      %1666 = vmatprep.subr.mxu0 0.0
      %1667 = vmatpush1.xpose.msra.mxu0 %v1657
      %1668 = vmatprep.subr.mxu0 0.0
      %1669 = vmatpush1.xpose.msra.mxu0 %v1660
      %1670 = vmatprep.subr.mxu0 0.0
      %1671 = vmatpush1.xpose.msra.mxu0 0.0
      %1672 = vmatprep.subr.mxu0 0.0
      %1673 = vmatpush1.xpose.msra.mxu0 0.0
      %1674 = vmatprep.subr.mxu0 0.0
      %1675 = vmatpush1.xpose.msra.mxu0 0.0
      %1676 = vmatprep.subr.mxu0 0.0
      %1677 = vmatpush1.xpose.msra.mxu0 0.0
      %1678 = vmatprep.subr.mxu0 0.0
      %1679 = vmatpush1.xpose.msra.mxu0 0.0
      %1680 = vmatprep.subr.mxu0 0.0
      %1681 = vmatpush1.xpose.msra.mxu0 0.0
      %1682 = vmatprep.subr.mxu0 0.0
      %1683 = vmatpush1.xpose.msra.mxu0 0.0
      %1684 = vmatprep.subr.mxu0 0.0
      %1685 = vmatpush1.xpose.msra.mxu0 0.0
      %1686 = vmatprep.subr.mxu0 0.0
      %1687 = vmatpush1.xpose.msra.mxu0 0.0
      %1688 = vmatprep.subr.mxu0 0.0
      %1689 = vmatpush1.xpose.msra.mxu0 0.0
      %1690 = vmatprep.subr.mxu0 0.0
      %1691 = vmatpush1.xpose.msra.mxu0 0.0
      %1692 = vmatprep.subr.mxu0 0.0
      %1693 = vmatpush1.xpose.msra.mxu0 0.0
      %1694 = vmatprep.subr.mxu0 0.0
      %1695 = vmatpush1.xpose.msra.mxu0 0.0
      %1696 = vmatprep.subr.mxu0 0.0
      %1697 = vmatpush1.xpose.msra.mxu0 0.0
      %1698 = vmatprep.subr.mxu0 0.0
      %1699 = vmatpush1.xpose.msra.mxu0 0.0
      %1700 = vmatprep.subr.mxu0 0.0
      %1701 = vmatpush1.xpose.msra.mxu0 0.0
      %1702 = vmatprep.subr.mxu0 0.0
      %1703 = vmatpush1.xpose.msra.mxu0 0.0
      %1704 = vmatprep.subr.mxu0 0.0
      %1705 = vmatpush1.xpose.msra.mxu0 0.0
      %1706 = vmatprep.subr.mxu0 0.0
      %1707 = vmatpush1.xpose.msra.mxu0 0.0
      %1708 = vmatprep.subr.mxu0 0.0
      %1709 = vmatpush1.xpose.msra.mxu0 0.0
      %1710 = vmatprep.subr.mxu0 0.0
      %1711 = vmatpush1.xpose.msra.mxu0 0.0
      %1712 = vmatprep.subr.mxu0 0.0
      %1713 = vmatpush1.xpose.msra.mxu0 0.0
      %1714 = vmatprep.subr.mxu0 0.0
      %1715 = vmatpush1.xpose.msra.mxu0 0.0
      %1716 = vmatprep.subr.mxu0 0.0
      %1717 = vmatpush1.xpose.msra.mxu0 0.0
      %1718 = vmatprep.subr.mxu0 0.0
      %1719 = vmatpush1.xpose.msra.mxu0 0.0
      %1720 = vmatprep.subr.mxu0 0.0
      %1721 = vmatpush1.xpose.msra.mxu0 0.0
      %1722 = vmatprep.subr.mxu0 0.0
      %1723 = vmatpush1.xpose.msra.mxu0 0.0
      %1724 = vmatprep.subr.mxu0 0.0
      %1725 = vmatpush1.xpose.msra.mxu0 0.0
      %1726 = vmatprep.mubr.f32.mxu0 0.0
      %1727 = vmatmul.mubr.f32.gmra.mrb[0].mxu0 %v1648
      %v1728 = vpop.f32.mrb[0].mxu0
      %v1729 = vadd.f32 0.0, %v1728
      %v1730 = vpop.f32.mrb[0].mxu0
      %1731 = vdwg.mxu0
      %v1733 = vsel %vm408, %v564, 0
      %v1736 = vsel %vm408, %v920, 0
      %v1739 = vsel %vm408, %v940, 0
      %v1742 = vsel %vm408, %v960, 0
      %v1745 = vsel %vm408, %v980, 0
      %1747 = vmatprep.subr.mxu0 0.0
      %1748 = vmatpush1.xpose.msra.mxu0 %v1736
      %1749 = vmatprep.subr.mxu0 0.0
      %1750 = vmatpush1.xpose.msra.mxu0 %v1739
      %1751 = vmatprep.subr.mxu0 0.0
      %1752 = vmatpush1.xpose.msra.mxu0 %v1742
      %1753 = vmatprep.subr.mxu0 0.0
      %1754 = vmatpush1.xpose.msra.mxu0 %v1745
      %1755 = vmatprep.subr.mxu0 0.0
      %1756 = vmatpush1.xpose.msra.mxu0 0.0
      %1757 = vmatprep.subr.mxu0 0.0
      %1758 = vmatpush1.xpose.msra.mxu0 0.0
      %1759 = vmatprep.subr.mxu0 0.0
      %1760 = vmatpush1.xpose.msra.mxu0 0.0
      %1761 = vmatprep.subr.mxu0 0.0
      %1762 = vmatpush1.xpose.msra.mxu0 0.0
      %1763 = vmatprep.subr.mxu0 0.0
      %1764 = vmatpush1.xpose.msra.mxu0 0.0
      %1765 = vmatprep.subr.mxu0 0.0
      %1766 = vmatpush1.xpose.msra.mxu0 0.0
      %1767 = vmatprep.subr.mxu0 0.0
      %1768 = vmatpush1.xpose.msra.mxu0 0.0
      %1769 = vmatprep.subr.mxu0 0.0
      %1770 = vmatpush1.xpose.msra.mxu0 0.0
      %1771 = vmatprep.subr.mxu0 0.0
      %1772 = vmatpush1.xpose.msra.mxu0 0.0
      %1773 = vmatprep.subr.mxu0 0.0
      %1774 = vmatpush1.xpose.msra.mxu0 0.0
      %1775 = vmatprep.subr.mxu0 0.0
      %1776 = vmatpush1.xpose.msra.mxu0 0.0
      %1777 = vmatprep.subr.mxu0 0.0
      %1778 = vmatpush1.xpose.msra.mxu0 0.0
      %1779 = vmatprep.subr.mxu0 0.0
      %1780 = vmatpush1.xpose.msra.mxu0 0.0
      %1781 = vmatprep.subr.mxu0 0.0
      %1782 = vmatpush1.xpose.msra.mxu0 0.0
      %1783 = vmatprep.subr.mxu0 0.0
      %1784 = vmatpush1.xpose.msra.mxu0 0.0
      %1785 = vmatprep.subr.mxu0 0.0
      %1786 = vmatpush1.xpose.msra.mxu0 0.0
      %1787 = vmatprep.subr.mxu0 0.0
      %1788 = vmatpush1.xpose.msra.mxu0 0.0
      %1789 = vmatprep.subr.mxu0 0.0
      %1790 = vmatpush1.xpose.msra.mxu0 0.0
      %1791 = vmatprep.subr.mxu0 0.0
      %1792 = vmatpush1.xpose.msra.mxu0 0.0
      %1793 = vmatprep.subr.mxu0 0.0
      %1794 = vmatpush1.xpose.msra.mxu0 0.0
      %1795 = vmatprep.subr.mxu0 0.0
      %1796 = vmatpush1.xpose.msra.mxu0 0.0
      %1797 = vmatprep.subr.mxu0 0.0
      %1798 = vmatpush1.xpose.msra.mxu0 0.0
      %1799 = vmatprep.subr.mxu0 0.0
      %1800 = vmatpush1.xpose.msra.mxu0 0.0
      %1801 = vmatprep.subr.mxu0 0.0
      %1802 = vmatpush1.xpose.msra.mxu0 0.0
      %1803 = vmatprep.subr.mxu0 0.0
      %1804 = vmatpush1.xpose.msra.mxu0 0.0
      %1805 = vmatprep.subr.mxu0 0.0
      %1806 = vmatpush1.xpose.msra.mxu0 0.0
      %1807 = vmatprep.subr.mxu0 0.0
      %1808 = vmatpush1.xpose.msra.mxu0 0.0
      %1809 = vmatprep.subr.mxu0 0.0
      %1810 = vmatpush1.xpose.msra.mxu0 0.0
      %1811 = vmatprep.mubr.f32.mxu0 0.0
      %1812 = vmatmul.mubr.f32.gmra.mrb[0].mxu0 %v1733
      %v1813 = vpop.f32.mrb[0].mxu0
      %v1814 = vadd.f32 0.0, %v1813
      %v1815 = vpop.f32.mrb[0].mxu0
      %1816 = vdwg.mxu0
      %v1818 = vsel %vm408, %v569, 0
      %v1821 = vsel %vm408, %v921, 0
      %v1824 = vsel %vm408, %v941, 0
      %v1827 = vsel %vm408, %v961, 0
      %v1830 = vsel %vm408, %v981, 0
      %1832 = vmatprep.subr.mxu0 0.0
      %1833 = vmatpush1.xpose.msra.mxu0 %v1821
      %1834 = vmatprep.subr.mxu0 0.0
      %1835 = vmatpush1.xpose.msra.mxu0 %v1824
      %1836 = vmatprep.subr.mxu0 0.0
      %1837 = vmatpush1.xpose.msra.mxu0 %v1827
      %1838 = vmatprep.subr.mxu0 0.0
      %1839 = vmatpush1.xpose.msra.mxu0 %v1830
      %1840 = vmatprep.subr.mxu0 0.0
      %1841 = vmatpush1.xpose.msra.mxu0 0.0
      %1842 = vmatprep.subr.mxu0 0.0
      %1843 = vmatpush1.xpose.msra.mxu0 0.0
      %1844 = vmatprep.subr.mxu0 0.0
      %1845 = vmatpush1.xpose.msra.mxu0 0.0
      %1846 = vmatprep.subr.mxu0 0.0
      %1847 = vmatpush1.xpose.msra.mxu0 0.0
      %1848 = vmatprep.subr.mxu0 0.0
      %1849 = vmatpush1.xpose.msra.mxu0 0.0
      %1850 = vmatprep.subr.mxu0 0.0
      %1851 = vmatpush1.xpose.msra.mxu0 0.0
      %1852 = vmatprep.subr.mxu0 0.0
      %1853 = vmatpush1.xpose.msra.mxu0 0.0
      %1854 = vmatprep.subr.mxu0 0.0
      %1855 = vmatpush1.xpose.msra.mxu0 0.0
      %1856 = vmatprep.subr.mxu0 0.0
      %1857 = vmatpush1.xpose.msra.mxu0 0.0
      %1858 = vmatprep.subr.mxu0 0.0
      %1859 = vmatpush1.xpose.msra.mxu0 0.0
      %1860 = vmatprep.subr.mxu0 0.0
      %1861 = vmatpush1.xpose.msra.mxu0 0.0
      %1862 = vmatprep.subr.mxu0 0.0
      %1863 = vmatpush1.xpose.msra.mxu0 0.0
      %1864 = vmatprep.subr.mxu0 0.0
      %1865 = vmatpush1.xpose.msra.mxu0 0.0
      %1866 = vmatprep.subr.mxu0 0.0
      %1867 = vmatpush1.xpose.msra.mxu0 0.0
      %1868 = vmatprep.subr.mxu0 0.0
      %1869 = vmatpush1.xpose.msra.mxu0 0.0
      %1870 = vmatprep.subr.mxu0 0.0
      %1871 = vmatpush1.xpose.msra.mxu0 0.0
      %1872 = vmatprep.subr.mxu0 0.0
      %1873 = vmatpush1.xpose.msra.mxu0 0.0
      %1874 = vmatprep.subr.mxu0 0.0
      %1875 = vmatpush1.xpose.msra.mxu0 0.0
      %1876 = vmatprep.subr.mxu0 0.0
      %1877 = vmatpush1.xpose.msra.mxu0 0.0
      %1878 = vmatprep.subr.mxu0 0.0
      %1879 = vmatpush1.xpose.msra.mxu0 0.0
      %1880 = vmatprep.subr.mxu0 0.0
      %1881 = vmatpush1.xpose.msra.mxu0 0.0
      %1882 = vmatprep.subr.mxu0 0.0
      %1883 = vmatpush1.xpose.msra.mxu0 0.0
      %1884 = vmatprep.subr.mxu0 0.0
      %1885 = vmatpush1.xpose.msra.mxu0 0.0
      %1886 = vmatprep.subr.mxu0 0.0
      %1887 = vmatpush1.xpose.msra.mxu0 0.0
      %1888 = vmatprep.subr.mxu0 0.0
      %1889 = vmatpush1.xpose.msra.mxu0 0.0
      %1890 = vmatprep.subr.mxu0 0.0
      %1891 = vmatpush1.xpose.msra.mxu0 0.0
      %1892 = vmatprep.subr.mxu0 0.0
      %1893 = vmatpush1.xpose.msra.mxu0 0.0
      %1894 = vmatprep.subr.mxu0 0.0
      %1895 = vmatpush1.xpose.msra.mxu0 0.0
      %1896 = vmatprep.mubr.f32.mxu0 0.0
      %1897 = vmatmul.mubr.f32.gmra.mrb[0].mxu0 %v1818
      %v1898 = vpop.f32.mrb[0].mxu0
      %v1899 = vadd.f32 0.0, %v1898
      %v1900 = vpop.f32.mrb[0].mxu0
      %1901 = vdwg.mxu0
      %v1903 = vsel %vm408, %v574, 0
      %v1906 = vsel %vm408, %v922, 0
      %v1909 = vsel %vm408, %v942, 0
      %v1912 = vsel %vm408, %v962, 0
      %v1915 = vsel %vm408, %v982, 0
      %1917 = vmatprep.subr.mxu0 0.0
      %1918 = vmatpush1.xpose.msra.mxu0 %v1906
      %1919 = vmatprep.subr.mxu0 0.0
      %1920 = vmatpush1.xpose.msra.mxu0 %v1909
      %1921 = vmatprep.subr.mxu0 0.0
      %1922 = vmatpush1.xpose.msra.mxu0 %v1912
      %1923 = vmatprep.subr.mxu0 0.0
      %1924 = vmatpush1.xpose.msra.mxu0 %v1915
      %1925 = vmatprep.subr.mxu0 0.0
      %1926 = vmatpush1.xpose.msra.mxu0 0.0
      %1927 = vmatprep.subr.mxu0 0.0
      %1928 = vmatpush1.xpose.msra.mxu0 0.0
      %1929 = vmatprep.subr.mxu0 0.0
      %1930 = vmatpush1.xpose.msra.mxu0 0.0
      %1931 = vmatprep.subr.mxu0 0.0
      %1932 = vmatpush1.xpose.msra.mxu0 0.0
      %1933 = vmatprep.subr.mxu0 0.0
      %1934 = vmatpush1.xpose.msra.mxu0 0.0
      %1935 = vmatprep.subr.mxu0 0.0
      %1936 = vmatpush1.xpose.msra.mxu0 0.0
      %1937 = vmatprep.subr.mxu0 0.0
      %1938 = vmatpush1.xpose.msra.mxu0 0.0
      %1939 = vmatprep.subr.mxu0 0.0
      %1940 = vmatpush1.xpose.msra.mxu0 0.0
      %1941 = vmatprep.subr.mxu0 0.0
      %1942 = vmatpush1.xpose.msra.mxu0 0.0
      %1943 = vmatprep.subr.mxu0 0.0
      %1944 = vmatpush1.xpose.msra.mxu0 0.0
      %1945 = vmatprep.subr.mxu0 0.0
      %1946 = vmatpush1.xpose.msra.mxu0 0.0
      %1947 = vmatprep.subr.mxu0 0.0
      %1948 = vmatpush1.xpose.msra.mxu0 0.0
      %1949 = vmatprep.subr.mxu0 0.0
      %1950 = vmatpush1.xpose.msra.mxu0 0.0
      %1951 = vmatprep.subr.mxu0 0.0
      %1952 = vmatpush1.xpose.msra.mxu0 0.0
      %1953 = vmatprep.subr.mxu0 0.0
      %1954 = vmatpush1.xpose.msra.mxu0 0.0
      %1955 = vmatprep.subr.mxu0 0.0
      %1956 = vmatpush1.xpose.msra.mxu0 0.0
      %1957 = vmatprep.subr.mxu0 0.0
      %1958 = vmatpush1.xpose.msra.mxu0 0.0
      %1959 = vmatprep.subr.mxu0 0.0
      %1960 = vmatpush1.xpose.msra.mxu0 0.0
      %1961 = vmatprep.subr.mxu0 0.0
      %1962 = vmatpush1.xpose.msra.mxu0 0.0
      %1963 = vmatprep.subr.mxu0 0.0
      %1964 = vmatpush1.xpose.msra.mxu0 0.0
      %1965 = vmatprep.subr.mxu0 0.0
      %1966 = vmatpush1.xpose.msra.mxu0 0.0
      %1967 = vmatprep.subr.mxu0 0.0
      %1968 = vmatpush1.xpose.msra.mxu0 0.0
      %1969 = vmatprep.subr.mxu0 0.0
      %1970 = vmatpush1.xpose.msra.mxu0 0.0
      %1971 = vmatprep.subr.mxu0 0.0
      %1972 = vmatpush1.xpose.msra.mxu0 0.0
      %1973 = vmatprep.subr.mxu0 0.0
      %1974 = vmatpush1.xpose.msra.mxu0 0.0
      %1975 = vmatprep.subr.mxu0 0.0
      %1976 = vmatpush1.xpose.msra.mxu0 0.0
      %1977 = vmatprep.subr.mxu0 0.0
      %1978 = vmatpush1.xpose.msra.mxu0 0.0
      %1979 = vmatprep.subr.mxu0 0.0
      %1980 = vmatpush1.xpose.msra.mxu0 0.0
      %1981 = vmatprep.mubr.f32.mxu0 0.0
      %1982 = vmatmul.mubr.f32.gmra.mrb[0].mxu0 %v1903
      %v1983 = vpop.f32.mrb[0].mxu0
      %v1984 = vadd.f32 0.0, %v1983
      %v1985 = vpop.f32.mrb[0].mxu0
      %1986 = vdwg.mxu0
      %v1988 = vsel %vm408, %v579, 0
      %v1991 = vsel %vm408, %v923, 0
      %v1994 = vsel %vm408, %v943, 0
      %v1997 = vsel %vm408, %v963, 0
      %v2000 = vsel %vm408, %v983, 0
      %2002 = vmatprep.subr.mxu0 0.0
      %2003 = vmatpush1.xpose.msra.mxu0 %v1991
      %2004 = vmatprep.subr.mxu0 0.0
      %2005 = vmatpush1.xpose.msra.mxu0 %v1994
      %2006 = vmatprep.subr.mxu0 0.0
      %2007 = vmatpush1.xpose.msra.mxu0 %v1997
      %2008 = vmatprep.subr.mxu0 0.0
      %2009 = vmatpush1.xpose.msra.mxu0 %v2000
      %2010 = vmatprep.subr.mxu0 0.0
      %2011 = vmatpush1.xpose.msra.mxu0 0.0
      %2012 = vmatprep.subr.mxu0 0.0
      %2013 = vmatpush1.xpose.msra.mxu0 0.0
      %2014 = vmatprep.subr.mxu0 0.0
      %2015 = vmatpush1.xpose.msra.mxu0 0.0
      %2016 = vmatprep.subr.mxu0 0.0
      %2017 = vmatpush1.xpose.msra.mxu0 0.0
      %2018 = vmatprep.subr.mxu0 0.0
      %2019 = vmatpush1.xpose.msra.mxu0 0.0
      %2020 = vmatprep.subr.mxu0 0.0
      %2021 = vmatpush1.xpose.msra.mxu0 0.0
      %2022 = vmatprep.subr.mxu0 0.0
      %2023 = vmatpush1.xpose.msra.mxu0 0.0
      %2024 = vmatprep.subr.mxu0 0.0
      %2025 = vmatpush1.xpose.msra.mxu0 0.0
      %2026 = vmatprep.subr.mxu0 0.0
      %2027 = vmatpush1.xpose.msra.mxu0 0.0
      %2028 = vmatprep.subr.mxu0 0.0
      %2029 = vmatpush1.xpose.msra.mxu0 0.0
      %2030 = vmatprep.subr.mxu0 0.0
      %2031 = vmatpush1.xpose.msra.mxu0 0.0
      %2032 = vmatprep.subr.mxu0 0.0
      %2033 = vmatpush1.xpose.msra.mxu0 0.0
      %2034 = vmatprep.subr.mxu0 0.0
      %2035 = vmatpush1.xpose.msra.mxu0 0.0
      %2036 = vmatprep.subr.mxu0 0.0
      %2037 = vmatpush1.xpose.msra.mxu0 0.0
      %2038 = vmatprep.subr.mxu0 0.0
      %2039 = vmatpush1.xpose.msra.mxu0 0.0
      %2040 = vmatprep.subr.mxu0 0.0
      %2041 = vmatpush1.xpose.msra.mxu0 0.0
      %2042 = vmatprep.subr.mxu0 0.0
      %2043 = vmatpush1.xpose.msra.mxu0 0.0
      %2044 = vmatprep.subr.mxu0 0.0
      %2045 = vmatpush1.xpose.msra.mxu0 0.0
      %2046 = vmatprep.subr.mxu0 0.0
      %2047 = vmatpush1.xpose.msra.mxu0 0.0
      %2048 = vmatprep.subr.mxu0 0.0
      %2049 = vmatpush1.xpose.msra.mxu0 0.0
      %2050 = vmatprep.subr.mxu0 0.0
      %2051 = vmatpush1.xpose.msra.mxu0 0.0
      %2052 = vmatprep.subr.mxu0 0.0
      %2053 = vmatpush1.xpose.msra.mxu0 0.0
      %2054 = vmatprep.subr.mxu0 0.0
      %2055 = vmatpush1.xpose.msra.mxu0 0.0
      %2056 = vmatprep.subr.mxu0 0.0
      %2057 = vmatpush1.xpose.msra.mxu0 0.0
      %2058 = vmatprep.subr.mxu0 0.0
      %2059 = vmatpush1.xpose.msra.mxu0 0.0
      %2060 = vmatprep.subr.mxu0 0.0
      %2061 = vmatpush1.xpose.msra.mxu0 0.0
      %2062 = vmatprep.subr.mxu0 0.0
      %2063 = vmatpush1.xpose.msra.mxu0 0.0
      %2064 = vmatprep.subr.mxu0 0.0
      %2065 = vmatpush1.xpose.msra.mxu0 0.0
      %2066 = vmatprep.mubr.f32.mxu0 0.0
      %2067 = vmatmul.mubr.f32.gmra.mrb[0].mxu0 %v1988
      %v2068 = vpop.f32.mrb[0].mxu0
      %v2069 = vadd.f32 0.0, %v2068
      %v2070 = vpop.f32.mrb[0].mxu0
      %2071 = vdwg.mxu0
      %v2073 = vsel %vm408, %v584, 0
      %v2076 = vsel %vm408, %v924, 0
      %v2079 = vsel %vm408, %v944, 0
      %v2082 = vsel %vm408, %v964, 0
      %v2085 = vsel %vm408, %v984, 0
      %2087 = vmatprep.subr.mxu0 0.0
      %2088 = vmatpush1.xpose.msra.mxu0 %v2076
      %2089 = vmatprep.subr.mxu0 0.0
      %2090 = vmatpush1.xpose.msra.mxu0 %v2079
      %2091 = vmatprep.subr.mxu0 0.0
      %2092 = vmatpush1.xpose.msra.mxu0 %v2082
      %2093 = vmatprep.subr.mxu0 0.0
      %2094 = vmatpush1.xpose.msra.mxu0 %v2085
      %2095 = vmatprep.subr.mxu0 0.0
      %2096 = vmatpush1.xpose.msra.mxu0 0.0
      %2097 = vmatprep.subr.mxu0 0.0
      %2098 = vmatpush1.xpose.msra.mxu0 0.0
      %2099 = vmatprep.subr.mxu0 0.0
      %2100 = vmatpush1.xpose.msra.mxu0 0.0
      %2101 = vmatprep.subr.mxu0 0.0
      %2102 = vmatpush1.xpose.msra.mxu0 0.0
      %2103 = vmatprep.subr.mxu0 0.0
      %2104 = vmatpush1.xpose.msra.mxu0 0.0
      %2105 = vmatprep.subr.mxu0 0.0
      %2106 = vmatpush1.xpose.msra.mxu0 0.0
      %2107 = vmatprep.subr.mxu0 0.0
      %2108 = vmatpush1.xpose.msra.mxu0 0.0
      %2109 = vmatprep.subr.mxu0 0.0
      %2110 = vmatpush1.xpose.msra.mxu0 0.0
      %2111 = vmatprep.subr.mxu0 0.0
      %2112 = vmatpush1.xpose.msra.mxu0 0.0
      %2113 = vmatprep.subr.mxu0 0.0
      %2114 = vmatpush1.xpose.msra.mxu0 0.0
      %2115 = vmatprep.subr.mxu0 0.0
      %2116 = vmatpush1.xpose.msra.mxu0 0.0
      %2117 = vmatprep.subr.mxu0 0.0
      %2118 = vmatpush1.xpose.msra.mxu0 0.0
      %2119 = vmatprep.subr.mxu0 0.0
      %2120 = vmatpush1.xpose.msra.mxu0 0.0
      %2121 = vmatprep.subr.mxu0 0.0
      %2122 = vmatpush1.xpose.msra.mxu0 0.0
      %2123 = vmatprep.subr.mxu0 0.0
      %2124 = vmatpush1.xpose.msra.mxu0 0.0
      %2125 = vmatprep.subr.mxu0 0.0
      %2126 = vmatpush1.xpose.msra.mxu0 0.0
      %2127 = vmatprep.subr.mxu0 0.0
      %2128 = vmatpush1.xpose.msra.mxu0 0.0
      %2129 = vmatprep.subr.mxu0 0.0
      %2130 = vmatpush1.xpose.msra.mxu0 0.0
      %2131 = vmatprep.subr.mxu0 0.0
      %2132 = vmatpush1.xpose.msra.mxu0 0.0
      %2133 = vmatprep.subr.mxu0 0.0
      %2134 = vmatpush1.xpose.msra.mxu0 0.0
      %2135 = vmatprep.subr.mxu0 0.0
      %2136 = vmatpush1.xpose.msra.mxu0 0.0
      %2137 = vmatprep.subr.mxu0 0.0
      %2138 = vmatpush1.xpose.msra.mxu0 0.0
      %2139 = vmatprep.subr.mxu0 0.0
      %2140 = vmatpush1.xpose.msra.mxu0 0.0
      %2141 = vmatprep.subr.mxu0 0.0
      %2142 = vmatpush1.xpose.msra.mxu0 0.0
      %2143 = vmatprep.subr.mxu0 0.0
      %2144 = vmatpush1.xpose.msra.mxu0 0.0
      %2145 = vmatprep.subr.mxu0 0.0
      %2146 = vmatpush1.xpose.msra.mxu0 0.0
      %2147 = vmatprep.subr.mxu0 0.0
      %2148 = vmatpush1.xpose.msra.mxu0 0.0
      %2149 = vmatprep.subr.mxu0 0.0
      %2150 = vmatpush1.xpose.msra.mxu0 0.0
      %2151 = vmatprep.mubr.f32.mxu0 0.0
      %2152 = vmatmul.mubr.f32.gmra.mrb[0].mxu0 %v2073
      %v2153 = vpop.f32.mrb[0].mxu0
      %v2154 = vadd.f32 0.0, %v2153
      %v2155 = vpop.f32.mrb[0].mxu0
      %2156 = vdwg.mxu0
      %v2158 = vsel %vm408, %v589, 0
      %v2161 = vsel %vm408, %v925, 0
      %v2164 = vsel %vm408, %v945, 0
      %v2167 = vsel %vm408, %v965, 0
      %v2170 = vsel %vm408, %v985, 0
      %2172 = vmatprep.subr.mxu0 0.0
      %2173 = vmatpush1.xpose.msra.mxu0 %v2161
      %2174 = vmatprep.subr.mxu0 0.0
      %2175 = vmatpush1.xpose.msra.mxu0 %v2164
      %2176 = vmatprep.subr.mxu0 0.0
      %2177 = vmatpush1.xpose.msra.mxu0 %v2167
      %2178 = vmatprep.subr.mxu0 0.0
      %2179 = vmatpush1.xpose.msra.mxu0 %v2170
      %2180 = vmatprep.subr.mxu0 0.0
      %2181 = vmatpush1.xpose.msra.mxu0 0.0
      %2182 = vmatprep.subr.mxu0 0.0
      %2183 = vmatpush1.xpose.msra.mxu0 0.0
      %2184 = vmatprep.subr.mxu0 0.0
      %2185 = vmatpush1.xpose.msra.mxu0 0.0
      %2186 = vmatprep.subr.mxu0 0.0
      %2187 = vmatpush1.xpose.msra.mxu0 0.0
      %2188 = vmatprep.subr.mxu0 0.0
      %2189 = vmatpush1.xpose.msra.mxu0 0.0
      %2190 = vmatprep.subr.mxu0 0.0
      %2191 = vmatpush1.xpose.msra.mxu0 0.0
      %2192 = vmatprep.subr.mxu0 0.0
      %2193 = vmatpush1.xpose.msra.mxu0 0.0
      %2194 = vmatprep.subr.mxu0 0.0
      %2195 = vmatpush1.xpose.msra.mxu0 0.0
      %2196 = vmatprep.subr.mxu0 0.0
      %2197 = vmatpush1.xpose.msra.mxu0 0.0
      %2198 = vmatprep.subr.mxu0 0.0
      %2199 = vmatpush1.xpose.msra.mxu0 0.0
      %2200 = vmatprep.subr.mxu0 0.0
      %2201 = vmatpush1.xpose.msra.mxu0 0.0
      %2202 = vmatprep.subr.mxu0 0.0
      %2203 = vmatpush1.xpose.msra.mxu0 0.0
      %2204 = vmatprep.subr.mxu0 0.0
      %2205 = vmatpush1.xpose.msra.mxu0 0.0
      %2206 = vmatprep.subr.mxu0 0.0
      %2207 = vmatpush1.xpose.msra.mxu0 0.0
      %2208 = vmatprep.subr.mxu0 0.0
      %2209 = vmatpush1.xpose.msra.mxu0 0.0
      %2210 = vmatprep.subr.mxu0 0.0
      %2211 = vmatpush1.xpose.msra.mxu0 0.0
      %2212 = vmatprep.subr.mxu0 0.0
      %2213 = vmatpush1.xpose.msra.mxu0 0.0
      %2214 = vmatprep.subr.mxu0 0.0
      %2215 = vmatpush1.xpose.msra.mxu0 0.0
      %2216 = vmatprep.subr.mxu0 0.0
      %2217 = vmatpush1.xpose.msra.mxu0 0.0
      %2218 = vmatprep.subr.mxu0 0.0
      %2219 = vmatpush1.xpose.msra.mxu0 0.0
      %2220 = vmatprep.subr.mxu0 0.0
      %2221 = vmatpush1.xpose.msra.mxu0 0.0
      %2222 = vmatprep.subr.mxu0 0.0
      %2223 = vmatpush1.xpose.msra.mxu0 0.0
      %2224 = vmatprep.subr.mxu0 0.0
      %2225 = vmatpush1.xpose.msra.mxu0 0.0
      %2226 = vmatprep.subr.mxu0 0.0
      %2227 = vmatpush1.xpose.msra.mxu0 0.0
      %2228 = vmatprep.subr.mxu0 0.0
      %2229 = vmatpush1.xpose.msra.mxu0 0.0
      %2230 = vmatprep.subr.mxu0 0.0
      %2231 = vmatpush1.xpose.msra.mxu0 0.0
      %2232 = vmatprep.subr.mxu0 0.0
      %2233 = vmatpush1.xpose.msra.mxu0 0.0
      %2234 = vmatprep.subr.mxu0 0.0
      %2235 = vmatpush1.xpose.msra.mxu0 0.0
      %2236 = vmatprep.mubr.f32.mxu0 0.0
      %2237 = vmatmul.mubr.f32.gmra.mrb[0].mxu0 %v2158
      %v2238 = vpop.f32.mrb[0].mxu0
      %v2239 = vadd.f32 0.0, %v2238
      %v2240 = vpop.f32.mrb[0].mxu0
      %2241 = vdwg.mxu0
      %v2243 = vsel %vm408, %v594, 0
      %v2246 = vsel %vm408, %v926, 0
      %v2249 = vsel %vm408, %v946, 0
      %v2252 = vsel %vm408, %v966, 0
      %v2255 = vsel %vm408, %v986, 0
      %2257 = vmatprep.subr.mxu0 0.0
      %2258 = vmatpush1.xpose.msra.mxu0 %v2246
      %2259 = vmatprep.subr.mxu0 0.0
      %2260 = vmatpush1.xpose.msra.mxu0 %v2249
      %2261 = vmatprep.subr.mxu0 0.0
      %2262 = vmatpush1.xpose.msra.mxu0 %v2252
      %2263 = vmatprep.subr.mxu0 0.0
      %2264 = vmatpush1.xpose.msra.mxu0 %v2255
      %2265 = vmatprep.subr.mxu0 0.0
      %2266 = vmatpush1.xpose.msra.mxu0 0.0
      %2267 = vmatprep.subr.mxu0 0.0
      %2268 = vmatpush1.xpose.msra.mxu0 0.0
      %2269 = vmatprep.subr.mxu0 0.0
      %2270 = vmatpush1.xpose.msra.mxu0 0.0
      %2271 = vmatprep.subr.mxu0 0.0
      %2272 = vmatpush1.xpose.msra.mxu0 0.0
      %2273 = vmatprep.subr.mxu0 0.0
      %2274 = vmatpush1.xpose.msra.mxu0 0.0
      %2275 = vmatprep.subr.mxu0 0.0
      %2276 = vmatpush1.xpose.msra.mxu0 0.0
      %2277 = vmatprep.subr.mxu0 0.0
      %2278 = vmatpush1.xpose.msra.mxu0 0.0
      %2279 = vmatprep.subr.mxu0 0.0
      %2280 = vmatpush1.xpose.msra.mxu0 0.0
      %2281 = vmatprep.subr.mxu0 0.0
      %2282 = vmatpush1.xpose.msra.mxu0 0.0
      %2283 = vmatprep.subr.mxu0 0.0
      %2284 = vmatpush1.xpose.msra.mxu0 0.0
      %2285 = vmatprep.subr.mxu0 0.0
      %2286 = vmatpush1.xpose.msra.mxu0 0.0
      %2287 = vmatprep.subr.mxu0 0.0
      %2288 = vmatpush1.xpose.msra.mxu0 0.0
      %2289 = vmatprep.subr.mxu0 0.0
      %2290 = vmatpush1.xpose.msra.mxu0 0.0
      %2291 = vmatprep.subr.mxu0 0.0
      %2292 = vmatpush1.xpose.msra.mxu0 0.0
      %2293 = vmatprep.subr.mxu0 0.0
      %2294 = vmatpush1.xpose.msra.mxu0 0.0
      %2295 = vmatprep.subr.mxu0 0.0
      %2296 = vmatpush1.xpose.msra.mxu0 0.0
      %2297 = vmatprep.subr.mxu0 0.0
      %2298 = vmatpush1.xpose.msra.mxu0 0.0
      %2299 = vmatprep.subr.mxu0 0.0
      %2300 = vmatpush1.xpose.msra.mxu0 0.0
      %2301 = vmatprep.subr.mxu0 0.0
      %2302 = vmatpush1.xpose.msra.mxu0 0.0
      %2303 = vmatprep.subr.mxu0 0.0
      %2304 = vmatpush1.xpose.msra.mxu0 0.0
      %2305 = vmatprep.subr.mxu0 0.0
      %2306 = vmatpush1.xpose.msra.mxu0 0.0
      %2307 = vmatprep.subr.mxu0 0.0
      %2308 = vmatpush1.xpose.msra.mxu0 0.0
      %2309 = vmatprep.subr.mxu0 0.0
      %2310 = vmatpush1.xpose.msra.mxu0 0.0
      %2311 = vmatprep.subr.mxu0 0.0
      %2312 = vmatpush1.xpose.msra.mxu0 0.0
      %2313 = vmatprep.subr.mxu0 0.0
      %2314 = vmatpush1.xpose.msra.mxu0 0.0
      %2315 = vmatprep.subr.mxu0 0.0
      %2316 = vmatpush1.xpose.msra.mxu0 0.0
      %2317 = vmatprep.subr.mxu0 0.0
      %2318 = vmatpush1.xpose.msra.mxu0 0.0
      %2319 = vmatprep.subr.mxu0 0.0
      %2320 = vmatpush1.xpose.msra.mxu0 0.0
      %2321 = vmatprep.mubr.f32.mxu0 0.0
      %2322 = vmatmul.mubr.f32.gmra.mrb[0].mxu0 %v2243
      %v2323 = vpop.f32.mrb[0].mxu0
      %v2324 = vadd.f32 0.0, %v2323
      %v2325 = vpop.f32.mrb[0].mxu0
      %2326 = vdwg.mxu0
      %v2328 = vsel %vm408, %v599, 0
      %v2331 = vsel %vm408, %v927, 0
      %v2334 = vsel %vm408, %v947, 0
      %v2337 = vsel %vm408, %v967, 0
      %v2340 = vsel %vm408, %v987, 0
      %2342 = vmatprep.subr.mxu0 0.0
      %2343 = vmatpush1.xpose.msra.mxu0 %v2331
      %2344 = vmatprep.subr.mxu0 0.0
      %2345 = vmatpush1.xpose.msra.mxu0 %v2334
      %2346 = vmatprep.subr.mxu0 0.0
      %2347 = vmatpush1.xpose.msra.mxu0 %v2337
      %2348 = vmatprep.subr.mxu0 0.0
      %2349 = vmatpush1.xpose.msra.mxu0 %v2340
      %2350 = vmatprep.subr.mxu0 0.0
      %2351 = vmatpush1.xpose.msra.mxu0 0.0
      %2352 = vmatprep.subr.mxu0 0.0
      %2353 = vmatpush1.xpose.msra.mxu0 0.0
      %2354 = vmatprep.subr.mxu0 0.0
      %2355 = vmatpush1.xpose.msra.mxu0 0.0
      %2356 = vmatprep.subr.mxu0 0.0
      %2357 = vmatpush1.xpose.msra.mxu0 0.0
      %2358 = vmatprep.subr.mxu0 0.0
      %2359 = vmatpush1.xpose.msra.mxu0 0.0
      %2360 = vmatprep.subr.mxu0 0.0
      %2361 = vmatpush1.xpose.msra.mxu0 0.0
      %2362 = vmatprep.subr.mxu0 0.0
      %2363 = vmatpush1.xpose.msra.mxu0 0.0
      %2364 = vmatprep.subr.mxu0 0.0
      %2365 = vmatpush1.xpose.msra.mxu0 0.0
      %2366 = vmatprep.subr.mxu0 0.0
      %2367 = vmatpush1.xpose.msra.mxu0 0.0
      %2368 = vmatprep.subr.mxu0 0.0
      %2369 = vmatpush1.xpose.msra.mxu0 0.0
      %2370 = vmatprep.subr.mxu0 0.0
      %2371 = vmatpush1.xpose.msra.mxu0 0.0
      %2372 = vmatprep.subr.mxu0 0.0
      %2373 = vmatpush1.xpose.msra.mxu0 0.0
      %2374 = vmatprep.subr.mxu0 0.0
      %2375 = vmatpush1.xpose.msra.mxu0 0.0
      %2376 = vmatprep.subr.mxu0 0.0
      %2377 = vmatpush1.xpose.msra.mxu0 0.0
      %2378 = vmatprep.subr.mxu0 0.0
      %2379 = vmatpush1.xpose.msra.mxu0 0.0
      %2380 = vmatprep.subr.mxu0 0.0
      %2381 = vmatpush1.xpose.msra.mxu0 0.0
      %2382 = vmatprep.subr.mxu0 0.0
      %2383 = vmatpush1.xpose.msra.mxu0 0.0
      %2384 = vmatprep.subr.mxu0 0.0
      %2385 = vmatpush1.xpose.msra.mxu0 0.0
      %2386 = vmatprep.subr.mxu0 0.0
      %2387 = vmatpush1.xpose.msra.mxu0 0.0
      %2388 = vmatprep.subr.mxu0 0.0
      %2389 = vmatpush1.xpose.msra.mxu0 0.0
      %2390 = vmatprep.subr.mxu0 0.0
      %2391 = vmatpush1.xpose.msra.mxu0 0.0
      %2392 = vmatprep.subr.mxu0 0.0
      %2393 = vmatpush1.xpose.msra.mxu0 0.0
      %2394 = vmatprep.subr.mxu0 0.0
      %2395 = vmatpush1.xpose.msra.mxu0 0.0
      %2396 = vmatprep.subr.mxu0 0.0
      %2397 = vmatpush1.xpose.msra.mxu0 0.0
      %2398 = vmatprep.subr.mxu0 0.0
      %2399 = vmatpush1.xpose.msra.mxu0 0.0
      %2400 = vmatprep.subr.mxu0 0.0
      %2401 = vmatpush1.xpose.msra.mxu0 0.0
      %2402 = vmatprep.subr.mxu0 0.0
      %2403 = vmatpush1.xpose.msra.mxu0 0.0
      %2404 = vmatprep.subr.mxu0 0.0
      %2405 = vmatpush1.xpose.msra.mxu0 0.0
      %2406 = vmatprep.mubr.f32.mxu0 0.0
      %2407 = vmatmul.mubr.f32.gmra.mrb[0].mxu0 %v2328
      %v2408 = vpop.f32.mrb[0].mxu0
      %v2409 = vadd.f32 0.0, %v2408
      %v2410 = vpop.f32.mrb[0].mxu0
      %2411 = vdwg.mxu0
      %v2412 = vsel %vm408, %v1134, -inf
      %v2413 = vrot.slane %v2412, 4
      %v2414 = vmax.f32 %v2412, %v2413
      %v2415 = vrot.slane %v2414, 2
      %v2416 = vmax.f32 %v2414, %v2415
      %v2417 = vrot.slane %v2416, 1
      %v2418 = vmax.f32 %v2416, %v2417
      %v2419 = vsel %vm408, %v1219, -inf
      %v2420 = vrot.slane %v2419, 4
      %v2421 = vmax.f32 %v2419, %v2420
      %v2422 = vrot.slane %v2421, 2
      %v2423 = vmax.f32 %v2421, %v2422
      %v2424 = vrot.slane %v2423, 1
      %v2425 = vmax.f32 %v2423, %v2424
      %v2426 = vsel %vm408, %v1304, -inf
      %v2427 = vrot.slane %v2426, 4
      %v2428 = vmax.f32 %v2426, %v2427
      %v2429 = vrot.slane %v2428, 2
      %v2430 = vmax.f32 %v2428, %v2429
      %v2431 = vrot.slane %v2430, 1
      %v2432 = vmax.f32 %v2430, %v2431
      %v2433 = vsel %vm408, %v1389, -inf
      %v2434 = vrot.slane %v2433, 4
      %v2435 = vmax.f32 %v2433, %v2434
      %v2436 = vrot.slane %v2435, 2
      %v2437 = vmax.f32 %v2435, %v2436
      %v2438 = vrot.slane %v2437, 1
      %v2439 = vmax.f32 %v2437, %v2438
      %v2440 = vsel %vm408, %v1474, -inf
      %v2441 = vrot.slane %v2440, 4
      %v2442 = vmax.f32 %v2440, %v2441
      %v2443 = vrot.slane %v2442, 2
      %v2444 = vmax.f32 %v2442, %v2443
      %v2445 = vrot.slane %v2444, 1
      %v2446 = vmax.f32 %v2444, %v2445
      %v2447 = vsel %vm408, %v1559, -inf
      %v2448 = vrot.slane %v2447, 4
      %v2449 = vmax.f32 %v2447, %v2448
      %v2450 = vrot.slane %v2449, 2
      %v2451 = vmax.f32 %v2449, %v2450
      %v2452 = vrot.slane %v2451, 1
      %v2453 = vmax.f32 %v2451, %v2452
      %v2454 = vsel %vm408, %v1644, -inf
      %v2455 = vrot.slane %v2454, 4
      %v2456 = vmax.f32 %v2454, %v2455
      %v2457 = vrot.slane %v2456, 2
      %v2458 = vmax.f32 %v2456, %v2457
      %v2459 = vrot.slane %v2458, 1
      %v2460 = vmax.f32 %v2458, %v2459
      %v2461 = vsel %vm408, %v1729, -inf
      %v2462 = vrot.slane %v2461, 4
      %v2463 = vmax.f32 %v2461, %v2462
      %v2464 = vrot.slane %v2463, 2
      %v2465 = vmax.f32 %v2463, %v2464
      %v2466 = vrot.slane %v2465, 1
      %v2467 = vmax.f32 %v2465, %v2466
      %v2468 = vsel %vm408, %v1814, -inf
      %v2469 = vrot.slane %v2468, 4
      %v2470 = vmax.f32 %v2468, %v2469
      %v2471 = vrot.slane %v2470, 2
      %v2472 = vmax.f32 %v2470, %v2471
      %v2473 = vrot.slane %v2472, 1
      %v2474 = vmax.f32 %v2472, %v2473
      %v2475 = vsel %vm408, %v1899, -inf
      %v2476 = vrot.slane %v2475, 4
      %v2477 = vmax.f32 %v2475, %v2476
      %v2478 = vrot.slane %v2477, 2
      %v2479 = vmax.f32 %v2477, %v2478
      %v2480 = vrot.slane %v2479, 1
      %v2481 = vmax.f32 %v2479, %v2480
      %v2482 = vsel %vm408, %v1984, -inf
      %v2483 = vrot.slane %v2482, 4
      %v2484 = vmax.f32 %v2482, %v2483
      %v2485 = vrot.slane %v2484, 2
      %v2486 = vmax.f32 %v2484, %v2485
      %v2487 = vrot.slane %v2486, 1
      %v2488 = vmax.f32 %v2486, %v2487
      %v2489 = vsel %vm408, %v2069, -inf
      %v2490 = vrot.slane %v2489, 4
      %v2491 = vmax.f32 %v2489, %v2490
      %v2492 = vrot.slane %v2491, 2
      %v2493 = vmax.f32 %v2491, %v2492
      %v2494 = vrot.slane %v2493, 1
      %v2495 = vmax.f32 %v2493, %v2494
      %v2496 = vsel %vm408, %v2154, -inf
      %v2497 = vrot.slane %v2496, 4
      %v2498 = vmax.f32 %v2496, %v2497
      %v2499 = vrot.slane %v2498, 2
      %v2500 = vmax.f32 %v2498, %v2499
      %v2501 = vrot.slane %v2500, 1
      %v2502 = vmax.f32 %v2500, %v2501
      %v2503 = vsel %vm408, %v2239, -inf
      %v2504 = vrot.slane %v2503, 4
      %v2505 = vmax.f32 %v2503, %v2504
      %v2506 = vrot.slane %v2505, 2
      %v2507 = vmax.f32 %v2505, %v2506
      %v2508 = vrot.slane %v2507, 1
      %v2509 = vmax.f32 %v2507, %v2508
      %v2510 = vsel %vm408, %v2324, -inf
      %v2511 = vrot.slane %v2510, 4
      %v2512 = vmax.f32 %v2510, %v2511
      %v2513 = vrot.slane %v2512, 2
      %v2514 = vmax.f32 %v2512, %v2513
      %v2515 = vrot.slane %v2514, 1
      %v2516 = vmax.f32 %v2514, %v2515
      %v2517 = vsel %vm408, %v2409, -inf
      %v2518 = vrot.slane %v2517, 4
      %v2519 = vmax.f32 %v2517, %v2518
      %v2520 = vrot.slane %v2519, 2
      %v2521 = vmax.f32 %v2519, %v2520
      %v2522 = vrot.slane %v2521, 1
      %v2523 = vmax.f32 %v2521, %v2522
      %v2524 = vsub.f32 %v1134, %v2418
      %v2525 = vsub.f32 %v1219, %v2425
      %v2526 = vsub.f32 %v1304, %v2432
      %v2527 = vsub.f32 %v1389, %v2439
      %v2528 = vsub.f32 %v1474, %v2446
      %v2529 = vsub.f32 %v1559, %v2453
      %v2530 = vsub.f32 %v1644, %v2460
      %v2531 = vsub.f32 %v1729, %v2467
      %v2532 = vsub.f32 %v1814, %v2474
      %v2533 = vsub.f32 %v1899, %v2481
      %v2534 = vsub.f32 %v1984, %v2488
      %v2535 = vsub.f32 %v2069, %v2495
      %v2536 = vsub.f32 %v2154, %v2502
      %v2537 = vsub.f32 %v2239, %v2509
      %v2538 = vsub.f32 %v2324, %v2516
      %v2539 = vsub.f32 %v2409, %v2523
      %v2540 = vmul.f32 %v2524, 1.442695
      %v2541 = vpow.pop %v2540
      %v2542 = vmul.f32 %v2525, 1.442695
      %v2543 = vpow.pop %v2542
      %v2544 = vmul.f32 %v2526, 1.442695
      %v2545 = vpow.pop %v2544
      %v2546 = vmul.f32 %v2527, 1.442695
      %v2547 = vpow.pop %v2546
      %v2548 = vmul.f32 %v2528, 1.442695
      %v2549 = vpow.pop %v2548
      %v2550 = vmul.f32 %v2529, 1.442695
      %v2551 = vpow.pop %v2550
      %v2552 = vmul.f32 %v2530, 1.442695
      %v2553 = vpow.pop %v2552
      %v2554 = vmul.f32 %v2531, 1.442695
      %v2555 = vpow.pop %v2554
      %v2556 = vmul.f32 %v2532, 1.442695
      %v2557 = vpow.pop %v2556
      %v2558 = vmul.f32 %v2533, 1.442695
      %v2559 = vpow.pop %v2558
      %v2560 = vmul.f32 %v2534, 1.442695
      %v2561 = vpow.pop %v2560
      %v2562 = vmul.f32 %v2535, 1.442695
      %v2563 = vpow.pop %v2562
      %v2564 = vmul.f32 %v2536, 1.442695
      %v2565 = vpow.pop %v2564
      %v2566 = vmul.f32 %v2537, 1.442695
      %v2567 = vpow.pop %v2566
      %v2568 = vmul.f32 %v2538, 1.442695
      %v2569 = vpow.pop %v2568
      %v2570 = vmul.f32 %v2539, 1.442695
      %v2571 = vpow.pop %v2570
      %v2572 = vsel %vm408, %v2541, 0.0
      %v2573 = vrot.slane %v2572, 4
      %v2574 = vadd.f32 %v2572, %v2573
      %v2575 = vrot.slane %v2574, 2
      %v2576 = vadd.f32 %v2574, %v2575
      %v2577 = vrot.slane %v2576, 1
      %v2578 = vadd.f32 %v2576, %v2577
      %v2579 = vsel %vm408, %v2543, 0.0
      %v2580 = vrot.slane %v2579, 4
      %v2581 = vadd.f32 %v2579, %v2580
      %v2582 = vrot.slane %v2581, 2
      %v2583 = vadd.f32 %v2581, %v2582
      %v2584 = vrot.slane %v2583, 1
      %v2585 = vadd.f32 %v2583, %v2584
      %v2586 = vsel %vm408, %v2545, 0.0
      %v2587 = vrot.slane %v2586, 4
      %v2588 = vadd.f32 %v2586, %v2587
      %v2589 = vrot.slane %v2588, 2
      %v2590 = vadd.f32 %v2588, %v2589
      %v2591 = vrot.slane %v2590, 1
      %v2592 = vadd.f32 %v2590, %v2591
      %v2593 = vsel %vm408, %v2547, 0.0
      %v2594 = vrot.slane %v2593, 4
      %v2595 = vadd.f32 %v2593, %v2594
      %v2596 = vrot.slane %v2595, 2
      %v2597 = vadd.f32 %v2595, %v2596
      %v2598 = vrot.slane %v2597, 1
      %v2599 = vadd.f32 %v2597, %v2598
      %v2600 = vsel %vm408, %v2549, 0.0
      %v2601 = vrot.slane %v2600, 4
      %v2602 = vadd.f32 %v2600, %v2601
      %v2603 = vrot.slane %v2602, 2
      %v2604 = vadd.f32 %v2602, %v2603
      %v2605 = vrot.slane %v2604, 1
      %v2606 = vadd.f32 %v2604, %v2605
      %v2607 = vsel %vm408, %v2551, 0.0
      %v2608 = vrot.slane %v2607, 4
      %v2609 = vadd.f32 %v2607, %v2608
      %v2610 = vrot.slane %v2609, 2
      %v2611 = vadd.f32 %v2609, %v2610
      %v2612 = vrot.slane %v2611, 1
      %v2613 = vadd.f32 %v2611, %v2612
      %v2614 = vsel %vm408, %v2553, 0.0
      %v2615 = vrot.slane %v2614, 4
      %v2616 = vadd.f32 %v2614, %v2615
      %v2617 = vrot.slane %v2616, 2
      %v2618 = vadd.f32 %v2616, %v2617
      %v2619 = vrot.slane %v2618, 1
      %v2620 = vadd.f32 %v2618, %v2619
      %v2621 = vsel %vm408, %v2555, 0.0
      %v2622 = vrot.slane %v2621, 4
      %v2623 = vadd.f32 %v2621, %v2622
      %v2624 = vrot.slane %v2623, 2
      %v2625 = vadd.f32 %v2623, %v2624
      %v2626 = vrot.slane %v2625, 1
      %v2627 = vadd.f32 %v2625, %v2626
      %v2628 = vsel %vm408, %v2557, 0.0
      %v2629 = vrot.slane %v2628, 4
      %v2630 = vadd.f32 %v2628, %v2629
      %v2631 = vrot.slane %v2630, 2
      %v2632 = vadd.f32 %v2630, %v2631
      %v2633 = vrot.slane %v2632, 1
      %v2634 = vadd.f32 %v2632, %v2633
      %v2635 = vsel %vm408, %v2559, 0.0
      %v2636 = vrot.slane %v2635, 4
      %v2637 = vadd.f32 %v2635, %v2636
      %v2638 = vrot.slane %v2637, 2
      %v2639 = vadd.f32 %v2637, %v2638
      %v2640 = vrot.slane %v2639, 1
      %v2641 = vadd.f32 %v2639, %v2640
      %v2642 = vsel %vm408, %v2561, 0.0
      %v2643 = vrot.slane %v2642, 4
      %v2644 = vadd.f32 %v2642, %v2643
      %v2645 = vrot.slane %v2644, 2
      %v2646 = vadd.f32 %v2644, %v2645
      %v2647 = vrot.slane %v2646, 1
      %v2648 = vadd.f32 %v2646, %v2647
      %v2649 = vsel %vm408, %v2563, 0.0
      %v2650 = vrot.slane %v2649, 4
      %v2651 = vadd.f32 %v2649, %v2650
      %v2652 = vrot.slane %v2651, 2
      %v2653 = vadd.f32 %v2651, %v2652
      %v2654 = vrot.slane %v2653, 1
      %v2655 = vadd.f32 %v2653, %v2654
      %v2656 = vsel %vm408, %v2565, 0.0
      %v2657 = vrot.slane %v2656, 4
      %v2658 = vadd.f32 %v2656, %v2657
      %v2659 = vrot.slane %v2658, 2
      %v2660 = vadd.f32 %v2658, %v2659
      %v2661 = vrot.slane %v2660, 1
      %v2662 = vadd.f32 %v2660, %v2661
      %v2663 = vsel %vm408, %v2567, 0.0
      %v2664 = vrot.slane %v2663, 4
      %v2665 = vadd.f32 %v2663, %v2664
      %v2666 = vrot.slane %v2665, 2
      %v2667 = vadd.f32 %v2665, %v2666
      %v2668 = vrot.slane %v2667, 1
      %v2669 = vadd.f32 %v2667, %v2668
      %v2670 = vsel %vm408, %v2569, 0.0
      %v2671 = vrot.slane %v2670, 4
      %v2672 = vadd.f32 %v2670, %v2671
      %v2673 = vrot.slane %v2672, 2
      %v2674 = vadd.f32 %v2672, %v2673
      %v2675 = vrot.slane %v2674, 1
      %v2676 = vadd.f32 %v2674, %v2675
      %v2677 = vsel %vm408, %v2571, 0.0
      %v2678 = vrot.slane %v2677, 4
      %v2679 = vadd.f32 %v2677, %v2678
      %v2680 = vrot.slane %v2679, 2
      %v2681 = vadd.f32 %v2679, %v2680
      %v2682 = vrot.slane %v2681, 1
      %v2683 = vadd.f32 %v2681, %v2682
      %v2684 = vrcp.pop %v2578
      %v2685 = vrcp.pop %v2585
      %v2686 = vrcp.pop %v2592
      %v2687 = vrcp.pop %v2599
      %v2688 = vrcp.pop %v2606
      %v2689 = vrcp.pop %v2613
      %v2690 = vrcp.pop %v2620
      %v2691 = vrcp.pop %v2627
      %v2692 = vrcp.pop %v2634
      %v2693 = vrcp.pop %v2641
      %v2694 = vrcp.pop %v2648
      %v2695 = vrcp.pop %v2655
      %v2696 = vrcp.pop %v2662
      %v2697 = vrcp.pop %v2669
      %v2698 = vrcp.pop %v2676
      %v2699 = vrcp.pop %v2683
      %v2700 = vmul.f32 %v2541, %v2684
      %v2701 = vmul.f32 %v2543, %v2685
      %v2702 = vmul.f32 %v2545, %v2686
      %v2703 = vmul.f32 %v2547, %v2687
      %v2704 = vmul.f32 %v2549, %v2688
      %v2705 = vmul.f32 %v2551, %v2689
      %v2706 = vmul.f32 %v2553, %v2690
      %v2707 = vmul.f32 %v2555, %v2691
      %v2708 = vmul.f32 %v2557, %v2692
      %v2709 = vmul.f32 %v2559, %v2693
      %v2710 = vmul.f32 %v2561, %v2694
      %v2711 = vmul.f32 %v2563, %v2695
      %v2712 = vmul.f32 %v2565, %v2696
      %v2713 = vmul.f32 %v2567, %v2697
      %v2714 = vmul.f32 %v2569, %v2698
      %v2715 = vmul.f32 %v2571, %v2699
      %v2717 = vsel %vm408, %v2700, 0
      %2719 = vmatprep.subr.mxu0 0.0
      %2720 = vmatpush1.msra.mxu0 %v988
      %2721 = vmatprep.subr.mxu0 0.0
      %2722 = vmatpush1.msra.mxu0 %v1004
      %2723 = vmatprep.subr.mxu0 0.0
      %2724 = vmatpush1.msra.mxu0 %v1020
      %2725 = vmatprep.subr.mxu0 0.0
      %2726 = vmatpush1.msra.mxu0 %v1036
      %2727 = vmatprep.subr.mxu0 0.0
      %2728 = vmatpush1.msra.mxu0 0.0
      %2729 = vmatprep.subr.mxu0 0.0
      %2730 = vmatpush1.msra.mxu0 0.0
      %2731 = vmatprep.subr.mxu0 0.0
      %2732 = vmatpush1.msra.mxu0 0.0
      %2733 = vmatprep.subr.mxu0 0.0
      %2734 = vmatpush1.msra.mxu0 0.0
      %2735 = vmatprep.subr.mxu0 0.0
      %2736 = vmatpush1.msra.mxu0 0.0
      %2737 = vmatprep.subr.mxu0 0.0
      %2738 = vmatpush1.msra.mxu0 0.0
      %2739 = vmatprep.subr.mxu0 0.0
      %2740 = vmatpush1.msra.mxu0 0.0
      %2741 = vmatprep.subr.mxu0 0.0
      %2742 = vmatpush1.msra.mxu0 0.0
      %2743 = vmatprep.subr.mxu0 0.0
      %2744 = vmatpush1.msra.mxu0 0.0
      %2745 = vmatprep.subr.mxu0 0.0
      %2746 = vmatpush1.msra.mxu0 0.0
      %2747 = vmatprep.subr.mxu0 0.0
      %2748 = vmatpush1.msra.mxu0 0.0
      %2749 = vmatprep.subr.mxu0 0.0
      %2750 = vmatpush1.msra.mxu0 0.0
      %2751 = vmatprep.subr.mxu0 0.0
      %2752 = vmatpush1.msra.mxu0 0.0
      %2753 = vmatprep.subr.mxu0 0.0
      %2754 = vmatpush1.msra.mxu0 0.0
      %2755 = vmatprep.subr.mxu0 0.0
      %2756 = vmatpush1.msra.mxu0 0.0
      %2757 = vmatprep.subr.mxu0 0.0
      %2758 = vmatpush1.msra.mxu0 0.0
      %2759 = vmatprep.subr.mxu0 0.0
      %2760 = vmatpush1.msra.mxu0 0.0
      %2761 = vmatprep.subr.mxu0 0.0
      %2762 = vmatpush1.msra.mxu0 0.0
      %2763 = vmatprep.subr.mxu0 0.0
      %2764 = vmatpush1.msra.mxu0 0.0
      %2765 = vmatprep.subr.mxu0 0.0
      %2766 = vmatpush1.msra.mxu0 0.0
      %2767 = vmatprep.subr.mxu0 0.0
      %2768 = vmatpush1.msra.mxu0 0.0
      %2769 = vmatprep.subr.mxu0 0.0
      %2770 = vmatpush1.msra.mxu0 0.0
      %2771 = vmatprep.subr.mxu0 0.0
      %2772 = vmatpush1.msra.mxu0 0.0
      %2773 = vmatprep.subr.mxu0 0.0
      %2774 = vmatpush1.msra.mxu0 0.0
      %2775 = vmatprep.subr.mxu0 0.0
      %2776 = vmatpush1.msra.mxu0 0.0
      %2777 = vmatprep.subr.mxu0 0.0
      %2778 = vmatpush1.msra.mxu0 0.0
      %2779 = vmatprep.subr.mxu0 0.0
      %2780 = vmatpush1.msra.mxu0 0.0
      %2781 = vmatprep.subr.mxu0 0.0
      %2782 = vmatpush1.msra.mxu0 0.0
      %2783 = vmatprep.mubr.f32.mxu0 0.0
      %2784 = vmatmul.mubr.f32.gmra.mrb[0].mxu0 %v2717
      %v2785 = vpop.f32.mrb[0].mxu0
      %v2786 = vadd.f32 0.0, %v2785
      %v2787 = vpop.f32.mrb[0].mxu0
      %2788 = vdwg.mxu0
      %v2790 = vsel %vm408, %v2701, 0
      %2792 = vmatprep.subr.mxu0 0.0
      %2793 = vmatpush1.msra.mxu0 %v989
      %2794 = vmatprep.subr.mxu0 0.0
      %2795 = vmatpush1.msra.mxu0 %v1005
      %2796 = vmatprep.subr.mxu0 0.0
      %2797 = vmatpush1.msra.mxu0 %v1021
      %2798 = vmatprep.subr.mxu0 0.0
      %2799 = vmatpush1.msra.mxu0 %v1037
      %2800 = vmatprep.subr.mxu0 0.0
      %2801 = vmatpush1.msra.mxu0 0.0
      %2802 = vmatprep.subr.mxu0 0.0
      %2803 = vmatpush1.msra.mxu0 0.0
      %2804 = vmatprep.subr.mxu0 0.0
      %2805 = vmatpush1.msra.mxu0 0.0
      %2806 = vmatprep.subr.mxu0 0.0
      %2807 = vmatpush1.msra.mxu0 0.0
      %2808 = vmatprep.subr.mxu0 0.0
      %2809 = vmatpush1.msra.mxu0 0.0
      %2810 = vmatprep.subr.mxu0 0.0
      %2811 = vmatpush1.msra.mxu0 0.0
      %2812 = vmatprep.subr.mxu0 0.0
      %2813 = vmatpush1.msra.mxu0 0.0
      %2814 = vmatprep.subr.mxu0 0.0
      %2815 = vmatpush1.msra.mxu0 0.0
      %2816 = vmatprep.subr.mxu0 0.0
      %2817 = vmatpush1.msra.mxu0 0.0
      %2818 = vmatprep.subr.mxu0 0.0
      %2819 = vmatpush1.msra.mxu0 0.0
      %2820 = vmatprep.subr.mxu0 0.0
      %2821 = vmatpush1.msra.mxu0 0.0
      %2822 = vmatprep.subr.mxu0 0.0
      %2823 = vmatpush1.msra.mxu0 0.0
      %2824 = vmatprep.subr.mxu0 0.0
      %2825 = vmatpush1.msra.mxu0 0.0
      %2826 = vmatprep.subr.mxu0 0.0
      %2827 = vmatpush1.msra.mxu0 0.0
      %2828 = vmatprep.subr.mxu0 0.0
      %2829 = vmatpush1.msra.mxu0 0.0
      %2830 = vmatprep.subr.mxu0 0.0
      %2831 = vmatpush1.msra.mxu0 0.0
      %2832 = vmatprep.subr.mxu0 0.0
      %2833 = vmatpush1.msra.mxu0 0.0
      %2834 = vmatprep.subr.mxu0 0.0
      %2835 = vmatpush1.msra.mxu0 0.0
      %2836 = vmatprep.subr.mxu0 0.0
      %2837 = vmatpush1.msra.mxu0 0.0
      %2838 = vmatprep.subr.mxu0 0.0
      %2839 = vmatpush1.msra.mxu0 0.0
      %2840 = vmatprep.subr.mxu0 0.0
      %2841 = vmatpush1.msra.mxu0 0.0
      %2842 = vmatprep.subr.mxu0 0.0
      %2843 = vmatpush1.msra.mxu0 0.0
      %2844 = vmatprep.subr.mxu0 0.0
      %2845 = vmatpush1.msra.mxu0 0.0
      %2846 = vmatprep.subr.mxu0 0.0
      %2847 = vmatpush1.msra.mxu0 0.0
      %2848 = vmatprep.subr.mxu0 0.0
      %2849 = vmatpush1.msra.mxu0 0.0
      %2850 = vmatprep.subr.mxu0 0.0
      %2851 = vmatpush1.msra.mxu0 0.0
      %2852 = vmatprep.subr.mxu0 0.0
      %2853 = vmatpush1.msra.mxu0 0.0
      %2854 = vmatprep.subr.mxu0 0.0
      %2855 = vmatpush1.msra.mxu0 0.0
      %2856 = vmatprep.mubr.f32.mxu0 0.0
      %2857 = vmatmul.mubr.f32.gmra.mrb[0].mxu0 %v2790
      %v2858 = vpop.f32.mrb[0].mxu0
      %v2859 = vadd.f32 0.0, %v2858
      %v2860 = vpop.f32.mrb[0].mxu0
      %2861 = vdwg.mxu0
      %v2863 = vsel %vm408, %v2702, 0
      %2865 = vmatprep.subr.mxu0 0.0
      %2866 = vmatpush1.msra.mxu0 %v990
      %2867 = vmatprep.subr.mxu0 0.0
      %2868 = vmatpush1.msra.mxu0 %v1006
      %2869 = vmatprep.subr.mxu0 0.0
      %2870 = vmatpush1.msra.mxu0 %v1022
      %2871 = vmatprep.subr.mxu0 0.0
      %2872 = vmatpush1.msra.mxu0 %v1038
      %2873 = vmatprep.subr.mxu0 0.0
      %2874 = vmatpush1.msra.mxu0 0.0
      %2875 = vmatprep.subr.mxu0 0.0
      %2876 = vmatpush1.msra.mxu0 0.0
      %2877 = vmatprep.subr.mxu0 0.0
      %2878 = vmatpush1.msra.mxu0 0.0
      %2879 = vmatprep.subr.mxu0 0.0
      %2880 = vmatpush1.msra.mxu0 0.0
      %2881 = vmatprep.subr.mxu0 0.0
      %2882 = vmatpush1.msra.mxu0 0.0
      %2883 = vmatprep.subr.mxu0 0.0
      %2884 = vmatpush1.msra.mxu0 0.0
      %2885 = vmatprep.subr.mxu0 0.0
      %2886 = vmatpush1.msra.mxu0 0.0
      %2887 = vmatprep.subr.mxu0 0.0
      %2888 = vmatpush1.msra.mxu0 0.0
      %2889 = vmatprep.subr.mxu0 0.0
      %2890 = vmatpush1.msra.mxu0 0.0
      %2891 = vmatprep.subr.mxu0 0.0
      %2892 = vmatpush1.msra.mxu0 0.0
      %2893 = vmatprep.subr.mxu0 0.0
      %2894 = vmatpush1.msra.mxu0 0.0
      %2895 = vmatprep.subr.mxu0 0.0
      %2896 = vmatpush1.msra.mxu0 0.0
      %2897 = vmatprep.subr.mxu0 0.0
      %2898 = vmatpush1.msra.mxu0 0.0
      %2899 = vmatprep.subr.mxu0 0.0
      %2900 = vmatpush1.msra.mxu0 0.0
      %2901 = vmatprep.subr.mxu0 0.0
      %2902 = vmatpush1.msra.mxu0 0.0
      %2903 = vmatprep.subr.mxu0 0.0
      %2904 = vmatpush1.msra.mxu0 0.0
      %2905 = vmatprep.subr.mxu0 0.0
      %2906 = vmatpush1.msra.mxu0 0.0
      %2907 = vmatprep.subr.mxu0 0.0
      %2908 = vmatpush1.msra.mxu0 0.0
      %2909 = vmatprep.subr.mxu0 0.0
      %2910 = vmatpush1.msra.mxu0 0.0
      %2911 = vmatprep.subr.mxu0 0.0
      %2912 = vmatpush1.msra.mxu0 0.0
      %2913 = vmatprep.subr.mxu0 0.0
      %2914 = vmatpush1.msra.mxu0 0.0
      %2915 = vmatprep.subr.mxu0 0.0
      %2916 = vmatpush1.msra.mxu0 0.0
      %2917 = vmatprep.subr.mxu0 0.0
      %2918 = vmatpush1.msra.mxu0 0.0
      %2919 = vmatprep.subr.mxu0 0.0
      %2920 = vmatpush1.msra.mxu0 0.0
      %2921 = vmatprep.subr.mxu0 0.0
      %2922 = vmatpush1.msra.mxu0 0.0
      %2923 = vmatprep.subr.mxu0 0.0
      %2924 = vmatpush1.msra.mxu0 0.0
      %2925 = vmatprep.subr.mxu0 0.0
      %2926 = vmatpush1.msra.mxu0 0.0
      %2927 = vmatprep.subr.mxu0 0.0
      %2928 = vmatpush1.msra.mxu0 0.0
      %2929 = vmatprep.mubr.f32.mxu0 0.0
      %2930 = vmatmul.mubr.f32.gmra.mrb[0].mxu0 %v2863
      %v2931 = vpop.f32.mrb[0].mxu0
      %v2932 = vadd.f32 0.0, %v2931
      %v2933 = vpop.f32.mrb[0].mxu0
      %2934 = vdwg.mxu0
      %v2936 = vsel %vm408, %v2703, 0
      %2938 = vmatprep.subr.mxu0 0.0
      %2939 = vmatpush1.msra.mxu0 %v991
      %2940 = vmatprep.subr.mxu0 0.0
      %2941 = vmatpush1.msra.mxu0 %v1007
      %2942 = vmatprep.subr.mxu0 0.0
      %2943 = vmatpush1.msra.mxu0 %v1023
      %2944 = vmatprep.subr.mxu0 0.0
      %2945 = vmatpush1.msra.mxu0 %v1039
      %2946 = vmatprep.subr.mxu0 0.0
      %2947 = vmatpush1.msra.mxu0 0.0
      %2948 = vmatprep.subr.mxu0 0.0
      %2949 = vmatpush1.msra.mxu0 0.0
      %2950 = vmatprep.subr.mxu0 0.0
      %2951 = vmatpush1.msra.mxu0 0.0
      %2952 = vmatprep.subr.mxu0 0.0
      %2953 = vmatpush1.msra.mxu0 0.0
      %2954 = vmatprep.subr.mxu0 0.0
      %2955 = vmatpush1.msra.mxu0 0.0
      %2956 = vmatprep.subr.mxu0 0.0
      %2957 = vmatpush1.msra.mxu0 0.0
      %2958 = vmatprep.subr.mxu0 0.0
      %2959 = vmatpush1.msra.mxu0 0.0
      %2960 = vmatprep.subr.mxu0 0.0
      %2961 = vmatpush1.msra.mxu0 0.0
      %2962 = vmatprep.subr.mxu0 0.0
      %2963 = vmatpush1.msra.mxu0 0.0
      %2964 = vmatprep.subr.mxu0 0.0
      %2965 = vmatpush1.msra.mxu0 0.0
      %2966 = vmatprep.subr.mxu0 0.0
      %2967 = vmatpush1.msra.mxu0 0.0
      %2968 = vmatprep.subr.mxu0 0.0
      %2969 = vmatpush1.msra.mxu0 0.0
      %2970 = vmatprep.subr.mxu0 0.0
      %2971 = vmatpush1.msra.mxu0 0.0
      %2972 = vmatprep.subr.mxu0 0.0
      %2973 = vmatpush1.msra.mxu0 0.0
      %2974 = vmatprep.subr.mxu0 0.0
      %2975 = vmatpush1.msra.mxu0 0.0
      %2976 = vmatprep.subr.mxu0 0.0
      %2977 = vmatpush1.msra.mxu0 0.0
      %2978 = vmatprep.subr.mxu0 0.0
      %2979 = vmatpush1.msra.mxu0 0.0
      %2980 = vmatprep.subr.mxu0 0.0
      %2981 = vmatpush1.msra.mxu0 0.0
      %2982 = vmatprep.subr.mxu0 0.0
      %2983 = vmatpush1.msra.mxu0 0.0
      %2984 = vmatprep.subr.mxu0 0.0
      %2985 = vmatpush1.msra.mxu0 0.0
      %2986 = vmatprep.subr.mxu0 0.0
      %2987 = vmatpush1.msra.mxu0 0.0
      %2988 = vmatprep.subr.mxu0 0.0
      %2989 = vmatpush1.msra.mxu0 0.0
      %2990 = vmatprep.subr.mxu0 0.0
      %2991 = vmatpush1.msra.mxu0 0.0
      %2992 = vmatprep.subr.mxu0 0.0
      %2993 = vmatpush1.msra.mxu0 0.0
      %2994 = vmatprep.subr.mxu0 0.0
      %2995 = vmatpush1.msra.mxu0 0.0
      %2996 = vmatprep.subr.mxu0 0.0
      %2997 = vmatpush1.msra.mxu0 0.0
      %2998 = vmatprep.subr.mxu0 0.0
      %2999 = vmatpush1.msra.mxu0 0.0
      %3000 = vmatprep.subr.mxu0 0.0
      %3001 = vmatpush1.msra.mxu0 0.0
      %3002 = vmatprep.mubr.f32.mxu0 0.0
      %3003 = vmatmul.mubr.f32.gmra.mrb[0].mxu0 %v2936
      %v3004 = vpop.f32.mrb[0].mxu0
      %v3005 = vadd.f32 0.0, %v3004
      %v3006 = vpop.f32.mrb[0].mxu0
      %3007 = vdwg.mxu0
      %v3009 = vsel %vm408, %v2704, 0
      %3011 = vmatprep.subr.mxu0 0.0
      %3012 = vmatpush1.msra.mxu0 %v992
      %3013 = vmatprep.subr.mxu0 0.0
      %3014 = vmatpush1.msra.mxu0 %v1008
      %3015 = vmatprep.subr.mxu0 0.0
      %3016 = vmatpush1.msra.mxu0 %v1024
      %3017 = vmatprep.subr.mxu0 0.0
      %3018 = vmatpush1.msra.mxu0 %v1040
      %3019 = vmatprep.subr.mxu0 0.0
      %3020 = vmatpush1.msra.mxu0 0.0
      %3021 = vmatprep.subr.mxu0 0.0
      %3022 = vmatpush1.msra.mxu0 0.0
      %3023 = vmatprep.subr.mxu0 0.0
      %3024 = vmatpush1.msra.mxu0 0.0
      %3025 = vmatprep.subr.mxu0 0.0
      %3026 = vmatpush1.msra.mxu0 0.0
      %3027 = vmatprep.subr.mxu0 0.0
      %3028 = vmatpush1.msra.mxu0 0.0
      %3029 = vmatprep.subr.mxu0 0.0
      %3030 = vmatpush1.msra.mxu0 0.0
      %3031 = vmatprep.subr.mxu0 0.0
      %3032 = vmatpush1.msra.mxu0 0.0
      %3033 = vmatprep.subr.mxu0 0.0
      %3034 = vmatpush1.msra.mxu0 0.0
      %3035 = vmatprep.subr.mxu0 0.0
      %3036 = vmatpush1.msra.mxu0 0.0
      %3037 = vmatprep.subr.mxu0 0.0
      %3038 = vmatpush1.msra.mxu0 0.0
      %3039 = vmatprep.subr.mxu0 0.0
      %3040 = vmatpush1.msra.mxu0 0.0
      %3041 = vmatprep.subr.mxu0 0.0
      %3042 = vmatpush1.msra.mxu0 0.0
      %3043 = vmatprep.subr.mxu0 0.0
      %3044 = vmatpush1.msra.mxu0 0.0
      %3045 = vmatprep.subr.mxu0 0.0
      %3046 = vmatpush1.msra.mxu0 0.0
      %3047 = vmatprep.subr.mxu0 0.0
      %3048 = vmatpush1.msra.mxu0 0.0
      %3049 = vmatprep.subr.mxu0 0.0
      %3050 = vmatpush1.msra.mxu0 0.0
      %3051 = vmatprep.subr.mxu0 0.0
      %3052 = vmatpush1.msra.mxu0 0.0
      %3053 = vmatprep.subr.mxu0 0.0
      %3054 = vmatpush1.msra.mxu0 0.0
      %3055 = vmatprep.subr.mxu0 0.0
      %3056 = vmatpush1.msra.mxu0 0.0
      %3057 = vmatprep.subr.mxu0 0.0
      %3058 = vmatpush1.msra.mxu0 0.0
      %3059 = vmatprep.subr.mxu0 0.0
      %3060 = vmatpush1.msra.mxu0 0.0
      %3061 = vmatprep.subr.mxu0 0.0
      %3062 = vmatpush1.msra.mxu0 0.0
      %3063 = vmatprep.subr.mxu0 0.0
      %3064 = vmatpush1.msra.mxu0 0.0
      %3065 = vmatprep.subr.mxu0 0.0
      %3066 = vmatpush1.msra.mxu0 0.0
      %3067 = vmatprep.subr.mxu0 0.0
      %3068 = vmatpush1.msra.mxu0 0.0
      %3069 = vmatprep.subr.mxu0 0.0
      %3070 = vmatpush1.msra.mxu0 0.0
      %3071 = vmatprep.subr.mxu0 0.0
      %3072 = vmatpush1.msra.mxu0 0.0
      %3073 = vmatprep.subr.mxu0 0.0
      %3074 = vmatpush1.msra.mxu0 0.0
      %3075 = vmatprep.mubr.f32.mxu0 0.0
      %3076 = vmatmul.mubr.f32.gmra.mrb[0].mxu0 %v3009
      %v3077 = vpop.f32.mrb[0].mxu0
      %v3078 = vadd.f32 0.0, %v3077
      %v3079 = vpop.f32.mrb[0].mxu0
      %3080 = vdwg.mxu0
      %v3082 = vsel %vm408, %v2705, 0
      %3084 = vmatprep.subr.mxu0 0.0
      %3085 = vmatpush1.msra.mxu0 %v993
      %3086 = vmatprep.subr.mxu0 0.0
      %3087 = vmatpush1.msra.mxu0 %v1009
      %3088 = vmatprep.subr.mxu0 0.0
      %3089 = vmatpush1.msra.mxu0 %v1025
      %3090 = vmatprep.subr.mxu0 0.0
      %3091 = vmatpush1.msra.mxu0 %v1041
      %3092 = vmatprep.subr.mxu0 0.0
      %3093 = vmatpush1.msra.mxu0 0.0
      %3094 = vmatprep.subr.mxu0 0.0
      %3095 = vmatpush1.msra.mxu0 0.0
      %3096 = vmatprep.subr.mxu0 0.0
      %3097 = vmatpush1.msra.mxu0 0.0
      %3098 = vmatprep.subr.mxu0 0.0
      %3099 = vmatpush1.msra.mxu0 0.0
      %3100 = vmatprep.subr.mxu0 0.0
      %3101 = vmatpush1.msra.mxu0 0.0
      %3102 = vmatprep.subr.mxu0 0.0
      %3103 = vmatpush1.msra.mxu0 0.0
      %3104 = vmatprep.subr.mxu0 0.0
      %3105 = vmatpush1.msra.mxu0 0.0
      %3106 = vmatprep.subr.mxu0 0.0
      %3107 = vmatpush1.msra.mxu0 0.0
      %3108 = vmatprep.subr.mxu0 0.0
      %3109 = vmatpush1.msra.mxu0 0.0
      %3110 = vmatprep.subr.mxu0 0.0
      %3111 = vmatpush1.msra.mxu0 0.0
      %3112 = vmatprep.subr.mxu0 0.0
      %3113 = vmatpush1.msra.mxu0 0.0
      %3114 = vmatprep.subr.mxu0 0.0
      %3115 = vmatpush1.msra.mxu0 0.0
      %3116 = vmatprep.subr.mxu0 0.0
      %3117 = vmatpush1.msra.mxu0 0.0
      %3118 = vmatprep.subr.mxu0 0.0
      %3119 = vmatpush1.msra.mxu0 0.0
      %3120 = vmatprep.subr.mxu0 0.0
      %3121 = vmatpush1.msra.mxu0 0.0
      %3122 = vmatprep.subr.mxu0 0.0
      %3123 = vmatpush1.msra.mxu0 0.0
      %3124 = vmatprep.subr.mxu0 0.0
      %3125 = vmatpush1.msra.mxu0 0.0
      %3126 = vmatprep.subr.mxu0 0.0
      %3127 = vmatpush1.msra.mxu0 0.0
      %3128 = vmatprep.subr.mxu0 0.0
      %3129 = vmatpush1.msra.mxu0 0.0
      %3130 = vmatprep.subr.mxu0 0.0
      %3131 = vmatpush1.msra.mxu0 0.0
      %3132 = vmatprep.subr.mxu0 0.0
      %3133 = vmatpush1.msra.mxu0 0.0
      %3134 = vmatprep.subr.mxu0 0.0
      %3135 = vmatpush1.msra.mxu0 0.0
      %3136 = vmatprep.subr.mxu0 0.0
      %3137 = vmatpush1.msra.mxu0 0.0
      %3138 = vmatprep.subr.mxu0 0.0
      %3139 = vmatpush1.msra.mxu0 0.0
      %3140 = vmatprep.subr.mxu0 0.0
      %3141 = vmatpush1.msra.mxu0 0.0
      %3142 = vmatprep.subr.mxu0 0.0
      %3143 = vmatpush1.msra.mxu0 0.0
      %3144 = vmatprep.subr.mxu0 0.0
      %3145 = vmatpush1.msra.mxu0 0.0
      %3146 = vmatprep.subr.mxu0 0.0
      %3147 = vmatpush1.msra.mxu0 0.0
      %3148 = vmatprep.mubr.f32.mxu0 0.0
      %3149 = vmatmul.mubr.f32.gmra.mrb[0].mxu0 %v3082
      %v3150 = vpop.f32.mrb[0].mxu0
      %v3151 = vadd.f32 0.0, %v3150
      %v3152 = vpop.f32.mrb[0].mxu0
      %3153 = vdwg.mxu0
      %v3155 = vsel %vm408, %v2706, 0
      %3157 = vmatprep.subr.mxu0 0.0
      %3158 = vmatpush1.msra.mxu0 %v994
      %3159 = vmatprep.subr.mxu0 0.0
      %3160 = vmatpush1.msra.mxu0 %v1010
      %3161 = vmatprep.subr.mxu0 0.0
      %3162 = vmatpush1.msra.mxu0 %v1026
      %3163 = vmatprep.subr.mxu0 0.0
      %3164 = vmatpush1.msra.mxu0 %v1042
      %3165 = vmatprep.subr.mxu0 0.0
      %3166 = vmatpush1.msra.mxu0 0.0
      %3167 = vmatprep.subr.mxu0 0.0
      %3168 = vmatpush1.msra.mxu0 0.0
      %3169 = vmatprep.subr.mxu0 0.0
      %3170 = vmatpush1.msra.mxu0 0.0
      %3171 = vmatprep.subr.mxu0 0.0
      %3172 = vmatpush1.msra.mxu0 0.0
      %3173 = vmatprep.subr.mxu0 0.0
      %3174 = vmatpush1.msra.mxu0 0.0
      %3175 = vmatprep.subr.mxu0 0.0
      %3176 = vmatpush1.msra.mxu0 0.0
      %3177 = vmatprep.subr.mxu0 0.0
      %3178 = vmatpush1.msra.mxu0 0.0
      %3179 = vmatprep.subr.mxu0 0.0
      %3180 = vmatpush1.msra.mxu0 0.0
      %3181 = vmatprep.subr.mxu0 0.0
      %3182 = vmatpush1.msra.mxu0 0.0
      %3183 = vmatprep.subr.mxu0 0.0
      %3184 = vmatpush1.msra.mxu0 0.0
      %3185 = vmatprep.subr.mxu0 0.0
      %3186 = vmatpush1.msra.mxu0 0.0
      %3187 = vmatprep.subr.mxu0 0.0
      %3188 = vmatpush1.msra.mxu0 0.0
      %3189 = vmatprep.subr.mxu0 0.0
      %3190 = vmatpush1.msra.mxu0 0.0
      %3191 = vmatprep.subr.mxu0 0.0
      %3192 = vmatpush1.msra.mxu0 0.0
      %3193 = vmatprep.subr.mxu0 0.0
      %3194 = vmatpush1.msra.mxu0 0.0
      %3195 = vmatprep.subr.mxu0 0.0
      %3196 = vmatpush1.msra.mxu0 0.0
      %3197 = vmatprep.subr.mxu0 0.0
      %3198 = vmatpush1.msra.mxu0 0.0
      %3199 = vmatprep.subr.mxu0 0.0
      %3200 = vmatpush1.msra.mxu0 0.0
      %3201 = vmatprep.subr.mxu0 0.0
      %3202 = vmatpush1.msra.mxu0 0.0
      %3203 = vmatprep.subr.mxu0 0.0
      %3204 = vmatpush1.msra.mxu0 0.0
      %3205 = vmatprep.subr.mxu0 0.0
      %3206 = vmatpush1.msra.mxu0 0.0
      %3207 = vmatprep.subr.mxu0 0.0
      %3208 = vmatpush1.msra.mxu0 0.0
      %3209 = vmatprep.subr.mxu0 0.0
      %3210 = vmatpush1.msra.mxu0 0.0
      %3211 = vmatprep.subr.mxu0 0.0
      %3212 = vmatpush1.msra.mxu0 0.0
      %3213 = vmatprep.subr.mxu0 0.0
      %3214 = vmatpush1.msra.mxu0 0.0
      %3215 = vmatprep.subr.mxu0 0.0
      %3216 = vmatpush1.msra.mxu0 0.0
      %3217 = vmatprep.subr.mxu0 0.0
      %3218 = vmatpush1.msra.mxu0 0.0
      %3219 = vmatprep.subr.mxu0 0.0
      %3220 = vmatpush1.msra.mxu0 0.0
      %3221 = vmatprep.mubr.f32.mxu0 0.0
      %3222 = vmatmul.mubr.f32.gmra.mrb[0].mxu0 %v3155
      %v3223 = vpop.f32.mrb[0].mxu0
      %v3224 = vadd.f32 0.0, %v3223
      %v3225 = vpop.f32.mrb[0].mxu0
      %3226 = vdwg.mxu0
      %v3228 = vsel %vm408, %v2707, 0
      %3230 = vmatprep.subr.mxu0 0.0
      %3231 = vmatpush1.msra.mxu0 %v995
      %3232 = vmatprep.subr.mxu0 0.0
      %3233 = vmatpush1.msra.mxu0 %v1011
      %3234 = vmatprep.subr.mxu0 0.0
      %3235 = vmatpush1.msra.mxu0 %v1027
      %3236 = vmatprep.subr.mxu0 0.0
      %3237 = vmatpush1.msra.mxu0 %v1043
      %3238 = vmatprep.subr.mxu0 0.0
      %3239 = vmatpush1.msra.mxu0 0.0
      %3240 = vmatprep.subr.mxu0 0.0
      %3241 = vmatpush1.msra.mxu0 0.0
      %3242 = vmatprep.subr.mxu0 0.0
      %3243 = vmatpush1.msra.mxu0 0.0
      %3244 = vmatprep.subr.mxu0 0.0
      %3245 = vmatpush1.msra.mxu0 0.0
      %3246 = vmatprep.subr.mxu0 0.0
      %3247 = vmatpush1.msra.mxu0 0.0
      %3248 = vmatprep.subr.mxu0 0.0
      %3249 = vmatpush1.msra.mxu0 0.0
      %3250 = vmatprep.subr.mxu0 0.0
      %3251 = vmatpush1.msra.mxu0 0.0
      %3252 = vmatprep.subr.mxu0 0.0
      %3253 = vmatpush1.msra.mxu0 0.0
      %3254 = vmatprep.subr.mxu0 0.0
      %3255 = vmatpush1.msra.mxu0 0.0
      %3256 = vmatprep.subr.mxu0 0.0
      %3257 = vmatpush1.msra.mxu0 0.0
      %3258 = vmatprep.subr.mxu0 0.0
      %3259 = vmatpush1.msra.mxu0 0.0
      %3260 = vmatprep.subr.mxu0 0.0
      %3261 = vmatpush1.msra.mxu0 0.0
      %3262 = vmatprep.subr.mxu0 0.0
      %3263 = vmatpush1.msra.mxu0 0.0
      %3264 = vmatprep.subr.mxu0 0.0
      %3265 = vmatpush1.msra.mxu0 0.0
      %3266 = vmatprep.subr.mxu0 0.0
      %3267 = vmatpush1.msra.mxu0 0.0
      %3268 = vmatprep.subr.mxu0 0.0
      %3269 = vmatpush1.msra.mxu0 0.0
      %3270 = vmatprep.subr.mxu0 0.0
      %3271 = vmatpush1.msra.mxu0 0.0
      %3272 = vmatprep.subr.mxu0 0.0
      %3273 = vmatpush1.msra.mxu0 0.0
      %3274 = vmatprep.subr.mxu0 0.0
      %3275 = vmatpush1.msra.mxu0 0.0
      %3276 = vmatprep.subr.mxu0 0.0
      %3277 = vmatpush1.msra.mxu0 0.0
      %3278 = vmatprep.subr.mxu0 0.0
      %3279 = vmatpush1.msra.mxu0 0.0
      %3280 = vmatprep.subr.mxu0 0.0
      %3281 = vmatpush1.msra.mxu0 0.0
      %3282 = vmatprep.subr.mxu0 0.0
      %3283 = vmatpush1.msra.mxu0 0.0
      %3284 = vmatprep.subr.mxu0 0.0
      %3285 = vmatpush1.msra.mxu0 0.0
      %3286 = vmatprep.subr.mxu0 0.0
      %3287 = vmatpush1.msra.mxu0 0.0
      %3288 = vmatprep.subr.mxu0 0.0
      %3289 = vmatpush1.msra.mxu0 0.0
      %3290 = vmatprep.subr.mxu0 0.0
      %3291 = vmatpush1.msra.mxu0 0.0
      %3292 = vmatprep.subr.mxu0 0.0
      %3293 = vmatpush1.msra.mxu0 0.0
      %3294 = vmatprep.mubr.f32.mxu0 0.0
      %3295 = vmatmul.mubr.f32.gmra.mrb[0].mxu0 %v3228
      %v3296 = vpop.f32.mrb[0].mxu0
      %v3297 = vadd.f32 0.0, %v3296
      %v3298 = vpop.f32.mrb[0].mxu0
      %3299 = vdwg.mxu0
      %v3301 = vsel %vm408, %v2708, 0
      %3303 = vmatprep.subr.mxu0 0.0
      %3304 = vmatpush1.msra.mxu0 %v996
      %3305 = vmatprep.subr.mxu0 0.0
      %3306 = vmatpush1.msra.mxu0 %v1012
      %3307 = vmatprep.subr.mxu0 0.0
      %3308 = vmatpush1.msra.mxu0 %v1028
      %3309 = vmatprep.subr.mxu0 0.0
      %3310 = vmatpush1.msra.mxu0 %v1044
      %3311 = vmatprep.subr.mxu0 0.0
      %3312 = vmatpush1.msra.mxu0 0.0
      %3313 = vmatprep.subr.mxu0 0.0
      %3314 = vmatpush1.msra.mxu0 0.0
      %3315 = vmatprep.subr.mxu0 0.0
      %3316 = vmatpush1.msra.mxu0 0.0
      %3317 = vmatprep.subr.mxu0 0.0
      %3318 = vmatpush1.msra.mxu0 0.0
      %3319 = vmatprep.subr.mxu0 0.0
      %3320 = vmatpush1.msra.mxu0 0.0
      %3321 = vmatprep.subr.mxu0 0.0
      %3322 = vmatpush1.msra.mxu0 0.0
      %3323 = vmatprep.subr.mxu0 0.0
      %3324 = vmatpush1.msra.mxu0 0.0
      %3325 = vmatprep.subr.mxu0 0.0
      %3326 = vmatpush1.msra.mxu0 0.0
      %3327 = vmatprep.subr.mxu0 0.0
      %3328 = vmatpush1.msra.mxu0 0.0
      %3329 = vmatprep.subr.mxu0 0.0
      %3330 = vmatpush1.msra.mxu0 0.0
      %3331 = vmatprep.subr.mxu0 0.0
      %3332 = vmatpush1.msra.mxu0 0.0
      %3333 = vmatprep.subr.mxu0 0.0
      %3334 = vmatpush1.msra.mxu0 0.0
      %3335 = vmatprep.subr.mxu0 0.0
      %3336 = vmatpush1.msra.mxu0 0.0
      %3337 = vmatprep.subr.mxu0 0.0
      %3338 = vmatpush1.msra.mxu0 0.0
      %3339 = vmatprep.subr.mxu0 0.0
      %3340 = vmatpush1.msra.mxu0 0.0
      %3341 = vmatprep.subr.mxu0 0.0
      %3342 = vmatpush1.msra.mxu0 0.0
      %3343 = vmatprep.subr.mxu0 0.0
      %3344 = vmatpush1.msra.mxu0 0.0
      %3345 = vmatprep.subr.mxu0 0.0
      %3346 = vmatpush1.msra.mxu0 0.0
      %3347 = vmatprep.subr.mxu0 0.0
      %3348 = vmatpush1.msra.mxu0 0.0
      %3349 = vmatprep.subr.mxu0 0.0
      %3350 = vmatpush1.msra.mxu0 0.0
      %3351 = vmatprep.subr.mxu0 0.0
      %3352 = vmatpush1.msra.mxu0 0.0
      %3353 = vmatprep.subr.mxu0 0.0
      %3354 = vmatpush1.msra.mxu0 0.0
      %3355 = vmatprep.subr.mxu0 0.0
      %3356 = vmatpush1.msra.mxu0 0.0
      %3357 = vmatprep.subr.mxu0 0.0
      %3358 = vmatpush1.msra.mxu0 0.0
      %3359 = vmatprep.subr.mxu0 0.0
      %3360 = vmatpush1.msra.mxu0 0.0
      %3361 = vmatprep.subr.mxu0 0.0
      %3362 = vmatpush1.msra.mxu0 0.0
      %3363 = vmatprep.subr.mxu0 0.0
      %3364 = vmatpush1.msra.mxu0 0.0
      %3365 = vmatprep.subr.mxu0 0.0
      %3366 = vmatpush1.msra.mxu0 0.0
      %3367 = vmatprep.mubr.f32.mxu0 0.0
      %3368 = vmatmul.mubr.f32.gmra.mrb[0].mxu0 %v3301
      %v3369 = vpop.f32.mrb[0].mxu0
      %v3370 = vadd.f32 0.0, %v3369
      %v3371 = vpop.f32.mrb[0].mxu0
      %3372 = vdwg.mxu0
      %v3374 = vsel %vm408, %v2709, 0
      %3376 = vmatprep.subr.mxu0 0.0
      %3377 = vmatpush1.msra.mxu0 %v997
      %3378 = vmatprep.subr.mxu0 0.0
      %3379 = vmatpush1.msra.mxu0 %v1013
      %3380 = vmatprep.subr.mxu0 0.0
      %3381 = vmatpush1.msra.mxu0 %v1029
      %3382 = vmatprep.subr.mxu0 0.0
      %3383 = vmatpush1.msra.mxu0 %v1045
      %3384 = vmatprep.subr.mxu0 0.0
      %3385 = vmatpush1.msra.mxu0 0.0
      %3386 = vmatprep.subr.mxu0 0.0
      %3387 = vmatpush1.msra.mxu0 0.0
      %3388 = vmatprep.subr.mxu0 0.0
      %3389 = vmatpush1.msra.mxu0 0.0
      %3390 = vmatprep.subr.mxu0 0.0
      %3391 = vmatpush1.msra.mxu0 0.0
      %3392 = vmatprep.subr.mxu0 0.0
      %3393 = vmatpush1.msra.mxu0 0.0
      %3394 = vmatprep.subr.mxu0 0.0
      %3395 = vmatpush1.msra.mxu0 0.0
      %3396 = vmatprep.subr.mxu0 0.0
      %3397 = vmatpush1.msra.mxu0 0.0
      %3398 = vmatprep.subr.mxu0 0.0
      %3399 = vmatpush1.msra.mxu0 0.0
      %3400 = vmatprep.subr.mxu0 0.0
      %3401 = vmatpush1.msra.mxu0 0.0
      %3402 = vmatprep.subr.mxu0 0.0
      %3403 = vmatpush1.msra.mxu0 0.0
      %3404 = vmatprep.subr.mxu0 0.0
      %3405 = vmatpush1.msra.mxu0 0.0
      %3406 = vmatprep.subr.mxu0 0.0
      %3407 = vmatpush1.msra.mxu0 0.0
      %3408 = vmatprep.subr.mxu0 0.0
      %3409 = vmatpush1.msra.mxu0 0.0
      %3410 = vmatprep.subr.mxu0 0.0
      %3411 = vmatpush1.msra.mxu0 0.0
      %3412 = vmatprep.subr.mxu0 0.0
      %3413 = vmatpush1.msra.mxu0 0.0
      %3414 = vmatprep.subr.mxu0 0.0
      %3415 = vmatpush1.msra.mxu0 0.0
      %3416 = vmatprep.subr.mxu0 0.0
      %3417 = vmatpush1.msra.mxu0 0.0
      %3418 = vmatprep.subr.mxu0 0.0
      %3419 = vmatpush1.msra.mxu0 0.0
      %3420 = vmatprep.subr.mxu0 0.0
      %3421 = vmatpush1.msra.mxu0 0.0
      %3422 = vmatprep.subr.mxu0 0.0
      %3423 = vmatpush1.msra.mxu0 0.0
      %3424 = vmatprep.subr.mxu0 0.0
      %3425 = vmatpush1.msra.mxu0 0.0
      %3426 = vmatprep.subr.mxu0 0.0
      %3427 = vmatpush1.msra.mxu0 0.0
      %3428 = vmatprep.subr.mxu0 0.0
      %3429 = vmatpush1.msra.mxu0 0.0
      %3430 = vmatprep.subr.mxu0 0.0
      %3431 = vmatpush1.msra.mxu0 0.0
      %3432 = vmatprep.subr.mxu0 0.0
      %3433 = vmatpush1.msra.mxu0 0.0
      %3434 = vmatprep.subr.mxu0 0.0
      %3435 = vmatpush1.msra.mxu0 0.0
      %3436 = vmatprep.subr.mxu0 0.0
      %3437 = vmatpush1.msra.mxu0 0.0
      %3438 = vmatprep.subr.mxu0 0.0
      %3439 = vmatpush1.msra.mxu0 0.0
      %3440 = vmatprep.mubr.f32.mxu0 0.0
      %3441 = vmatmul.mubr.f32.gmra.mrb[0].mxu0 %v3374
      %v3442 = vpop.f32.mrb[0].mxu0
      %v3443 = vadd.f32 0.0, %v3442
      %v3444 = vpop.f32.mrb[0].mxu0
      %3445 = vdwg.mxu0
      %v3447 = vsel %vm408, %v2710, 0
      %3449 = vmatprep.subr.mxu0 0.0
      %3450 = vmatpush1.msra.mxu0 %v998
      %3451 = vmatprep.subr.mxu0 0.0
      %3452 = vmatpush1.msra.mxu0 %v1014
      %3453 = vmatprep.subr.mxu0 0.0
      %3454 = vmatpush1.msra.mxu0 %v1030
      %3455 = vmatprep.subr.mxu0 0.0
      %3456 = vmatpush1.msra.mxu0 %v1046
      %3457 = vmatprep.subr.mxu0 0.0
      %3458 = vmatpush1.msra.mxu0 0.0
      %3459 = vmatprep.subr.mxu0 0.0
      %3460 = vmatpush1.msra.mxu0 0.0
      %3461 = vmatprep.subr.mxu0 0.0
      %3462 = vmatpush1.msra.mxu0 0.0
      %3463 = vmatprep.subr.mxu0 0.0
      %3464 = vmatpush1.msra.mxu0 0.0
      %3465 = vmatprep.subr.mxu0 0.0
      %3466 = vmatpush1.msra.mxu0 0.0
      %3467 = vmatprep.subr.mxu0 0.0
      %3468 = vmatpush1.msra.mxu0 0.0
      %3469 = vmatprep.subr.mxu0 0.0
      %3470 = vmatpush1.msra.mxu0 0.0
      %3471 = vmatprep.subr.mxu0 0.0
      %3472 = vmatpush1.msra.mxu0 0.0
      %3473 = vmatprep.subr.mxu0 0.0
      %3474 = vmatpush1.msra.mxu0 0.0
      %3475 = vmatprep.subr.mxu0 0.0
      %3476 = vmatpush1.msra.mxu0 0.0
      %3477 = vmatprep.subr.mxu0 0.0
      %3478 = vmatpush1.msra.mxu0 0.0
      %3479 = vmatprep.subr.mxu0 0.0
      %3480 = vmatpush1.msra.mxu0 0.0
      %3481 = vmatprep.subr.mxu0 0.0
      %3482 = vmatpush1.msra.mxu0 0.0
      %3483 = vmatprep.subr.mxu0 0.0
      %3484 = vmatpush1.msra.mxu0 0.0
      %3485 = vmatprep.subr.mxu0 0.0
      %3486 = vmatpush1.msra.mxu0 0.0
      %3487 = vmatprep.subr.mxu0 0.0
      %3488 = vmatpush1.msra.mxu0 0.0
      %3489 = vmatprep.subr.mxu0 0.0
      %3490 = vmatpush1.msra.mxu0 0.0
      %3491 = vmatprep.subr.mxu0 0.0
      %3492 = vmatpush1.msra.mxu0 0.0
      %3493 = vmatprep.subr.mxu0 0.0
      %3494 = vmatpush1.msra.mxu0 0.0
      %3495 = vmatprep.subr.mxu0 0.0
      %3496 = vmatpush1.msra.mxu0 0.0
      %3497 = vmatprep.subr.mxu0 0.0
      %3498 = vmatpush1.msra.mxu0 0.0
      %3499 = vmatprep.subr.mxu0 0.0
      %3500 = vmatpush1.msra.mxu0 0.0
      %3501 = vmatprep.subr.mxu0 0.0
      %3502 = vmatpush1.msra.mxu0 0.0
      %3503 = vmatprep.subr.mxu0 0.0
      %3504 = vmatpush1.msra.mxu0 0.0
      %3505 = vmatprep.subr.mxu0 0.0
      %3506 = vmatpush1.msra.mxu0 0.0
      %3507 = vmatprep.subr.mxu0 0.0
      %3508 = vmatpush1.msra.mxu0 0.0
      %3509 = vmatprep.subr.mxu0 0.0
      %3510 = vmatpush1.msra.mxu0 0.0
      %3511 = vmatprep.subr.mxu0 0.0
      %3512 = vmatpush1.msra.mxu0 0.0
      %3513 = vmatprep.mubr.f32.mxu0 0.0
      %3514 = vmatmul.mubr.f32.gmra.mrb[0].mxu0 %v3447
      %v3515 = vpop.f32.mrb[0].mxu0
      %v3516 = vadd.f32 0.0, %v3515
      %v3517 = vpop.f32.mrb[0].mxu0
      %3518 = vdwg.mxu0
      %v3520 = vsel %vm408, %v2711, 0
      %3522 = vmatprep.subr.mxu0 0.0
      %3523 = vmatpush1.msra.mxu0 %v999
      %3524 = vmatprep.subr.mxu0 0.0
      %3525 = vmatpush1.msra.mxu0 %v1015
      %3526 = vmatprep.subr.mxu0 0.0
      %3527 = vmatpush1.msra.mxu0 %v1031
      %3528 = vmatprep.subr.mxu0 0.0
      %3529 = vmatpush1.msra.mxu0 %v1047
      %3530 = vmatprep.subr.mxu0 0.0
      %3531 = vmatpush1.msra.mxu0 0.0
      %3532 = vmatprep.subr.mxu0 0.0
      %3533 = vmatpush1.msra.mxu0 0.0
      %3534 = vmatprep.subr.mxu0 0.0
      %3535 = vmatpush1.msra.mxu0 0.0
      %3536 = vmatprep.subr.mxu0 0.0
      %3537 = vmatpush1.msra.mxu0 0.0
      %3538 = vmatprep.subr.mxu0 0.0
      %3539 = vmatpush1.msra.mxu0 0.0
      %3540 = vmatprep.subr.mxu0 0.0
      %3541 = vmatpush1.msra.mxu0 0.0
      %3542 = vmatprep.subr.mxu0 0.0
      %3543 = vmatpush1.msra.mxu0 0.0
      %3544 = vmatprep.subr.mxu0 0.0
      %3545 = vmatpush1.msra.mxu0 0.0
      %3546 = vmatprep.subr.mxu0 0.0
      %3547 = vmatpush1.msra.mxu0 0.0
      %3548 = vmatprep.subr.mxu0 0.0
      %3549 = vmatpush1.msra.mxu0 0.0
      %3550 = vmatprep.subr.mxu0 0.0
      %3551 = vmatpush1.msra.mxu0 0.0
      %3552 = vmatprep.subr.mxu0 0.0
      %3553 = vmatpush1.msra.mxu0 0.0
      %3554 = vmatprep.subr.mxu0 0.0
      %3555 = vmatpush1.msra.mxu0 0.0
      %3556 = vmatprep.subr.mxu0 0.0
      %3557 = vmatpush1.msra.mxu0 0.0
      %3558 = vmatprep.subr.mxu0 0.0
      %3559 = vmatpush1.msra.mxu0 0.0
      %3560 = vmatprep.subr.mxu0 0.0
      %3561 = vmatpush1.msra.mxu0 0.0
      %3562 = vmatprep.subr.mxu0 0.0
      %3563 = vmatpush1.msra.mxu0 0.0
      %3564 = vmatprep.subr.mxu0 0.0
      %3565 = vmatpush1.msra.mxu0 0.0
      %3566 = vmatprep.subr.mxu0 0.0
      %3567 = vmatpush1.msra.mxu0 0.0
      %3568 = vmatprep.subr.mxu0 0.0
      %3569 = vmatpush1.msra.mxu0 0.0
      %3570 = vmatprep.subr.mxu0 0.0
      %3571 = vmatpush1.msra.mxu0 0.0
      %3572 = vmatprep.subr.mxu0 0.0
      %3573 = vmatpush1.msra.mxu0 0.0
      %3574 = vmatprep.subr.mxu0 0.0
      %3575 = vmatpush1.msra.mxu0 0.0
      %3576 = vmatprep.subr.mxu0 0.0
      %3577 = vmatpush1.msra.mxu0 0.0
      %3578 = vmatprep.subr.mxu0 0.0
      %3579 = vmatpush1.msra.mxu0 0.0
      %3580 = vmatprep.subr.mxu0 0.0
      %3581 = vmatpush1.msra.mxu0 0.0
      %3582 = vmatprep.subr.mxu0 0.0
      %3583 = vmatpush1.msra.mxu0 0.0
      %3584 = vmatprep.subr.mxu0 0.0
      %3585 = vmatpush1.msra.mxu0 0.0
      %3586 = vmatprep.mubr.f32.mxu0 0.0
      %3587 = vmatmul.mubr.f32.gmra.mrb[0].mxu0 %v3520
      %v3588 = vpop.f32.mrb[0].mxu0
      %v3589 = vadd.f32 0.0, %v3588
      %v3590 = vpop.f32.mrb[0].mxu0
      %3591 = vdwg.mxu0
      %v3593 = vsel %vm408, %v2712, 0
      %3595 = vmatprep.subr.mxu0 0.0
      %3596 = vmatpush1.msra.mxu0 %v1000
      %3597 = vmatprep.subr.mxu0 0.0
      %3598 = vmatpush1.msra.mxu0 %v1016
      %3599 = vmatprep.subr.mxu0 0.0
      %3600 = vmatpush1.msra.mxu0 %v1032
      %3601 = vmatprep.subr.mxu0 0.0
      %3602 = vmatpush1.msra.mxu0 %v1048
      %3603 = vmatprep.subr.mxu0 0.0
      %3604 = vmatpush1.msra.mxu0 0.0
      %3605 = vmatprep.subr.mxu0 0.0
      %3606 = vmatpush1.msra.mxu0 0.0
      %3607 = vmatprep.subr.mxu0 0.0
      %3608 = vmatpush1.msra.mxu0 0.0
      %3609 = vmatprep.subr.mxu0 0.0
      %3610 = vmatpush1.msra.mxu0 0.0
      %3611 = vmatprep.subr.mxu0 0.0
      %3612 = vmatpush1.msra.mxu0 0.0
      %3613 = vmatprep.subr.mxu0 0.0
      %3614 = vmatpush1.msra.mxu0 0.0
      %3615 = vmatprep.subr.mxu0 0.0
      %3616 = vmatpush1.msra.mxu0 0.0
      %3617 = vmatprep.subr.mxu0 0.0
      %3618 = vmatpush1.msra.mxu0 0.0
      %3619 = vmatprep.subr.mxu0 0.0
      %3620 = vmatpush1.msra.mxu0 0.0
      %3621 = vmatprep.subr.mxu0 0.0
      %3622 = vmatpush1.msra.mxu0 0.0
      %3623 = vmatprep.subr.mxu0 0.0
      %3624 = vmatpush1.msra.mxu0 0.0
      %3625 = vmatprep.subr.mxu0 0.0
      %3626 = vmatpush1.msra.mxu0 0.0
      %3627 = vmatprep.subr.mxu0 0.0
      %3628 = vmatpush1.msra.mxu0 0.0
      %3629 = vmatprep.subr.mxu0 0.0
      %3630 = vmatpush1.msra.mxu0 0.0
      %3631 = vmatprep.subr.mxu0 0.0
      %3632 = vmatpush1.msra.mxu0 0.0
      %3633 = vmatprep.subr.mxu0 0.0
      %3634 = vmatpush1.msra.mxu0 0.0
      %3635 = vmatprep.subr.mxu0 0.0
      %3636 = vmatpush1.msra.mxu0 0.0
      %3637 = vmatprep.subr.mxu0 0.0
      %3638 = vmatpush1.msra.mxu0 0.0
      %3639 = vmatprep.subr.mxu0 0.0
      %3640 = vmatpush1.msra.mxu0 0.0
      %3641 = vmatprep.subr.mxu0 0.0
      %3642 = vmatpush1.msra.mxu0 0.0
      %3643 = vmatprep.subr.mxu0 0.0
      %3644 = vmatpush1.msra.mxu0 0.0
      %3645 = vmatprep.subr.mxu0 0.0
      %3646 = vmatpush1.msra.mxu0 0.0
      %3647 = vmatprep.subr.mxu0 0.0
      %3648 = vmatpush1.msra.mxu0 0.0
      %3649 = vmatprep.subr.mxu0 0.0
      %3650 = vmatpush1.msra.mxu0 0.0
      %3651 = vmatprep.subr.mxu0 0.0
      %3652 = vmatpush1.msra.mxu0 0.0
      %3653 = vmatprep.subr.mxu0 0.0
      %3654 = vmatpush1.msra.mxu0 0.0
      %3655 = vmatprep.subr.mxu0 0.0
      %3656 = vmatpush1.msra.mxu0 0.0
      %3657 = vmatprep.subr.mxu0 0.0
      %3658 = vmatpush1.msra.mxu0 0.0
      %3659 = vmatprep.mubr.f32.mxu0 0.0
      %3660 = vmatmul.mubr.f32.gmra.mrb[0].mxu0 %v3593
      %v3661 = vpop.f32.mrb[0].mxu0
      %v3662 = vadd.f32 0.0, %v3661
      %v3663 = vpop.f32.mrb[0].mxu0
      %3664 = vdwg.mxu0
      %v3666 = vsel %vm408, %v2713, 0
      %3668 = vmatprep.subr.mxu0 0.0
      %3669 = vmatpush1.msra.mxu0 %v1001
      %3670 = vmatprep.subr.mxu0 0.0
      %3671 = vmatpush1.msra.mxu0 %v1017
      %3672 = vmatprep.subr.mxu0 0.0
      %3673 = vmatpush1.msra.mxu0 %v1033
      %3674 = vmatprep.subr.mxu0 0.0
      %3675 = vmatpush1.msra.mxu0 %v1049
      %3676 = vmatprep.subr.mxu0 0.0
      %3677 = vmatpush1.msra.mxu0 0.0
      %3678 = vmatprep.subr.mxu0 0.0
      %3679 = vmatpush1.msra.mxu0 0.0
      %3680 = vmatprep.subr.mxu0 0.0
      %3681 = vmatpush1.msra.mxu0 0.0
      %3682 = vmatprep.subr.mxu0 0.0
      %3683 = vmatpush1.msra.mxu0 0.0
      %3684 = vmatprep.subr.mxu0 0.0
      %3685 = vmatpush1.msra.mxu0 0.0
      %3686 = vmatprep.subr.mxu0 0.0
      %3687 = vmatpush1.msra.mxu0 0.0
      %3688 = vmatprep.subr.mxu0 0.0
      %3689 = vmatpush1.msra.mxu0 0.0
      %3690 = vmatprep.subr.mxu0 0.0
      %3691 = vmatpush1.msra.mxu0 0.0
      %3692 = vmatprep.subr.mxu0 0.0
      %3693 = vmatpush1.msra.mxu0 0.0
      %3694 = vmatprep.subr.mxu0 0.0
      %3695 = vmatpush1.msra.mxu0 0.0
      %3696 = vmatprep.subr.mxu0 0.0
      %3697 = vmatpush1.msra.mxu0 0.0
      %3698 = vmatprep.subr.mxu0 0.0
      %3699 = vmatpush1.msra.mxu0 0.0
      %3700 = vmatprep.subr.mxu0 0.0
      %3701 = vmatpush1.msra.mxu0 0.0
      %3702 = vmatprep.subr.mxu0 0.0
      %3703 = vmatpush1.msra.mxu0 0.0
      %3704 = vmatprep.subr.mxu0 0.0
      %3705 = vmatpush1.msra.mxu0 0.0
      %3706 = vmatprep.subr.mxu0 0.0
      %3707 = vmatpush1.msra.mxu0 0.0
      %3708 = vmatprep.subr.mxu0 0.0
      %3709 = vmatpush1.msra.mxu0 0.0
      %3710 = vmatprep.subr.mxu0 0.0
      %3711 = vmatpush1.msra.mxu0 0.0
      %3712 = vmatprep.subr.mxu0 0.0
      %3713 = vmatpush1.msra.mxu0 0.0
      %3714 = vmatprep.subr.mxu0 0.0
      %3715 = vmatpush1.msra.mxu0 0.0
      %3716 = vmatprep.subr.mxu0 0.0
      %3717 = vmatpush1.msra.mxu0 0.0
      %3718 = vmatprep.subr.mxu0 0.0
      %3719 = vmatpush1.msra.mxu0 0.0
      %3720 = vmatprep.subr.mxu0 0.0
      %3721 = vmatpush1.msra.mxu0 0.0
      %3722 = vmatprep.subr.mxu0 0.0
      %3723 = vmatpush1.msra.mxu0 0.0
      %3724 = vmatprep.subr.mxu0 0.0
      %3725 = vmatpush1.msra.mxu0 0.0
      %3726 = vmatprep.subr.mxu0 0.0
      %3727 = vmatpush1.msra.mxu0 0.0
      %3728 = vmatprep.subr.mxu0 0.0
      %3729 = vmatpush1.msra.mxu0 0.0
      %3730 = vmatprep.subr.mxu0 0.0
      %3731 = vmatpush1.msra.mxu0 0.0
      %3732 = vmatprep.mubr.f32.mxu0 0.0
      %3733 = vmatmul.mubr.f32.gmra.mrb[0].mxu0 %v3666
      %v3734 = vpop.f32.mrb[0].mxu0
      %v3735 = vadd.f32 0.0, %v3734
      %v3736 = vpop.f32.mrb[0].mxu0
      %3737 = vdwg.mxu0
      %v3739 = vsel %vm408, %v2714, 0
      %3741 = vmatprep.subr.mxu0 0.0
      %3742 = vmatpush1.msra.mxu0 %v1002
      %3743 = vmatprep.subr.mxu0 0.0
      %3744 = vmatpush1.msra.mxu0 %v1018
      %3745 = vmatprep.subr.mxu0 0.0
      %3746 = vmatpush1.msra.mxu0 %v1034
      %3747 = vmatprep.subr.mxu0 0.0
      %3748 = vmatpush1.msra.mxu0 %v1050
      %3749 = vmatprep.subr.mxu0 0.0
      %3750 = vmatpush1.msra.mxu0 0.0
      %3751 = vmatprep.subr.mxu0 0.0
      %3752 = vmatpush1.msra.mxu0 0.0
      %3753 = vmatprep.subr.mxu0 0.0
      %3754 = vmatpush1.msra.mxu0 0.0
      %3755 = vmatprep.subr.mxu0 0.0
      %3756 = vmatpush1.msra.mxu0 0.0
      %3757 = vmatprep.subr.mxu0 0.0
      %3758 = vmatpush1.msra.mxu0 0.0
      %3759 = vmatprep.subr.mxu0 0.0
      %3760 = vmatpush1.msra.mxu0 0.0
      %3761 = vmatprep.subr.mxu0 0.0
      %3762 = vmatpush1.msra.mxu0 0.0
      %3763 = vmatprep.subr.mxu0 0.0
      %3764 = vmatpush1.msra.mxu0 0.0
      %3765 = vmatprep.subr.mxu0 0.0
      %3766 = vmatpush1.msra.mxu0 0.0
      %3767 = vmatprep.subr.mxu0 0.0
      %3768 = vmatpush1.msra.mxu0 0.0
      %3769 = vmatprep.subr.mxu0 0.0
      %3770 = vmatpush1.msra.mxu0 0.0
      %3771 = vmatprep.subr.mxu0 0.0
      %3772 = vmatpush1.msra.mxu0 0.0
      %3773 = vmatprep.subr.mxu0 0.0
      %3774 = vmatpush1.msra.mxu0 0.0
      %3775 = vmatprep.subr.mxu0 0.0
      %3776 = vmatpush1.msra.mxu0 0.0
      %3777 = vmatprep.subr.mxu0 0.0
      %3778 = vmatpush1.msra.mxu0 0.0
      %3779 = vmatprep.subr.mxu0 0.0
      %3780 = vmatpush1.msra.mxu0 0.0
      %3781 = vmatprep.subr.mxu0 0.0
      %3782 = vmatpush1.msra.mxu0 0.0
      %3783 = vmatprep.subr.mxu0 0.0
      %3784 = vmatpush1.msra.mxu0 0.0
      %3785 = vmatprep.subr.mxu0 0.0
      %3786 = vmatpush1.msra.mxu0 0.0
      %3787 = vmatprep.subr.mxu0 0.0
      %3788 = vmatpush1.msra.mxu0 0.0
      %3789 = vmatprep.subr.mxu0 0.0
      %3790 = vmatpush1.msra.mxu0 0.0
      %3791 = vmatprep.subr.mxu0 0.0
      %3792 = vmatpush1.msra.mxu0 0.0
      %3793 = vmatprep.subr.mxu0 0.0
      %3794 = vmatpush1.msra.mxu0 0.0
      %3795 = vmatprep.subr.mxu0 0.0
      %3796 = vmatpush1.msra.mxu0 0.0
      %3797 = vmatprep.subr.mxu0 0.0
      %3798 = vmatpush1.msra.mxu0 0.0
      %3799 = vmatprep.subr.mxu0 0.0
      %3800 = vmatpush1.msra.mxu0 0.0
      %3801 = vmatprep.subr.mxu0 0.0
      %3802 = vmatpush1.msra.mxu0 0.0
      %3803 = vmatprep.subr.mxu0 0.0
      %3804 = vmatpush1.msra.mxu0 0.0
      %3805 = vmatprep.mubr.f32.mxu0 0.0
      %3806 = vmatmul.mubr.f32.gmra.mrb[0].mxu0 %v3739
      %v3807 = vpop.f32.mrb[0].mxu0
      %v3808 = vadd.f32 0.0, %v3807
      %v3809 = vpop.f32.mrb[0].mxu0
      %3810 = vdwg.mxu0
      %v3812 = vsel %vm408, %v2715, 0
      %3814 = vmatprep.subr.mxu0 0.0
      %3815 = vmatpush1.msra.mxu0 %v1003
      %3816 = vmatprep.subr.mxu0 0.0
      %3817 = vmatpush1.msra.mxu0 %v1019
      %3818 = vmatprep.subr.mxu0 0.0
      %3819 = vmatpush1.msra.mxu0 %v1035
      %3820 = vmatprep.subr.mxu0 0.0
      %3821 = vmatpush1.msra.mxu0 %v1051
      %3822 = vmatprep.subr.mxu0 0.0
      %3823 = vmatpush1.msra.mxu0 0.0
      %3824 = vmatprep.subr.mxu0 0.0
      %3825 = vmatpush1.msra.mxu0 0.0
      %3826 = vmatprep.subr.mxu0 0.0
      %3827 = vmatpush1.msra.mxu0 0.0
      %3828 = vmatprep.subr.mxu0 0.0
      %3829 = vmatpush1.msra.mxu0 0.0
      %3830 = vmatprep.subr.mxu0 0.0
      %3831 = vmatpush1.msra.mxu0 0.0
      %3832 = vmatprep.subr.mxu0 0.0
      %3833 = vmatpush1.msra.mxu0 0.0
      %3834 = vmatprep.subr.mxu0 0.0
      %3835 = vmatpush1.msra.mxu0 0.0
      %3836 = vmatprep.subr.mxu0 0.0
      %3837 = vmatpush1.msra.mxu0 0.0
      %3838 = vmatprep.subr.mxu0 0.0
      %3839 = vmatpush1.msra.mxu0 0.0
      %3840 = vmatprep.subr.mxu0 0.0
      %3841 = vmatpush1.msra.mxu0 0.0
      %3842 = vmatprep.subr.mxu0 0.0
      %3843 = vmatpush1.msra.mxu0 0.0
      %3844 = vmatprep.subr.mxu0 0.0
      %3845 = vmatpush1.msra.mxu0 0.0
      %3846 = vmatprep.subr.mxu0 0.0
      %3847 = vmatpush1.msra.mxu0 0.0
      %3848 = vmatprep.subr.mxu0 0.0
      %3849 = vmatpush1.msra.mxu0 0.0
      %3850 = vmatprep.subr.mxu0 0.0
      %3851 = vmatpush1.msra.mxu0 0.0
      %3852 = vmatprep.subr.mxu0 0.0
      %3853 = vmatpush1.msra.mxu0 0.0
      %3854 = vmatprep.subr.mxu0 0.0
      %3855 = vmatpush1.msra.mxu0 0.0
      %3856 = vmatprep.subr.mxu0 0.0
      %3857 = vmatpush1.msra.mxu0 0.0
      %3858 = vmatprep.subr.mxu0 0.0
      %3859 = vmatpush1.msra.mxu0 0.0
      %3860 = vmatprep.subr.mxu0 0.0
      %3861 = vmatpush1.msra.mxu0 0.0
      %3862 = vmatprep.subr.mxu0 0.0
      %3863 = vmatpush1.msra.mxu0 0.0
      %3864 = vmatprep.subr.mxu0 0.0
      %3865 = vmatpush1.msra.mxu0 0.0
      %3866 = vmatprep.subr.mxu0 0.0
      %3867 = vmatpush1.msra.mxu0 0.0
      %3868 = vmatprep.subr.mxu0 0.0
      %3869 = vmatpush1.msra.mxu0 0.0
      %3870 = vmatprep.subr.mxu0 0.0
      %3871 = vmatpush1.msra.mxu0 0.0
      %3872 = vmatprep.subr.mxu0 0.0
      %3873 = vmatpush1.msra.mxu0 0.0
      %3874 = vmatprep.subr.mxu0 0.0
      %3875 = vmatpush1.msra.mxu0 0.0
      %3876 = vmatprep.subr.mxu0 0.0
      %3877 = vmatpush1.msra.mxu0 0.0
      %3878 = vmatprep.mubr.f32.mxu0 0.0
      %3879 = vmatmul.mubr.f32.gmra.mrb[0].mxu0 %v3812
      %v3880 = vpop.f32.mrb[0].mxu0
      %v3881 = vadd.f32 0.0, %v3880
      %v3882 = vpop.f32.mrb[0].mxu0
      %3883 = vdwg.mxu0
      %v3884 = vld [vmem:[%s5] sm:$0xff]
      %v3885 = vld [vmem:[%s5 + $0x8] sm:$0xff]
      %v3886 = vld [vmem:[%s5 + $0x10] sm:$0xff]
      %v3887 = vld [vmem:[%s5 + $0x18] sm:$0xff]
      %v3888 = vlaneseq
      %v3889 = vshrl.u32 %v3888, 7
      %v3890 = vsub.s32 3, %v3889
      %v3891 = vrot.slane %v365, %v3890
      %v3893 = vsel %vm408, %v2786, 0
      %v3896 = vsel %vm408, %v2859, 0
      %v3899 = vsel %vm408, %v2932, 0
      %v3902 = vsel %vm408, %v3005, 0
      %v3905 = vsel %vm408, %v3078, 0
      %v3908 = vsel %vm408, %v3151, 0
      %v3911 = vsel %vm408, %v3224, 0
      %v3914 = vsel %vm408, %v3297, 0
      %v3917 = vsel %vm408, %v3370, 0
      %v3920 = vsel %vm408, %v3443, 0
      %v3923 = vsel %vm408, %v3516, 0
      %v3926 = vsel %vm408, %v3589, 0
      %v3929 = vsel %vm408, %v3662, 0
      %v3932 = vsel %vm408, %v3735, 0
      %v3935 = vsel %vm408, %v3808, 0
      %v3938 = vsel %vm408, %v3881, 0
      %3940 = vmatprep.subr.mxu0 0.0
      %3941 = vmatpush1.msra.mxu0 %v3884
      %3942 = vmatprep.subr.mxu0 0.0
      %3943 = vmatpush1.msra.mxu0 %v3885
      %3944 = vmatprep.subr.mxu0 0.0
      %3945 = vmatpush1.msra.mxu0 %v3886
      %3946 = vmatprep.subr.mxu0 0.0
      %3947 = vmatpush1.msra.mxu0 %v3887
      %3948 = vmatprep.subr.mxu0 0.0
      %3949 = vmatpush1.msra.mxu0 0.0
      %3950 = vmatprep.subr.mxu0 0.0
      %3951 = vmatpush1.msra.mxu0 0.0
      %3952 = vmatprep.subr.mxu0 0.0
      %3953 = vmatpush1.msra.mxu0 0.0
      %3954 = vmatprep.subr.mxu0 0.0
      %3955 = vmatpush1.msra.mxu0 0.0
      %3956 = vmatprep.subr.mxu0 0.0
      %3957 = vmatpush1.msra.mxu0 0.0
      %3958 = vmatprep.subr.mxu0 0.0
      %3959 = vmatpush1.msra.mxu0 0.0
      %3960 = vmatprep.subr.mxu0 0.0
      %3961 = vmatpush1.msra.mxu0 0.0
      %3962 = vmatprep.subr.mxu0 0.0
      %3963 = vmatpush1.msra.mxu0 0.0
      %3964 = vmatprep.subr.mxu0 0.0
      %3965 = vmatpush1.msra.mxu0 0.0
      %3966 = vmatprep.subr.mxu0 0.0
      %3967 = vmatpush1.msra.mxu0 0.0
      %3968 = vmatprep.subr.mxu0 0.0
      %3969 = vmatpush1.msra.mxu0 0.0
      %3970 = vmatprep.subr.mxu0 0.0
      %3971 = vmatpush1.msra.mxu0 0.0
      %3972 = vmatprep.subr.mxu0 0.0
      %3973 = vmatpush1.msra.mxu0 0.0
      %3974 = vmatprep.subr.mxu0 0.0
      %3975 = vmatpush1.msra.mxu0 0.0
      %3976 = vmatprep.subr.mxu0 0.0
      %3977 = vmatpush1.msra.mxu0 0.0
      %3978 = vmatprep.subr.mxu0 0.0
      %3979 = vmatpush1.msra.mxu0 0.0
      %3980 = vmatprep.subr.mxu0 0.0
      %3981 = vmatpush1.msra.mxu0 0.0
      %3982 = vmatprep.subr.mxu0 0.0
      %3983 = vmatpush1.msra.mxu0 0.0
      %3984 = vmatprep.subr.mxu0 0.0
      %3985 = vmatpush1.msra.mxu0 0.0
      %3986 = vmatprep.subr.mxu0 0.0
      %3987 = vmatpush1.msra.mxu0 0.0
      %3988 = vmatprep.subr.mxu0 0.0
      %3989 = vmatpush1.msra.mxu0 0.0
      %3990 = vmatprep.subr.mxu0 0.0
      %3991 = vmatpush1.msra.mxu0 0.0
      %3992 = vmatprep.subr.mxu0 0.0
      %3993 = vmatpush1.msra.mxu0 0.0
      %3994 = vmatprep.subr.mxu0 0.0
      %3995 = vmatpush1.msra.mxu0 0.0
      %3996 = vmatprep.subr.mxu0 0.0
      %3997 = vmatpush1.msra.mxu0 0.0
      %3998 = vmatprep.subr.mxu0 0.0
      %3999 = vmatpush1.msra.mxu0 0.0
      %4000 = vmatprep.subr.mxu0 0.0
      %4001 = vmatpush1.msra.mxu0 0.0
      %4002 = vmatprep.subr.mxu0 0.0
      %4003 = vmatpush1.msra.mxu0 0.0
      %4004 = vmatprep.mubr.f32.mxu0 0.0
      %4005 = vmatmul.mubr.f32.gmra.mrb[0].mxu0 %v3893
      %v4006 = vpop.f32.mrb[0].mxu0
      %v4007 = vadd.f32 %v3891, %v4006
      %v4008 = vpop.f32.mrb[0].mxu0
      %4009 = vmatprep.mubr.f32.mxu0 0.0
      %4010 = vmatmul.mubr.f32.gmra.mrb[0].mxu0 %v3896
      %v4011 = vpop.f32.mrb[0].mxu0
      %v4012 = vadd.f32 %v3891, %v4011
      %v4013 = vpop.f32.mrb[0].mxu0
      %4014 = vmatprep.mubr.f32.mxu0 0.0
      %4015 = vmatmul.mubr.f32.gmra.mrb[0].mxu0 %v3899
      %v4016 = vpop.f32.mrb[0].mxu0
      %v4017 = vadd.f32 %v3891, %v4016
      %v4018 = vpop.f32.mrb[0].mxu0
      %4019 = vmatprep.mubr.f32.mxu0 0.0
      %4020 = vmatmul.mubr.f32.gmra.mrb[0].mxu0 %v3902
      %v4021 = vpop.f32.mrb[0].mxu0
      %v4022 = vadd.f32 %v3891, %v4021
      %v4023 = vpop.f32.mrb[0].mxu0
      %4024 = vmatprep.mubr.f32.mxu0 0.0
      %4025 = vmatmul.mubr.f32.gmra.mrb[0].mxu0 %v3905
      %v4026 = vpop.f32.mrb[0].mxu0
      %v4027 = vadd.f32 %v3891, %v4026
      %v4028 = vpop.f32.mrb[0].mxu0
      %4029 = vmatprep.mubr.f32.mxu0 0.0
      %4030 = vmatmul.mubr.f32.gmra.mrb[0].mxu0 %v3908
      %v4031 = vpop.f32.mrb[0].mxu0
      %v4032 = vadd.f32 %v3891, %v4031
      %v4033 = vpop.f32.mrb[0].mxu0
      %4034 = vmatprep.mubr.f32.mxu0 0.0
      %4035 = vmatmul.mubr.f32.gmra.mrb[0].mxu0 %v3911
      %v4036 = vpop.f32.mrb[0].mxu0
      %v4037 = vadd.f32 %v3891, %v4036
      %v4038 = vpop.f32.mrb[0].mxu0
      %4039 = vmatprep.mubr.f32.mxu0 0.0
      %4040 = vmatmul.mubr.f32.gmra.mrb[0].mxu0 %v3914
      %v4041 = vpop.f32.mrb[0].mxu0
      %v4042 = vadd.f32 %v3891, %v4041
      %v4043 = vpop.f32.mrb[0].mxu0
      %4044 = vmatprep.mubr.f32.mxu0 0.0
      %4045 = vmatmul.mubr.f32.gmra.mrb[0].mxu0 %v3917
      %v4046 = vpop.f32.mrb[0].mxu0
      %v4047 = vadd.f32 %v3891, %v4046
      %v4048 = vpop.f32.mrb[0].mxu0
      %4049 = vmatprep.mubr.f32.mxu0 0.0
      %4050 = vmatmul.mubr.f32.gmra.mrb[0].mxu0 %v3920
      %v4051 = vpop.f32.mrb[0].mxu0
      %v4052 = vadd.f32 %v3891, %v4051
      %v4053 = vpop.f32.mrb[0].mxu0
      %4054 = vmatprep.mubr.f32.mxu0 0.0
      %4055 = vmatmul.mubr.f32.gmra.mrb[0].mxu0 %v3923
      %v4056 = vpop.f32.mrb[0].mxu0
      %v4057 = vadd.f32 %v3891, %v4056
      %v4058 = vpop.f32.mrb[0].mxu0
      %4059 = vmatprep.mubr.f32.mxu0 0.0
      %4060 = vmatmul.mubr.f32.gmra.mrb[0].mxu0 %v3926
      %v4061 = vpop.f32.mrb[0].mxu0
      %v4062 = vadd.f32 %v3891, %v4061
      %v4063 = vpop.f32.mrb[0].mxu0
      %4064 = vmatprep.mubr.f32.mxu0 0.0
      %4065 = vmatmul.mubr.f32.gmra.mrb[0].mxu0 %v3929
      %v4066 = vpop.f32.mrb[0].mxu0
      %v4067 = vadd.f32 %v3891, %v4066
      %v4068 = vpop.f32.mrb[0].mxu0
      %4069 = vmatprep.mubr.f32.mxu0 0.0
      %4070 = vmatmul.mubr.f32.gmra.mrb[0].mxu0 %v3932
      %v4071 = vpop.f32.mrb[0].mxu0
      %v4072 = vadd.f32 %v3891, %v4071
      %v4073 = vpop.f32.mrb[0].mxu0
      %4074 = vmatprep.mubr.f32.mxu0 0.0
      %4075 = vmatmul.mubr.f32.gmra.mrb[0].mxu0 %v3935
      %v4076 = vpop.f32.mrb[0].mxu0
      %v4077 = vadd.f32 %v3891, %v4076
      %v4078 = vpop.f32.mrb[0].mxu0
      %4079 = vmatprep.mubr.f32.mxu0 0.0
      %4080 = vmatmul.mubr.f32.gmra.mrb[0].mxu0 %v3938
      %v4081 = vpop.f32.mrb[0].mxu0
      %v4082 = vadd.f32 %v3891, %v4081
      %v4083 = vpop.f32.mrb[0].mxu0
      %4084 = vdwg.mxu0
      %v4085 = vadd.f32 %v4007, %v384
      %v4086 = vadd.f32 %v4012, %v385
      %v4087 = vadd.f32 %v4017, %v386
      %v4088 = vadd.f32 %v4022, %v387
      %v4089 = vadd.f32 %v4027, %v388
      %v4090 = vadd.f32 %v4032, %v389
      %v4091 = vadd.f32 %v4037, %v390
      %v4092 = vadd.f32 %v4042, %v391
      %v4093 = vadd.f32 %v4047, %v392
      %v4094 = vadd.f32 %v4052, %v393
      %v4095 = vadd.f32 %v4057, %v394
      %v4096 = vadd.f32 %v4062, %v395
      %v4097 = vadd.f32 %v4067, %v396
      %v4098 = vadd.f32 %v4072, %v397
      %v4099 = vadd.f32 %v4077, %v398
      %v4100 = vadd.f32 %v4082, %v399
      %v4101 = vsel %vm408, %v4085, 0.0
      %4102 = vadd.xlane.f32.xlu0 %v4101
      %v4103 = vpop.xlane.xlu0 %4102
      %v4104 = vsel %vm408, %v4086, 0.0
      %4105 = vadd.xlane.f32.xlu0 %v4104
      %v4106 = vpop.xlane.xlu0 %4105
      %v4107 = vsel %vm408, %v4087, 0.0
      %4108 = vadd.xlane.f32.xlu0 %v4107
      %v4109 = vpop.xlane.xlu0 %4108
      %v4110 = vsel %vm408, %v4088, 0.0
      %4111 = vadd.xlane.f32.xlu0 %v4110
      %v4112 = vpop.xlane.xlu0 %4111
      %v4113 = vsel %vm408, %v4089, 0.0
      %4114 = vadd.xlane.f32.xlu0 %v4113
      %v4115 = vpop.xlane.xlu0 %4114
      %v4116 = vsel %vm408, %v4090, 0.0
      %4117 = vadd.xlane.f32.xlu0 %v4116
      %v4118 = vpop.xlane.xlu0 %4117
      %v4119 = vsel %vm408, %v4091, 0.0
      %4120 = vadd.xlane.f32.xlu0 %v4119
      %v4121 = vpop.xlane.xlu0 %4120
      %v4122 = vsel %vm408, %v4092, 0.0
      %4123 = vadd.xlane.f32.xlu0 %v4122
      %v4124 = vpop.xlane.xlu0 %4123
      %v4125 = vsel %vm408, %v4093, 0.0
      %4126 = vadd.xlane.f32.xlu0 %v4125
      %v4127 = vpop.xlane.xlu0 %4126
      %v4128 = vsel %vm408, %v4094, 0.0
      %4129 = vadd.xlane.f32.xlu0 %v4128
      %v4130 = vpop.xlane.xlu0 %4129
      %v4131 = vsel %vm408, %v4095, 0.0
      %4132 = vadd.xlane.f32.xlu0 %v4131
      %v4133 = vpop.xlane.xlu0 %4132
      %v4134 = vsel %vm408, %v4096, 0.0
      %4135 = vadd.xlane.f32.xlu0 %v4134
      %v4136 = vpop.xlane.xlu0 %4135
      %v4137 = vsel %vm408, %v4097, 0.0
      %4138 = vadd.xlane.f32.xlu0 %v4137
      %v4139 = vpop.xlane.xlu0 %4138
      %v4140 = vsel %vm408, %v4098, 0.0
      %4141 = vadd.xlane.f32.xlu0 %v4140
      %v4142 = vpop.xlane.xlu0 %4141
      %v4143 = vsel %vm408, %v4099, 0.0
      %4144 = vadd.xlane.f32.xlu0 %v4143
      %v4145 = vpop.xlane.xlu0 %4144
      %v4146 = vsel %vm408, %v4100, 0.0
      %4147 = vadd.xlane.f32.xlu0 %v4146
      %v4148 = vpop.xlane.xlu0 %4147
      %v4149 = vrcp.pop 32.0
      %v4150 = vmul.f32 %v4103, %v4149
      %v4151 = vmul.f32 %v4106, %v4149
      %v4152 = vmul.f32 %v4109, %v4149
      %v4153 = vmul.f32 %v4112, %v4149
      %v4154 = vmul.f32 %v4115, %v4149
      %v4155 = vmul.f32 %v4118, %v4149
      %v4156 = vmul.f32 %v4121, %v4149
      %v4157 = vmul.f32 %v4124, %v4149
      %v4158 = vmul.f32 %v4127, %v4149
      %v4159 = vmul.f32 %v4130, %v4149
      %v4160 = vmul.f32 %v4133, %v4149
      %v4161 = vmul.f32 %v4136, %v4149
      %v4162 = vmul.f32 %v4139, %v4149
      %v4163 = vmul.f32 %v4142, %v4149
      %v4164 = vmul.f32 %v4145, %v4149
      %v4165 = vmul.f32 %v4148, %v4149
      %v4166 = vsub.f32 %v4085, %v4150
      %v4167 = vsub.f32 %v4086, %v4151
      %v4168 = vsub.f32 %v4087, %v4152
      %v4169 = vsub.f32 %v4088, %v4153
      %v4170 = vsub.f32 %v4089, %v4154
      %v4171 = vsub.f32 %v4090, %v4155
      %v4172 = vsub.f32 %v4091, %v4156
      %v4173 = vsub.f32 %v4092, %v4157
      %v4174 = vsub.f32 %v4093, %v4158
      %v4175 = vsub.f32 %v4094, %v4159
      %v4176 = vsub.f32 %v4095, %v4160
      %v4177 = vsub.f32 %v4096, %v4161
      %v4178 = vsub.f32 %v4097, %v4162
      %v4179 = vsub.f32 %v4098, %v4163
      %v4180 = vsub.f32 %v4099, %v4164
      %v4181 = vsub.f32 %v4100, %v4165
      %v4182 = vmul.f32 %v4166, %v4166
      %v4183 = vmul.f32 %v4167, %v4167
      %v4184 = vmul.f32 %v4168, %v4168
      %v4185 = vmul.f32 %v4169, %v4169
      %v4186 = vmul.f32 %v4170, %v4170
      %v4187 = vmul.f32 %v4171, %v4171
      %v4188 = vmul.f32 %v4172, %v4172
      %v4189 = vmul.f32 %v4173, %v4173
      %v4190 = vmul.f32 %v4174, %v4174
      %v4191 = vmul.f32 %v4175, %v4175
      %v4192 = vmul.f32 %v4176, %v4176
      %v4193 = vmul.f32 %v4177, %v4177
      %v4194 = vmul.f32 %v4178, %v4178
      %v4195 = vmul.f32 %v4179, %v4179
      %v4196 = vmul.f32 %v4180, %v4180
      %v4197 = vmul.f32 %v4181, %v4181
      %v4198 = vsel %vm408, %v4182, 0.0
      %4199 = vadd.xlane.f32.xlu0 %v4198
      %v4200 = vpop.xlane.xlu0 %4199
      %v4201 = vsel %vm408, %v4183, 0.0
      %4202 = vadd.xlane.f32.xlu0 %v4201
      %v4203 = vpop.xlane.xlu0 %4202
      %v4204 = vsel %vm408, %v4184, 0.0
      %4205 = vadd.xlane.f32.xlu0 %v4204
      %v4206 = vpop.xlane.xlu0 %4205
      %v4207 = vsel %vm408, %v4185, 0.0
      %4208 = vadd.xlane.f32.xlu0 %v4207
      %v4209 = vpop.xlane.xlu0 %4208
      %v4210 = vsel %vm408, %v4186, 0.0
      %4211 = vadd.xlane.f32.xlu0 %v4210
      %v4212 = vpop.xlane.xlu0 %4211
      %v4213 = vsel %vm408, %v4187, 0.0
      %4214 = vadd.xlane.f32.xlu0 %v4213
      %v4215 = vpop.xlane.xlu0 %4214
      %v4216 = vsel %vm408, %v4188, 0.0
      %4217 = vadd.xlane.f32.xlu0 %v4216
      %v4218 = vpop.xlane.xlu0 %4217
      %v4219 = vsel %vm408, %v4189, 0.0
      %4220 = vadd.xlane.f32.xlu0 %v4219
      %v4221 = vpop.xlane.xlu0 %4220
      %v4222 = vsel %vm408, %v4190, 0.0
      %4223 = vadd.xlane.f32.xlu0 %v4222
      %v4224 = vpop.xlane.xlu0 %4223
      %v4225 = vsel %vm408, %v4191, 0.0
      %4226 = vadd.xlane.f32.xlu0 %v4225
      %v4227 = vpop.xlane.xlu0 %4226
      %v4228 = vsel %vm408, %v4192, 0.0
      %4229 = vadd.xlane.f32.xlu0 %v4228
      %v4230 = vpop.xlane.xlu0 %4229
      %v4231 = vsel %vm408, %v4193, 0.0
      %4232 = vadd.xlane.f32.xlu0 %v4231
      %v4233 = vpop.xlane.xlu0 %4232
      %v4234 = vsel %vm408, %v4194, 0.0
      %4235 = vadd.xlane.f32.xlu0 %v4234
      %v4236 = vpop.xlane.xlu0 %4235
      %v4237 = vsel %vm408, %v4195, 0.0
      %4238 = vadd.xlane.f32.xlu0 %v4237
      %v4239 = vpop.xlane.xlu0 %4238
      %v4240 = vsel %vm408, %v4196, 0.0
      %4241 = vadd.xlane.f32.xlu0 %v4240
      %v4242 = vpop.xlane.xlu0 %4241
      %v4243 = vsel %vm408, %v4197, 0.0
      %4244 = vadd.xlane.f32.xlu0 %v4243
      %v4245 = vpop.xlane.xlu0 %4244
      %v4246 = vmul.f32 %v4200, %v4149
      %v4247 = vmul.f32 %v4203, %v4149
      %v4248 = vmul.f32 %v4206, %v4149
      %v4249 = vmul.f32 %v4209, %v4149
      %v4250 = vmul.f32 %v4212, %v4149
      %v4251 = vmul.f32 %v4215, %v4149
      %v4252 = vmul.f32 %v4218, %v4149
      %v4253 = vmul.f32 %v4221, %v4149
      %v4254 = vmul.f32 %v4224, %v4149
      %v4255 = vmul.f32 %v4227, %v4149
      %v4256 = vmul.f32 %v4230, %v4149
      %v4257 = vmul.f32 %v4233, %v4149
      %v4258 = vmul.f32 %v4236, %v4149
      %v4259 = vmul.f32 %v4239, %v4149
      %v4260 = vmul.f32 %v4242, %v4149
      %v4261 = vmul.f32 %v4245, %v4149
      %v4262 = vadd.f32 %v4246, 1e-05
      %v4263 = vadd.f32 %v4247, 1e-05
      %v4264 = vadd.f32 %v4248, 1e-05
      %v4265 = vadd.f32 %v4249, 1e-05
      %v4266 = vadd.f32 %v4250, 1e-05
      %v4267 = vadd.f32 %v4251, 1e-05
      %v4268 = vadd.f32 %v4252, 1e-05
      %v4269 = vadd.f32 %v4253, 1e-05
      %v4270 = vadd.f32 %v4254, 1e-05
      %v4271 = vadd.f32 %v4255, 1e-05
      %v4272 = vadd.f32 %v4256, 1e-05
      %v4273 = vadd.f32 %v4257, 1e-05
      %v4274 = vadd.f32 %v4258, 1e-05
      %v4275 = vadd.f32 %v4259, 1e-05
      %v4276 = vadd.f32 %v4260, 1e-05
      %v4277 = vadd.f32 %v4261, 1e-05
      %v4278 = vrsqrt.pop %v4262
      %v4279 = vrsqrt.pop %v4263
      %v4280 = vrsqrt.pop %v4264
      %v4281 = vrsqrt.pop %v4265
      %v4282 = vrsqrt.pop %v4266
      %v4283 = vrsqrt.pop %v4267
      %v4284 = vrsqrt.pop %v4268
      %v4285 = vrsqrt.pop %v4269
      %v4286 = vrsqrt.pop %v4270
      %v4287 = vrsqrt.pop %v4271
      %v4288 = vrsqrt.pop %v4272
      %v4289 = vrsqrt.pop %v4273
      %v4290 = vrsqrt.pop %v4274
      %v4291 = vrsqrt.pop %v4275
      %v4292 = vrsqrt.pop %v4276
      %v4293 = vrsqrt.pop %v4277
      %v4294 = vmul.f32 %v4166, %v4278
      %v4295 = vmul.f32 %v4167, %v4279
      %v4296 = vmul.f32 %v4168, %v4280
      %v4297 = vmul.f32 %v4169, %v4281
      %v4298 = vmul.f32 %v4170, %v4282
      %v4299 = vmul.f32 %v4171, %v4283
      %v4300 = vmul.f32 %v4172, %v4284
      %v4301 = vmul.f32 %v4173, %v4285
      %v4302 = vmul.f32 %v4174, %v4286
      %v4303 = vmul.f32 %v4175, %v4287
      %v4304 = vmul.f32 %v4176, %v4288
      %v4305 = vmul.f32 %v4177, %v4289
      %v4306 = vmul.f32 %v4178, %v4290
      %v4307 = vmul.f32 %v4179, %v4291
      %v4308 = vmul.f32 %v4180, %v4292
      %v4309 = vmul.f32 %v4181, %v4293
      %v4310 = vlaneseq
      %v4311 = vshrl.u32 %v4310, 7
      %v4312 = vsub.s32 4, %v4311
      %v4313 = vrot.slane %v365, %v4312
      %v4314 = vmul.f32 %v4294, %v4313
      %v4315 = vmul.f32 %v4295, %v4313
      %v4316 = vmul.f32 %v4296, %v4313
      %v4317 = vmul.f32 %v4297, %v4313
      %v4318 = vmul.f32 %v4298, %v4313
      %v4319 = vmul.f32 %v4299, %v4313
      %v4320 = vmul.f32 %v4300, %v4313
      %v4321 = vmul.f32 %v4301, %v4313
      %v4322 = vmul.f32 %v4302, %v4313
      %v4323 = vmul.f32 %v4303, %v4313
      %v4324 = vmul.f32 %v4304, %v4313
      %v4325 = vmul.f32 %v4305, %v4313
      %v4326 = vmul.f32 %v4306, %v4313
      %v4327 = vmul.f32 %v4307, %v4313
      %v4328 = vmul.f32 %v4308, %v4313
      %v4329 = vmul.f32 %v4309, %v4313
      %v4330 = vlaneseq
      %v4331 = vshrl.u32 %v4330, 7
      %v4332 = vsub.s32 5, %v4331
      %v4333 = vrot.slane %v365, %v4332
      %v4334 = vadd.f32 %v4314, %v4333
      %v4335 = vadd.f32 %v4315, %v4333
      %v4336 = vadd.f32 %v4316, %v4333
      %v4337 = vadd.f32 %v4317, %v4333
      %v4338 = vadd.f32 %v4318, %v4333
      %v4339 = vadd.f32 %v4319, %v4333
      %v4340 = vadd.f32 %v4320, %v4333
      %v4341 = vadd.f32 %v4321, %v4333
      %v4342 = vadd.f32 %v4322, %v4333
      %v4343 = vadd.f32 %v4323, %v4333
      %v4344 = vadd.f32 %v4324, %v4333
      %v4345 = vadd.f32 %v4325, %v4333
      %v4346 = vadd.f32 %v4326, %v4333
      %v4347 = vadd.f32 %v4327, %v4333
      %v4348 = vadd.f32 %v4328, %v4333
      %v4349 = vadd.f32 %v4329, %v4333
      %v4350 = vld [vmem:[%s6] sm:$0xff]
      %v4351 = vld [vmem:[%s6 + $0x8] sm:$0xff]
      %v4352 = vld [vmem:[%s6 + $0x10] sm:$0xff]
      %v4353 = vld [vmem:[%s6 + $0x18] sm:$0xff]
      %v4354 = vld [vmem:[%s9] sm:$0x1]
      %v4356 = vlaneseq
      %v4357 = vshrl.u32 %v4356, 7
      %v4358 = vsub.s32 0, %v4357
      %v4359 = vrot.slane %v4354, %v4358
      %v4362 = vsel %vm408, %v4334, 0
      %v4365 = vsel %vm408, %v4335, 0
      %v4368 = vsel %vm408, %v4336, 0
      %v4371 = vsel %vm408, %v4337, 0
      %v4374 = vsel %vm408, %v4338, 0
      %v4377 = vsel %vm408, %v4339, 0
      %v4380 = vsel %vm408, %v4340, 0
      %v4383 = vsel %vm408, %v4341, 0
      %v4386 = vsel %vm408, %v4342, 0
      %v4389 = vsel %vm408, %v4343, 0
      %v4392 = vsel %vm408, %v4344, 0
      %v4395 = vsel %vm408, %v4345, 0
      %v4398 = vsel %vm408, %v4346, 0
      %v4401 = vsel %vm408, %v4347, 0
      %v4404 = vsel %vm408, %v4348, 0
      %v4407 = vsel %vm408, %v4349, 0
      %4409 = vmatprep.subr.mxu0 0.0
      %4410 = vmatpush1.msra.mxu0 %v4350
      %4411 = vmatprep.subr.mxu0 0.0
      %4412 = vmatpush1.msra.mxu0 %v4351
      %4413 = vmatprep.subr.mxu0 0.0
      %4414 = vmatpush1.msra.mxu0 %v4352
      %4415 = vmatprep.subr.mxu0 0.0
      %4416 = vmatpush1.msra.mxu0 %v4353
      %4417 = vmatprep.subr.mxu0 0.0
      %4418 = vmatpush1.msra.mxu0 0.0
      %4419 = vmatprep.subr.mxu0 0.0
      %4420 = vmatpush1.msra.mxu0 0.0
      %4421 = vmatprep.subr.mxu0 0.0
      %4422 = vmatpush1.msra.mxu0 0.0
      %4423 = vmatprep.subr.mxu0 0.0
      %4424 = vmatpush1.msra.mxu0 0.0
      %4425 = vmatprep.subr.mxu0 0.0
      %4426 = vmatpush1.msra.mxu0 0.0
      %4427 = vmatprep.subr.mxu0 0.0
      %4428 = vmatpush1.msra.mxu0 0.0
      %4429 = vmatprep.subr.mxu0 0.0
      %4430 = vmatpush1.msra.mxu0 0.0
      %4431 = vmatprep.subr.mxu0 0.0
      %4432 = vmatpush1.msra.mxu0 0.0
      %4433 = vmatprep.subr.mxu0 0.0
      %4434 = vmatpush1.msra.mxu0 0.0
      %4435 = vmatprep.subr.mxu0 0.0
      %4436 = vmatpush1.msra.mxu0 0.0
      %4437 = vmatprep.subr.mxu0 0.0
      %4438 = vmatpush1.msra.mxu0 0.0
      %4439 = vmatprep.subr.mxu0 0.0
      %4440 = vmatpush1.msra.mxu0 0.0
      %4441 = vmatprep.subr.mxu0 0.0
      %4442 = vmatpush1.msra.mxu0 0.0
      %4443 = vmatprep.subr.mxu0 0.0
      %4444 = vmatpush1.msra.mxu0 0.0
      %4445 = vmatprep.subr.mxu0 0.0
      %4446 = vmatpush1.msra.mxu0 0.0
      %4447 = vmatprep.subr.mxu0 0.0
      %4448 = vmatpush1.msra.mxu0 0.0
      %4449 = vmatprep.subr.mxu0 0.0
      %4450 = vmatpush1.msra.mxu0 0.0
      %4451 = vmatprep.subr.mxu0 0.0
      %4452 = vmatpush1.msra.mxu0 0.0
      %4453 = vmatprep.subr.mxu0 0.0
      %4454 = vmatpush1.msra.mxu0 0.0
      %4455 = vmatprep.subr.mxu0 0.0
      %4456 = vmatpush1.msra.mxu0 0.0
      %4457 = vmatprep.subr.mxu0 0.0
      %4458 = vmatpush1.msra.mxu0 0.0
      %4459 = vmatprep.subr.mxu0 0.0
      %4460 = vmatpush1.msra.mxu0 0.0
      %4461 = vmatprep.subr.mxu0 0.0
      %4462 = vmatpush1.msra.mxu0 0.0
      %4463 = vmatprep.subr.mxu0 0.0
      %4464 = vmatpush1.msra.mxu0 0.0
      %4465 = vmatprep.subr.mxu0 0.0
      %4466 = vmatpush1.msra.mxu0 0.0
      %4467 = vmatprep.subr.mxu0 0.0
      %4468 = vmatpush1.msra.mxu0 0.0
      %4469 = vmatprep.subr.mxu0 0.0
      %4470 = vmatpush1.msra.mxu0 0.0
      %4471 = vmatprep.subr.mxu0 0.0
      %4472 = vmatpush1.msra.mxu0 0.0
      %4473 = vmatprep.mubr.f32.mxu0 0.0
      %4474 = vmatmul.mubr.f32.gmra.mrb[0].mxu0 %v4362
      %v4475 = vpop.f32.mrb[0].mxu0
      %v4476 = vadd.f32 %v4359, %v4475
      %v4477 = vpop.f32.mrb[0].mxu0
      %4478 = vmatprep.mubr.f32.mxu0 0.0
      %4479 = vmatmul.mubr.f32.gmra.mrb[0].mxu0 %v4365
      %v4480 = vpop.f32.mrb[0].mxu0
      %v4481 = vadd.f32 %v4359, %v4480
      %v4482 = vpop.f32.mrb[0].mxu0
      %4483 = vmatprep.mubr.f32.mxu0 0.0
      %4484 = vmatmul.mubr.f32.gmra.mrb[0].mxu0 %v4368
      %v4485 = vpop.f32.mrb[0].mxu0
      %v4486 = vadd.f32 %v4359, %v4485
      %v4487 = vpop.f32.mrb[0].mxu0
      %4488 = vmatprep.mubr.f32.mxu0 0.0
      %4489 = vmatmul.mubr.f32.gmra.mrb[0].mxu0 %v4371
      %v4490 = vpop.f32.mrb[0].mxu0
      %v4491 = vadd.f32 %v4359, %v4490
      %v4492 = vpop.f32.mrb[0].mxu0
      %4493 = vmatprep.mubr.f32.mxu0 0.0
      %4494 = vmatmul.mubr.f32.gmra.mrb[0].mxu0 %v4374
      %v4495 = vpop.f32.mrb[0].mxu0
      %v4496 = vadd.f32 %v4359, %v4495
      %v4497 = vpop.f32.mrb[0].mxu0
      %4498 = vmatprep.mubr.f32.mxu0 0.0
      %4499 = vmatmul.mubr.f32.gmra.mrb[0].mxu0 %v4377
      %v4500 = vpop.f32.mrb[0].mxu0
      %v4501 = vadd.f32 %v4359, %v4500
      %v4502 = vpop.f32.mrb[0].mxu0
      %4503 = vmatprep.mubr.f32.mxu0 0.0
      %4504 = vmatmul.mubr.f32.gmra.mrb[0].mxu0 %v4380
      %v4505 = vpop.f32.mrb[0].mxu0
      %v4506 = vadd.f32 %v4359, %v4505
      %v4507 = vpop.f32.mrb[0].mxu0
      %4508 = vmatprep.mubr.f32.mxu0 0.0
      %4509 = vmatmul.mubr.f32.gmra.mrb[0].mxu0 %v4383
      %v4510 = vpop.f32.mrb[0].mxu0
      %v4511 = vadd.f32 %v4359, %v4510
      %v4512 = vpop.f32.mrb[0].mxu0
      %4513 = vmatprep.mubr.f32.mxu0 0.0
      %4514 = vmatmul.mubr.f32.gmra.mrb[0].mxu0 %v4386
      %v4515 = vpop.f32.mrb[0].mxu0
      %v4516 = vadd.f32 %v4359, %v4515
      %v4517 = vpop.f32.mrb[0].mxu0
      %4518 = vmatprep.mubr.f32.mxu0 0.0
      %4519 = vmatmul.mubr.f32.gmra.mrb[0].mxu0 %v4389
      %v4520 = vpop.f32.mrb[0].mxu0
      %v4521 = vadd.f32 %v4359, %v4520
      %v4522 = vpop.f32.mrb[0].mxu0
      %4523 = vmatprep.mubr.f32.mxu0 0.0
      %4524 = vmatmul.mubr.f32.gmra.mrb[0].mxu0 %v4392
      %v4525 = vpop.f32.mrb[0].mxu0
      %v4526 = vadd.f32 %v4359, %v4525
      %v4527 = vpop.f32.mrb[0].mxu0
      %4528 = vmatprep.mubr.f32.mxu0 0.0
      %4529 = vmatmul.mubr.f32.gmra.mrb[0].mxu0 %v4395
      %v4530 = vpop.f32.mrb[0].mxu0
      %v4531 = vadd.f32 %v4359, %v4530
      %v4532 = vpop.f32.mrb[0].mxu0
      %4533 = vmatprep.mubr.f32.mxu0 0.0
      %4534 = vmatmul.mubr.f32.gmra.mrb[0].mxu0 %v4398
      %v4535 = vpop.f32.mrb[0].mxu0
      %v4536 = vadd.f32 %v4359, %v4535
      %v4537 = vpop.f32.mrb[0].mxu0
      %4538 = vmatprep.mubr.f32.mxu0 0.0
      %4539 = vmatmul.mubr.f32.gmra.mrb[0].mxu0 %v4401
      %v4540 = vpop.f32.mrb[0].mxu0
      %v4541 = vadd.f32 %v4359, %v4540
      %v4542 = vpop.f32.mrb[0].mxu0
      %4543 = vmatprep.mubr.f32.mxu0 0.0
      %4544 = vmatmul.mubr.f32.gmra.mrb[0].mxu0 %v4404
      %v4545 = vpop.f32.mrb[0].mxu0
      %v4546 = vadd.f32 %v4359, %v4545
      %v4547 = vpop.f32.mrb[0].mxu0
      %4548 = vmatprep.mubr.f32.mxu0 0.0
      %4549 = vmatmul.mubr.f32.gmra.mrb[0].mxu0 %v4407
      %v4550 = vpop.f32.mrb[0].mxu0
      %v4551 = vadd.f32 %v4359, %v4550
      %v4552 = vpop.f32.mrb[0].mxu0
      %4553 = vdwg.mxu0
      %v4554 = vmax.f32 %v4476, 0.0
      %v4555 = vmax.f32 %v4481, 0.0
      %v4556 = vmax.f32 %v4486, 0.0
      %v4557 = vmax.f32 %v4491, 0.0
      %v4558 = vmax.f32 %v4496, 0.0
      %v4559 = vmax.f32 %v4501, 0.0
      %v4560 = vmax.f32 %v4506, 0.0
      %v4561 = vmax.f32 %v4511, 0.0
      %v4562 = vmax.f32 %v4516, 0.0
      %v4563 = vmax.f32 %v4521, 0.0
      %v4564 = vmax.f32 %v4526, 0.0
      %v4565 = vmax.f32 %v4531, 0.0
      %v4566 = vmax.f32 %v4536, 0.0
      %v4567 = vmax.f32 %v4541, 0.0
      %v4568 = vmax.f32 %v4546, 0.0
      %v4569 = vmax.f32 %v4551, 0.0
      %v4570 = vld [vmem:[%s7] sm:$0xff]
      %v4571 = vld [vmem:[%s7 + $0x8] sm:$0xff]
      %v4572 = vld [vmem:[%s7 + $0x10] sm:$0xff]
      %v4573 = vld [vmem:[%s7 + $0x18] sm:$0xff]
      %v4574 = vld [vmem:[%s7 + $0x20] sm:$0xff]
      %v4575 = vld [vmem:[%s7 + $0x28] sm:$0xff]
      %v4576 = vld [vmem:[%s7 + $0x30] sm:$0xff]
      %v4577 = vld [vmem:[%s7 + $0x38] sm:$0xff]
      %v4578 = vlaneseq
      %v4579 = vshrl.u32 %v4578, 7
      %v4580 = vsub.s32 0, %v4579
      %v4581 = vrot.slane %v366, %v4580
      %vm4582 = vcmask 523264
      %v4584 = vsel %vm4582, %v4554, 0
      %v4587 = vsel %vm4582, %v4555, 0
      %v4590 = vsel %vm4582, %v4556, 0
      %v4593 = vsel %vm4582, %v4557, 0
      %v4596 = vsel %vm4582, %v4558, 0
      %v4599 = vsel %vm4582, %v4559, 0
      %v4602 = vsel %vm4582, %v4560, 0
      %v4605 = vsel %vm4582, %v4561, 0
      %v4608 = vsel %vm4582, %v4562, 0
      %v4611 = vsel %vm4582, %v4563, 0
      %v4614 = vsel %vm4582, %v4564, 0
      %v4617 = vsel %vm4582, %v4565, 0
      %v4620 = vsel %vm4582, %v4566, 0
      %v4623 = vsel %vm4582, %v4567, 0
      %v4626 = vsel %vm4582, %v4568, 0
      %v4629 = vsel %vm4582, %v4569, 0
      %4631 = vmatprep.subr.mxu0 0.0
      %4632 = vmatpush1.msra.mxu0 %v4570
      %4633 = vmatprep.subr.mxu0 0.0
      %4634 = vmatpush1.msra.mxu0 %v4571
      %4635 = vmatprep.subr.mxu0 0.0
      %4636 = vmatpush1.msra.mxu0 %v4572
      %4637 = vmatprep.subr.mxu0 0.0
      %4638 = vmatpush1.msra.mxu0 %v4573
      %4639 = vmatprep.subr.mxu0 0.0
      %4640 = vmatpush1.msra.mxu0 %v4574
      %4641 = vmatprep.subr.mxu0 0.0
      %4642 = vmatpush1.msra.mxu0 %v4575
      %4643 = vmatprep.subr.mxu0 0.0
      %4644 = vmatpush1.msra.mxu0 %v4576
      %4645 = vmatprep.subr.mxu0 0.0
      %4646 = vmatpush1.msra.mxu0 %v4577
      %4647 = vmatprep.subr.mxu0 0.0
      %4648 = vmatpush1.msra.mxu0 0.0
      %4649 = vmatprep.subr.mxu0 0.0
      %4650 = vmatpush1.msra.mxu0 0.0
      %4651 = vmatprep.subr.mxu0 0.0
      %4652 = vmatpush1.msra.mxu0 0.0
      %4653 = vmatprep.subr.mxu0 0.0
      %4654 = vmatpush1.msra.mxu0 0.0
      %4655 = vmatprep.subr.mxu0 0.0
      %4656 = vmatpush1.msra.mxu0 0.0
      %4657 = vmatprep.subr.mxu0 0.0
      %4658 = vmatpush1.msra.mxu0 0.0
      %4659 = vmatprep.subr.mxu0 0.0
      %4660 = vmatpush1.msra.mxu0 0.0
      %4661 = vmatprep.subr.mxu0 0.0
      %4662 = vmatpush1.msra.mxu0 0.0
      %4663 = vmatprep.subr.mxu0 0.0
      %4664 = vmatpush1.msra.mxu0 0.0
      %4665 = vmatprep.subr.mxu0 0.0
      %4666 = vmatpush1.msra.mxu0 0.0
      %4667 = vmatprep.subr.mxu0 0.0
      %4668 = vmatpush1.msra.mxu0 0.0
      %4669 = vmatprep.subr.mxu0 0.0
      %4670 = vmatpush1.msra.mxu0 0.0
      %4671 = vmatprep.subr.mxu0 0.0
      %4672 = vmatpush1.msra.mxu0 0.0
      %4673 = vmatprep.subr.mxu0 0.0
      %4674 = vmatpush1.msra.mxu0 0.0
      %4675 = vmatprep.subr.mxu0 0.0
      %4676 = vmatpush1.msra.mxu0 0.0
      %4677 = vmatprep.subr.mxu0 0.0
      %4678 = vmatpush1.msra.mxu0 0.0
      %4679 = vmatprep.subr.mxu0 0.0
      %4680 = vmatpush1.msra.mxu0 0.0
      %4681 = vmatprep.subr.mxu0 0.0
      %4682 = vmatpush1.msra.mxu0 0.0
      %4683 = vmatprep.subr.mxu0 0.0
      %4684 = vmatpush1.msra.mxu0 0.0
      %4685 = vmatprep.subr.mxu0 0.0
      %4686 = vmatpush1.msra.mxu0 0.0
      %4687 = vmatprep.subr.mxu0 0.0
      %4688 = vmatpush1.msra.mxu0 0.0
      %4689 = vmatprep.subr.mxu0 0.0
      %4690 = vmatpush1.msra.mxu0 0.0
      %4691 = vmatprep.subr.mxu0 0.0
      %4692 = vmatpush1.msra.mxu0 0.0
      %4693 = vmatprep.subr.mxu0 0.0
      %4694 = vmatpush1.msra.mxu0 0.0
      %4695 = vmatprep.mubr.f32.mxu0 0.0
      %4696 = vmatmul.mubr.f32.gmra.mrb[0].mxu0 %v4584
      %v4697 = vpop.f32.mrb[0].mxu0
      %v4698 = vadd.f32 %v4581, %v4697
      %v4699 = vpop.f32.mrb[0].mxu0
      %4700 = vmatprep.mubr.f32.mxu0 0.0
      %4701 = vmatmul.mubr.f32.gmra.mrb[0].mxu0 %v4587
      %v4702 = vpop.f32.mrb[0].mxu0
      %v4703 = vadd.f32 %v4581, %v4702
      %v4704 = vpop.f32.mrb[0].mxu0
      %4705 = vmatprep.mubr.f32.mxu0 0.0
      %4706 = vmatmul.mubr.f32.gmra.mrb[0].mxu0 %v4590
      %v4707 = vpop.f32.mrb[0].mxu0
      %v4708 = vadd.f32 %v4581, %v4707
      %v4709 = vpop.f32.mrb[0].mxu0
      %4710 = vmatprep.mubr.f32.mxu0 0.0
      %4711 = vmatmul.mubr.f32.gmra.mrb[0].mxu0 %v4593
      %v4712 = vpop.f32.mrb[0].mxu0
      %v4713 = vadd.f32 %v4581, %v4712
      %v4714 = vpop.f32.mrb[0].mxu0
      %4715 = vmatprep.mubr.f32.mxu0 0.0
      %4716 = vmatmul.mubr.f32.gmra.mrb[0].mxu0 %v4596
      %v4717 = vpop.f32.mrb[0].mxu0
      %v4718 = vadd.f32 %v4581, %v4717
      %v4719 = vpop.f32.mrb[0].mxu0
      %4720 = vmatprep.mubr.f32.mxu0 0.0
      %4721 = vmatmul.mubr.f32.gmra.mrb[0].mxu0 %v4599
      %v4722 = vpop.f32.mrb[0].mxu0
      %v4723 = vadd.f32 %v4581, %v4722
      %v4724 = vpop.f32.mrb[0].mxu0
      %4725 = vmatprep.mubr.f32.mxu0 0.0
      %4726 = vmatmul.mubr.f32.gmra.mrb[0].mxu0 %v4602
      %v4727 = vpop.f32.mrb[0].mxu0
      %v4728 = vadd.f32 %v4581, %v4727
      %v4729 = vpop.f32.mrb[0].mxu0
      %4730 = vmatprep.mubr.f32.mxu0 0.0
      %4731 = vmatmul.mubr.f32.gmra.mrb[0].mxu0 %v4605
      %v4732 = vpop.f32.mrb[0].mxu0
      %v4733 = vadd.f32 %v4581, %v4732
      %v4734 = vpop.f32.mrb[0].mxu0
      %4735 = vmatprep.mubr.f32.mxu0 0.0
      %4736 = vmatmul.mubr.f32.gmra.mrb[0].mxu0 %v4608
      %v4737 = vpop.f32.mrb[0].mxu0
      %v4738 = vadd.f32 %v4581, %v4737
      %v4739 = vpop.f32.mrb[0].mxu0
      %4740 = vmatprep.mubr.f32.mxu0 0.0
      %4741 = vmatmul.mubr.f32.gmra.mrb[0].mxu0 %v4611
      %v4742 = vpop.f32.mrb[0].mxu0
      %v4743 = vadd.f32 %v4581, %v4742
      %v4744 = vpop.f32.mrb[0].mxu0
      %4745 = vmatprep.mubr.f32.mxu0 0.0
      %4746 = vmatmul.mubr.f32.gmra.mrb[0].mxu0 %v4614
      %v4747 = vpop.f32.mrb[0].mxu0
      %v4748 = vadd.f32 %v4581, %v4747
      %v4749 = vpop.f32.mrb[0].mxu0
      %4750 = vmatprep.mubr.f32.mxu0 0.0
      %4751 = vmatmul.mubr.f32.gmra.mrb[0].mxu0 %v4617
      %v4752 = vpop.f32.mrb[0].mxu0
      %v4753 = vadd.f32 %v4581, %v4752
      %v4754 = vpop.f32.mrb[0].mxu0
      %4755 = vmatprep.mubr.f32.mxu0 0.0
      %4756 = vmatmul.mubr.f32.gmra.mrb[0].mxu0 %v4620
      %v4757 = vpop.f32.mrb[0].mxu0
      %v4758 = vadd.f32 %v4581, %v4757
      %v4759 = vpop.f32.mrb[0].mxu0
      %4760 = vmatprep.mubr.f32.mxu0 0.0
      %4761 = vmatmul.mubr.f32.gmra.mrb[0].mxu0 %v4623
      %v4762 = vpop.f32.mrb[0].mxu0
      %v4763 = vadd.f32 %v4581, %v4762
      %v4764 = vpop.f32.mrb[0].mxu0
      %4765 = vmatprep.mubr.f32.mxu0 0.0
      %4766 = vmatmul.mubr.f32.gmra.mrb[0].mxu0 %v4626
      %v4767 = vpop.f32.mrb[0].mxu0
      %v4768 = vadd.f32 %v4581, %v4767
      %v4769 = vpop.f32.mrb[0].mxu0
      %4770 = vmatprep.mubr.f32.mxu0 0.0
      %4771 = vmatmul.mubr.f32.gmra.mrb[0].mxu0 %v4629
      %v4772 = vpop.f32.mrb[0].mxu0
      %v4773 = vadd.f32 %v4581, %v4772
      %v4774 = vpop.f32.mrb[0].mxu0
      %4775 = vdwg.mxu0
      %v4776 = vadd.f32 %v4334, %v4698
      %v4777 = vadd.f32 %v4335, %v4703
      %v4778 = vadd.f32 %v4336, %v4708
      %v4779 = vadd.f32 %v4337, %v4713
      %v4780 = vadd.f32 %v4338, %v4718
      %v4781 = vadd.f32 %v4339, %v4723
      %v4782 = vadd.f32 %v4340, %v4728
      %v4783 = vadd.f32 %v4341, %v4733
      %v4784 = vadd.f32 %v4342, %v4738
      %v4785 = vadd.f32 %v4343, %v4743
      %v4786 = vadd.f32 %v4344, %v4748
      %v4787 = vadd.f32 %v4345, %v4753
      %v4788 = vadd.f32 %v4346, %v4758
      %v4789 = vadd.f32 %v4347, %v4763
      %v4790 = vadd.f32 %v4348, %v4768
      %v4791 = vadd.f32 %v4349, %v4773
      %v4792 = vsel %vm408, %v4776, 0.0
      %4793 = vadd.xlane.f32.xlu0 %v4792
      %v4794 = vpop.xlane.xlu0 %4793
      %v4795 = vsel %vm408, %v4777, 0.0
      %4796 = vadd.xlane.f32.xlu0 %v4795
      %v4797 = vpop.xlane.xlu0 %4796
      %v4798 = vsel %vm408, %v4778, 0.0
      %4799 = vadd.xlane.f32.xlu0 %v4798
      %v4800 = vpop.xlane.xlu0 %4799
      %v4801 = vsel %vm408, %v4779, 0.0
      %4802 = vadd.xlane.f32.xlu0 %v4801
      %v4803 = vpop.xlane.xlu0 %4802
      %v4804 = vsel %vm408, %v4780, 0.0
      %4805 = vadd.xlane.f32.xlu0 %v4804
      %v4806 = vpop.xlane.xlu0 %4805
      %v4807 = vsel %vm408, %v4781, 0.0
      %4808 = vadd.xlane.f32.xlu0 %v4807
      %v4809 = vpop.xlane.xlu0 %4808
      %v4810 = vsel %vm408, %v4782, 0.0
      %4811 = vadd.xlane.f32.xlu0 %v4810
      %v4812 = vpop.xlane.xlu0 %4811
      %v4813 = vsel %vm408, %v4783, 0.0
      %4814 = vadd.xlane.f32.xlu0 %v4813
      %v4815 = vpop.xlane.xlu0 %4814
      %v4816 = vsel %vm408, %v4784, 0.0
      %4817 = vadd.xlane.f32.xlu0 %v4816
      %v4818 = vpop.xlane.xlu0 %4817
      %v4819 = vsel %vm408, %v4785, 0.0
      %4820 = vadd.xlane.f32.xlu0 %v4819
      %v4821 = vpop.xlane.xlu0 %4820
      %v4822 = vsel %vm408, %v4786, 0.0
      %4823 = vadd.xlane.f32.xlu0 %v4822
      %v4824 = vpop.xlane.xlu0 %4823
      %v4825 = vsel %vm408, %v4787, 0.0
      %4826 = vadd.xlane.f32.xlu0 %v4825
      %v4827 = vpop.xlane.xlu0 %4826
      %v4828 = vsel %vm408, %v4788, 0.0
      %4829 = vadd.xlane.f32.xlu0 %v4828
      %v4830 = vpop.xlane.xlu0 %4829
      %v4831 = vsel %vm408, %v4789, 0.0
      %4832 = vadd.xlane.f32.xlu0 %v4831
      %v4833 = vpop.xlane.xlu0 %4832
      %v4834 = vsel %vm408, %v4790, 0.0
      %4835 = vadd.xlane.f32.xlu0 %v4834
      %v4836 = vpop.xlane.xlu0 %4835
      %v4837 = vsel %vm408, %v4791, 0.0
      %4838 = vadd.xlane.f32.xlu0 %v4837
      %v4839 = vpop.xlane.xlu0 %4838
      %v4840 = vmul.f32 %v4794, %v4149
      %v4841 = vmul.f32 %v4797, %v4149
      %v4842 = vmul.f32 %v4800, %v4149
      %v4843 = vmul.f32 %v4803, %v4149
      %v4844 = vmul.f32 %v4806, %v4149
      %v4845 = vmul.f32 %v4809, %v4149
      %v4846 = vmul.f32 %v4812, %v4149
      %v4847 = vmul.f32 %v4815, %v4149
      %v4848 = vmul.f32 %v4818, %v4149
      %v4849 = vmul.f32 %v4821, %v4149
      %v4850 = vmul.f32 %v4824, %v4149
      %v4851 = vmul.f32 %v4827, %v4149
      %v4852 = vmul.f32 %v4830, %v4149
      %v4853 = vmul.f32 %v4833, %v4149
      %v4854 = vmul.f32 %v4836, %v4149
      %v4855 = vmul.f32 %v4839, %v4149
      %v4856 = vsub.f32 %v4776, %v4840
      %v4857 = vsub.f32 %v4777, %v4841
      %v4858 = vsub.f32 %v4778, %v4842
      %v4859 = vsub.f32 %v4779, %v4843
      %v4860 = vsub.f32 %v4780, %v4844
      %v4861 = vsub.f32 %v4781, %v4845
      %v4862 = vsub.f32 %v4782, %v4846
      %v4863 = vsub.f32 %v4783, %v4847
      %v4864 = vsub.f32 %v4784, %v4848
      %v4865 = vsub.f32 %v4785, %v4849
      %v4866 = vsub.f32 %v4786, %v4850
      %v4867 = vsub.f32 %v4787, %v4851
      %v4868 = vsub.f32 %v4788, %v4852
      %v4869 = vsub.f32 %v4789, %v4853
      %v4870 = vsub.f32 %v4790, %v4854
      %v4871 = vsub.f32 %v4791, %v4855
      %v4872 = vmul.f32 %v4856, %v4856
      %v4873 = vmul.f32 %v4857, %v4857
      %v4874 = vmul.f32 %v4858, %v4858
      %v4875 = vmul.f32 %v4859, %v4859
      %v4876 = vmul.f32 %v4860, %v4860
      %v4877 = vmul.f32 %v4861, %v4861
      %v4878 = vmul.f32 %v4862, %v4862
      %v4879 = vmul.f32 %v4863, %v4863
      %v4880 = vmul.f32 %v4864, %v4864
      %v4881 = vmul.f32 %v4865, %v4865
      %v4882 = vmul.f32 %v4866, %v4866
      %v4883 = vmul.f32 %v4867, %v4867
      %v4884 = vmul.f32 %v4868, %v4868
      %v4885 = vmul.f32 %v4869, %v4869
      %v4886 = vmul.f32 %v4870, %v4870
      %v4887 = vmul.f32 %v4871, %v4871
      %v4888 = vsel %vm408, %v4872, 0.0
      %4889 = vadd.xlane.f32.xlu0 %v4888
      %v4890 = vpop.xlane.xlu0 %4889
      %v4891 = vsel %vm408, %v4873, 0.0
      %4892 = vadd.xlane.f32.xlu0 %v4891
      %v4893 = vpop.xlane.xlu0 %4892
      %v4894 = vsel %vm408, %v4874, 0.0
      %4895 = vadd.xlane.f32.xlu0 %v4894
      %v4896 = vpop.xlane.xlu0 %4895
      %v4897 = vsel %vm408, %v4875, 0.0
      %4898 = vadd.xlane.f32.xlu0 %v4897
      %v4899 = vpop.xlane.xlu0 %4898
      %v4900 = vsel %vm408, %v4876, 0.0
      %4901 = vadd.xlane.f32.xlu0 %v4900
      %v4902 = vpop.xlane.xlu0 %4901
      %v4903 = vsel %vm408, %v4877, 0.0
      %4904 = vadd.xlane.f32.xlu0 %v4903
      %v4905 = vpop.xlane.xlu0 %4904
      %v4906 = vsel %vm408, %v4878, 0.0
      %4907 = vadd.xlane.f32.xlu0 %v4906
      %v4908 = vpop.xlane.xlu0 %4907
      %v4909 = vsel %vm408, %v4879, 0.0
      %4910 = vadd.xlane.f32.xlu0 %v4909
      %v4911 = vpop.xlane.xlu0 %4910
      %v4912 = vsel %vm408, %v4880, 0.0
      %4913 = vadd.xlane.f32.xlu0 %v4912
      %v4914 = vpop.xlane.xlu0 %4913
      %v4915 = vsel %vm408, %v4881, 0.0
      %4916 = vadd.xlane.f32.xlu0 %v4915
      %v4917 = vpop.xlane.xlu0 %4916
      %v4918 = vsel %vm408, %v4882, 0.0
      %4919 = vadd.xlane.f32.xlu0 %v4918
      %v4920 = vpop.xlane.xlu0 %4919
      %v4921 = vsel %vm408, %v4883, 0.0
      %4922 = vadd.xlane.f32.xlu0 %v4921
      %v4923 = vpop.xlane.xlu0 %4922
      %v4924 = vsel %vm408, %v4884, 0.0
      %4925 = vadd.xlane.f32.xlu0 %v4924
      %v4926 = vpop.xlane.xlu0 %4925
      %v4927 = vsel %vm408, %v4885, 0.0
      %4928 = vadd.xlane.f32.xlu0 %v4927
      %v4929 = vpop.xlane.xlu0 %4928
      %v4930 = vsel %vm408, %v4886, 0.0
      %4931 = vadd.xlane.f32.xlu0 %v4930
      %v4932 = vpop.xlane.xlu0 %4931
      %v4933 = vsel %vm408, %v4887, 0.0
      %4934 = vadd.xlane.f32.xlu0 %v4933
      %v4935 = vpop.xlane.xlu0 %4934
      %v4936 = vmul.f32 %v4890, %v4149
      %v4937 = vmul.f32 %v4893, %v4149
      %v4938 = vmul.f32 %v4896, %v4149
      %v4939 = vmul.f32 %v4899, %v4149
      %v4940 = vmul.f32 %v4902, %v4149
      %v4941 = vmul.f32 %v4905, %v4149
      %v4942 = vmul.f32 %v4908, %v4149
      %v4943 = vmul.f32 %v4911, %v4149
      %v4944 = vmul.f32 %v4914, %v4149
      %v4945 = vmul.f32 %v4917, %v4149
      %v4946 = vmul.f32 %v4920, %v4149
      %v4947 = vmul.f32 %v4923, %v4149
      %v4948 = vmul.f32 %v4926, %v4149
      %v4949 = vmul.f32 %v4929, %v4149
      %v4950 = vmul.f32 %v4932, %v4149
      %v4951 = vmul.f32 %v4935, %v4149
      %v4952 = vadd.f32 %v4936, 1e-05
      %v4953 = vadd.f32 %v4937, 1e-05
      %v4954 = vadd.f32 %v4938, 1e-05
      %v4955 = vadd.f32 %v4939, 1e-05
      %v4956 = vadd.f32 %v4940, 1e-05
      %v4957 = vadd.f32 %v4941, 1e-05
      %v4958 = vadd.f32 %v4942, 1e-05
      %v4959 = vadd.f32 %v4943, 1e-05
      %v4960 = vadd.f32 %v4944, 1e-05
      %v4961 = vadd.f32 %v4945, 1e-05
      %v4962 = vadd.f32 %v4946, 1e-05
      %v4963 = vadd.f32 %v4947, 1e-05
      %v4964 = vadd.f32 %v4948, 1e-05
      %v4965 = vadd.f32 %v4949, 1e-05
      %v4966 = vadd.f32 %v4950, 1e-05
      %v4967 = vadd.f32 %v4951, 1e-05
      %v4968 = vrsqrt.pop %v4952
      %v4969 = vrsqrt.pop %v4953
      %v4970 = vrsqrt.pop %v4954
      %v4971 = vrsqrt.pop %v4955
      %v4972 = vrsqrt.pop %v4956
      %v4973 = vrsqrt.pop %v4957
      %v4974 = vrsqrt.pop %v4958
      %v4975 = vrsqrt.pop %v4959
      %v4976 = vrsqrt.pop %v4960
      %v4977 = vrsqrt.pop %v4961
      %v4978 = vrsqrt.pop %v4962
      %v4979 = vrsqrt.pop %v4963
      %v4980 = vrsqrt.pop %v4964
      %v4981 = vrsqrt.pop %v4965
      %v4982 = vrsqrt.pop %v4966
      %v4983 = vrsqrt.pop %v4967
      %v4984 = vmul.f32 %v4856, %v4968
      %v4985 = vmul.f32 %v4857, %v4969
      %v4986 = vmul.f32 %v4858, %v4970
      %v4987 = vmul.f32 %v4859, %v4971
      %v4988 = vmul.f32 %v4860, %v4972
      %v4989 = vmul.f32 %v4861, %v4973
      %v4990 = vmul.f32 %v4862, %v4974
      %v4991 = vmul.f32 %v4863, %v4975
      %v4992 = vmul.f32 %v4864, %v4976
      %v4993 = vmul.f32 %v4865, %v4977
      %v4994 = vmul.f32 %v4866, %v4978
      %v4995 = vmul.f32 %v4867, %v4979
      %v4996 = vmul.f32 %v4868, %v4980
      %v4997 = vmul.f32 %v4869, %v4981
      %v4998 = vmul.f32 %v4870, %v4982
      %v4999 = vmul.f32 %v4871, %v4983
      %v5000 = vlaneseq
      %v5001 = vshrl.u32 %v5000, 7
      %v5002 = vsub.s32 6, %v5001
      %v5003 = vrot.slane %v365, %v5002
      %v5004 = vmul.f32 %v4984, %v5003
      %v5005 = vmul.f32 %v4985, %v5003
      %v5006 = vmul.f32 %v4986, %v5003
      %v5007 = vmul.f32 %v4987, %v5003
      %v5008 = vmul.f32 %v4988, %v5003
      %v5009 = vmul.f32 %v4989, %v5003
      %v5010 = vmul.f32 %v4990, %v5003
      %v5011 = vmul.f32 %v4991, %v5003
      %v5012 = vmul.f32 %v4992, %v5003
      %v5013 = vmul.f32 %v4993, %v5003
      %v5014 = vmul.f32 %v4994, %v5003
      %v5015 = vmul.f32 %v4995, %v5003
      %v5016 = vmul.f32 %v4996, %v5003
      %v5017 = vmul.f32 %v4997, %v5003
      %v5018 = vmul.f32 %v4998, %v5003
      %v5019 = vmul.f32 %v4999, %v5003
      %v5020 = vlaneseq
      %v5021 = vshrl.u32 %v5020, 7
      %v5022 = vsub.s32 7, %v5021
      %v5023 = vrot.slane %v365, %v5022
      %v5024 = vadd.f32 %v5004, %v5023
      %v5025 = vadd.f32 %v5005, %v5023
      %v5026 = vadd.f32 %v5006, %v5023
      %v5027 = vadd.f32 %v5007, %v5023
      %v5028 = vadd.f32 %v5008, %v5023
      %v5029 = vadd.f32 %v5009, %v5023
      %v5030 = vadd.f32 %v5010, %v5023
      %v5031 = vadd.f32 %v5011, %v5023
      %v5032 = vadd.f32 %v5012, %v5023
      %v5033 = vadd.f32 %v5013, %v5023
      %v5034 = vadd.f32 %v5014, %v5023
      %v5035 = vadd.f32 %v5015, %v5023
      %v5036 = vadd.f32 %v5016, %v5023
      %v5037 = vadd.f32 %v5017, %v5023
      %v5038 = vadd.f32 %v5018, %v5023
      %v5039 = vadd.f32 %v5019, %v5023
      %v5040 = vadd.f32 %v5024, %v384
      %v5041 = vadd.f32 %v5025, %v385
      %v5042 = vadd.f32 %v5026, %v386
      %v5043 = vadd.f32 %v5027, %v387
      %v5044 = vadd.f32 %v5028, %v388
      %v5045 = vadd.f32 %v5029, %v389
      %v5046 = vadd.f32 %v5030, %v390
      %v5047 = vadd.f32 %v5031, %v391
      %v5048 = vadd.f32 %v5032, %v392
      %v5049 = vadd.f32 %v5033, %v393
      %v5050 = vadd.f32 %v5034, %v394
      %v5051 = vadd.f32 %v5035, %v395
      %v5052 = vadd.f32 %v5036, %v396
      %v5053 = vadd.f32 %v5037, %v397
      %v5054 = vadd.f32 %v5038, %v398
      %v5055 = vadd.f32 %v5039, %v399
      %v5056 = vadd.f32 %v5040, %v4334
      %v5057 = vadd.f32 %v5041, %v4335
      %v5058 = vadd.f32 %v5042, %v4336
      %v5059 = vadd.f32 %v5043, %v4337
      %v5060 = vadd.f32 %v5044, %v4338
      %v5061 = vadd.f32 %v5045, %v4339
      %v5062 = vadd.f32 %v5046, %v4340
      %v5063 = vadd.f32 %v5047, %v4341
      %v5064 = vadd.f32 %v5048, %v4342
      %v5065 = vadd.f32 %v5049, %v4343
      %v5066 = vadd.f32 %v5050, %v4344
      %v5067 = vadd.f32 %v5051, %v4345
      %v5068 = vadd.f32 %v5052, %v4346
      %v5069 = vadd.f32 %v5053, %v4347
      %v5070 = vadd.f32 %v5054, %v4348
      %v5071 = vadd.f32 %v5055, %v4349
      %v5088 = vrot.slane %v5057, 7
      %vm5089 = vcmask 1041409
      %v5090 = vsel %vm5089, %v5088, %v5056
      %v5091 = vrot.slane %v5058, 6
      %vm5092 = vcmask 1042434
      %v5093 = vsel %vm5092, %v5091, %v5090
      %v5094 = vrot.slane %v5059, 5
      %vm5095 = vcmask 1043459
      %v5096 = vsel %vm5095, %v5094, %v5093
      %v5097 = vrot.slane %v5060, 4
      %vm5098 = vcmask 1044484
      %v5099 = vsel %vm5098, %v5097, %v5096
      %v5100 = vrot.slane %v5061, 3
      %vm5101 = vcmask 1045509
      %v5102 = vsel %vm5101, %v5100, %v5099
      %v5103 = vrot.slane %v5062, 2
      %vm5104 = vcmask 1046534
      %v5105 = vsel %vm5104, %v5103, %v5102
      %v5106 = vrot.slane %v5063, 1
      %vm5107 = vcmask 1047559
      %v5108 = vsel %vm5107, %v5106, %v5105
      %v5109 = vrot.slane %v5065, 7
      %v5110 = vsel %vm5089, %v5109, %v5064
      %v5111 = vrot.slane %v5066, 6
      %v5112 = vsel %vm5092, %v5111, %v5110
      %v5113 = vrot.slane %v5067, 5
      %v5114 = vsel %vm5095, %v5113, %v5112
      %v5115 = vrot.slane %v5068, 4
      %v5116 = vsel %vm5098, %v5115, %v5114
      %v5117 = vrot.slane %v5069, 3
      %v5118 = vsel %vm5101, %v5117, %v5116
      %v5119 = vrot.slane %v5070, 2
      %v5120 = vsel %vm5104, %v5119, %v5118
      %v5121 = vrot.slane %v5071, 1
      %v5122 = vsel %vm5107, %v5121, %v5120
      %v5125 = vrot.slane %v5056, 1
      %v5126 = vsel %vm5089, %v5057, %v5125
      %v5127 = vrot.slane %v5058, 7
      %v5128 = vsel %vm5092, %v5127, %v5126
      %v5129 = vrot.slane %v5059, 6
      %v5130 = vsel %vm5095, %v5129, %v5128
      %v5131 = vrot.slane %v5060, 5
      %v5132 = vsel %vm5098, %v5131, %v5130
      %v5133 = vrot.slane %v5061, 4
      %v5134 = vsel %vm5101, %v5133, %v5132
      %v5135 = vrot.slane %v5062, 3
      %v5136 = vsel %vm5104, %v5135, %v5134
      %v5137 = vrot.slane %v5063, 2
      %v5138 = vsel %vm5107, %v5137, %v5136
      %v5139 = vrot.slane %v5064, 1
      %v5140 = vsel %vm5089, %v5065, %v5139
      %v5141 = vrot.slane %v5066, 7
      %v5142 = vsel %vm5092, %v5141, %v5140
      %v5143 = vrot.slane %v5067, 6
      %v5144 = vsel %vm5095, %v5143, %v5142
      %v5145 = vrot.slane %v5068, 5
      %v5146 = vsel %vm5098, %v5145, %v5144
      %v5147 = vrot.slane %v5069, 4
      %v5148 = vsel %vm5101, %v5147, %v5146
      %v5149 = vrot.slane %v5070, 3
      %v5150 = vsel %vm5104, %v5149, %v5148
      %v5151 = vrot.slane %v5071, 2
      %v5152 = vsel %vm5107, %v5151, %v5150
      %5153 = vrot.lane.b32.xlu0 %v5138, 32
      %v5154 = vpop.permute.xlu0 %5153
      %5155 = vrot.lane.b32.xlu0 %v5152, 32
      %v5156 = vpop.permute.xlu0 %5155
      %v5159 = vrot.slane %v5056, 2
      %v5160 = vrot.slane %v5057, 1
      %v5161 = vsel %vm5089, %v5160, %v5159
      %v5162 = vsel %vm5092, %v5058, %v5161
      %v5163 = vrot.slane %v5059, 7
      %v5164 = vsel %vm5095, %v5163, %v5162
      %v5165 = vrot.slane %v5060, 6
      %v5166 = vsel %vm5098, %v5165, %v5164
      %v5167 = vrot.slane %v5061, 5
      %v5168 = vsel %vm5101, %v5167, %v5166
      %v5169 = vrot.slane %v5062, 4
      %v5170 = vsel %vm5104, %v5169, %v5168
      %v5171 = vrot.slane %v5063, 3
      %v5172 = vsel %vm5107, %v5171, %v5170
      %v5173 = vrot.slane %v5064, 2
      %v5174 = vrot.slane %v5065, 1
      %v5175 = vsel %vm5089, %v5174, %v5173
      %v5176 = vsel %vm5092, %v5066, %v5175
      %v5177 = vrot.slane %v5067, 7
      %v5178 = vsel %vm5095, %v5177, %v5176
      %v5179 = vrot.slane %v5068, 6
      %v5180 = vsel %vm5098, %v5179, %v5178
      %v5181 = vrot.slane %v5069, 5
      %v5182 = vsel %vm5101, %v5181, %v5180
      %v5183 = vrot.slane %v5070, 4
      %v5184 = vsel %vm5104, %v5183, %v5182
      %v5185 = vrot.slane %v5071, 3
      %v5186 = vsel %vm5107, %v5185, %v5184
      %5187 = vrot.lane.b32.xlu0 %v5172, 64
      %v5188 = vpop.permute.xlu0 %5187
      %5189 = vrot.lane.b32.xlu0 %v5186, 64
      %v5190 = vpop.permute.xlu0 %5189
      %v5193 = vrot.slane %v5056, 3
      %v5194 = vrot.slane %v5057, 2
      %v5195 = vsel %vm5089, %v5194, %v5193
      %v5196 = vrot.slane %v5058, 1
      %v5197 = vsel %vm5092, %v5196, %v5195
      %v5198 = vsel %vm5095, %v5059, %v5197
      %v5199 = vrot.slane %v5060, 7
      %v5200 = vsel %vm5098, %v5199, %v5198
      %v5201 = vrot.slane %v5061, 6
      %v5202 = vsel %vm5101, %v5201, %v5200
      %v5203 = vrot.slane %v5062, 5
      %v5204 = vsel %vm5104, %v5203, %v5202
      %v5205 = vrot.slane %v5063, 4
      %v5206 = vsel %vm5107, %v5205, %v5204
      %v5207 = vrot.slane %v5064, 3
      %v5208 = vrot.slane %v5065, 2
      %v5209 = vsel %vm5089, %v5208, %v5207
      %v5210 = vrot.slane %v5066, 1
      %v5211 = vsel %vm5092, %v5210, %v5209
      %v5212 = vsel %vm5095, %v5067, %v5211
      %v5213 = vrot.slane %v5068, 7
      %v5214 = vsel %vm5098, %v5213, %v5212
      %v5215 = vrot.slane %v5069, 6
      %v5216 = vsel %vm5101, %v5215, %v5214
      %v5217 = vrot.slane %v5070, 5
      %v5218 = vsel %vm5104, %v5217, %v5216
      %v5219 = vrot.slane %v5071, 4
      %v5220 = vsel %vm5107, %v5219, %v5218
      %5221 = vrot.lane.b32.xlu0 %v5206, 96
      %v5222 = vpop.permute.xlu0 %5221
      %5223 = vrot.lane.b32.xlu0 %v5220, 96
      %v5224 = vpop.permute.xlu0 %5223
      %v5227 = vrot.slane %v5056, 4
      %v5228 = vrot.slane %v5057, 3
      %v5229 = vsel %vm5089, %v5228, %v5227
      %v5230 = vrot.slane %v5058, 2
      %v5231 = vsel %vm5092, %v5230, %v5229
      %v5232 = vrot.slane %v5059, 1
      %v5233 = vsel %vm5095, %v5232, %v5231
      %v5234 = vsel %vm5098, %v5060, %v5233
      %v5235 = vrot.slane %v5061, 7
      %v5236 = vsel %vm5101, %v5235, %v5234
      %v5237 = vrot.slane %v5062, 6
      %v5238 = vsel %vm5104, %v5237, %v5236
      %v5239 = vrot.slane %v5063, 5
      %v5240 = vsel %vm5107, %v5239, %v5238
      %v5241 = vrot.slane %v5064, 4
      %v5242 = vrot.slane %v5065, 3
      %v5243 = vsel %vm5089, %v5242, %v5241
      %v5244 = vrot.slane %v5066, 2
      %v5245 = vsel %vm5092, %v5244, %v5243
      %v5246 = vrot.slane %v5067, 1
      %v5247 = vsel %vm5095, %v5246, %v5245
      %v5248 = vsel %vm5098, %v5068, %v5247
      %v5249 = vrot.slane %v5069, 7
      %v5250 = vsel %vm5101, %v5249, %v5248
      %v5251 = vrot.slane %v5070, 6
      %v5252 = vsel %vm5104, %v5251, %v5250
      %v5253 = vrot.slane %v5071, 5
      %v5254 = vsel %vm5107, %v5253, %v5252
      %v5257 = vrot.slane %v5056, 5
      %v5258 = vrot.slane %v5057, 4
      %v5259 = vsel %vm5089, %v5258, %v5257
      %v5260 = vrot.slane %v5058, 3
      %v5261 = vsel %vm5092, %v5260, %v5259
      %v5262 = vrot.slane %v5059, 2
      %v5263 = vsel %vm5095, %v5262, %v5261
      %v5264 = vrot.slane %v5060, 1
      %v5265 = vsel %vm5098, %v5264, %v5263
      %v5266 = vsel %vm5101, %v5061, %v5265
      %v5267 = vrot.slane %v5062, 7
      %v5268 = vsel %vm5104, %v5267, %v5266
      %v5269 = vrot.slane %v5063, 6
      %v5270 = vsel %vm5107, %v5269, %v5268
      %v5271 = vrot.slane %v5064, 5
      %v5272 = vrot.slane %v5065, 4
      %v5273 = vsel %vm5089, %v5272, %v5271
      %v5274 = vrot.slane %v5066, 3
      %v5275 = vsel %vm5092, %v5274, %v5273
      %v5276 = vrot.slane %v5067, 2
      %v5277 = vsel %vm5095, %v5276, %v5275
      %v5278 = vrot.slane %v5068, 1
      %v5279 = vsel %vm5098, %v5278, %v5277
      %v5280 = vsel %vm5101, %v5069, %v5279
      %v5281 = vrot.slane %v5070, 7
      %v5282 = vsel %vm5104, %v5281, %v5280
      %v5283 = vrot.slane %v5071, 6
      %v5284 = vsel %vm5107, %v5283, %v5282
      %5285 = vrot.lane.b32.xlu0 %v5270, 32
      %v5286 = vpop.permute.xlu0 %5285
      %5287 = vrot.lane.b32.xlu0 %v5284, 32
      %v5288 = vpop.permute.xlu0 %5287
      %v5291 = vrot.slane %v5056, 6
      %v5292 = vrot.slane %v5057, 5
      %v5293 = vsel %vm5089, %v5292, %v5291
      %v5294 = vrot.slane %v5058, 4
      %v5295 = vsel %vm5092, %v5294, %v5293
      %v5296 = vrot.slane %v5059, 3
      %v5297 = vsel %vm5095, %v5296, %v5295
      %v5298 = vrot.slane %v5060, 2
      %v5299 = vsel %vm5098, %v5298, %v5297
      %v5300 = vrot.slane %v5061, 1
      %v5301 = vsel %vm5101, %v5300, %v5299
      %v5302 = vsel %vm5104, %v5062, %v5301
      %v5303 = vrot.slane %v5063, 7
      %v5304 = vsel %vm5107, %v5303, %v5302
      %v5305 = vrot.slane %v5064, 6
      %v5306 = vrot.slane %v5065, 5
      %v5307 = vsel %vm5089, %v5306, %v5305
      %v5308 = vrot.slane %v5066, 4
      %v5309 = vsel %vm5092, %v5308, %v5307
      %v5310 = vrot.slane %v5067, 3
      %v5311 = vsel %vm5095, %v5310, %v5309
      %v5312 = vrot.slane %v5068, 2
      %v5313 = vsel %vm5098, %v5312, %v5311
      %v5314 = vrot.slane %v5069, 1
      %v5315 = vsel %vm5101, %v5314, %v5313
      %v5316 = vsel %vm5104, %v5070, %v5315
      %v5317 = vrot.slane %v5071, 7
      %v5318 = vsel %vm5107, %v5317, %v5316
      %5319 = vrot.lane.b32.xlu0 %v5304, 64
      %v5320 = vpop.permute.xlu0 %5319
      %5321 = vrot.lane.b32.xlu0 %v5318, 64
      %v5322 = vpop.permute.xlu0 %5321
      %v5325 = vrot.slane %v5056, 7
      %v5326 = vrot.slane %v5057, 6
      %v5327 = vsel %vm5089, %v5326, %v5325
      %v5328 = vrot.slane %v5058, 5
      %v5329 = vsel %vm5092, %v5328, %v5327
      %v5330 = vrot.slane %v5059, 4
      %v5331 = vsel %vm5095, %v5330, %v5329
      %v5332 = vrot.slane %v5060, 3
      %v5333 = vsel %vm5098, %v5332, %v5331
      %v5334 = vrot.slane %v5061, 2
      %v5335 = vsel %vm5101, %v5334, %v5333
      %v5336 = vrot.slane %v5062, 1
      %v5337 = vsel %vm5104, %v5336, %v5335
      %v5338 = vsel %vm5107, %v5063, %v5337
      %v5339 = vrot.slane %v5064, 7
      %v5340 = vrot.slane %v5065, 6
      %v5341 = vsel %vm5089, %v5340, %v5339
      %v5342 = vrot.slane %v5066, 5
      %v5343 = vsel %vm5092, %v5342, %v5341
      %v5344 = vrot.slane %v5067, 4
      %v5345 = vsel %vm5095, %v5344, %v5343
      %v5346 = vrot.slane %v5068, 3
      %v5347 = vsel %vm5098, %v5346, %v5345
      %v5348 = vrot.slane %v5069, 2
      %v5349 = vsel %vm5101, %v5348, %v5347
      %v5350 = vrot.slane %v5070, 1
      %v5351 = vsel %vm5104, %v5350, %v5349
      %v5352 = vsel %vm5107, %v5071, %v5351
      %5353 = vrot.lane.b32.xlu0 %v5338, 96
      %v5354 = vpop.permute.xlu0 %5353
      %5355 = vrot.lane.b32.xlu0 %v5352, 96
      %v5356 = vpop.permute.xlu0 %5355
      %v5359 = vsel %vm408, %v5108, %v5154
      %v5360 = vsel %vm408, %v5122, %v5156
      %v5361 = vsel %vm4582, %v5359, %v5188
      %v5362 = vsel %vm4582, %v5360, %v5190
      %vm5363 = vcmask 785408
      %v5364 = vsel %vm5363, %v5361, %v5222
      %v5365 = vsel %vm5363, %v5362, %v5224
      %v5366 = vsel %vm408, %v5240, %v5286
      %v5367 = vsel %vm408, %v5254, %v5288
      %v5368 = vsel %vm4582, %v5366, %v5320
      %v5369 = vsel %vm4582, %v5367, %v5322
      %v5370 = vsel %vm5363, %v5368, %v5354
      %v5371 = vsel %vm5363, %v5369, %v5356
      %5372 = vst [vmem:[%s363] sm:$0xff] %v5364
      %5373 = vst [vmem:[%s363 + $0x8] sm:$0xff] %v5370
      %5374 = vst [vmem:[%s363 + $0x10] sm:$0xff] %v5365
      %5375 = vst [vmem:[%s363 + $0x18] sm:$0xff] %v5371
      %s5376 = smul.u32 2, %s21
      %p5377 = scmp.lt.s32.totalorder %s5376, 3
      %s5378 = scalar_select %p5377, %s5376, 3
      %s5379 = smul.addr %s5378, 2
      %s5380 = smul.addr %s5379, 8
      %s5381 = scalar_lea.vmem %s10, %s5380
      // Predicated region
      $region61: #{transformer_forward.1} parent=59 // pred_check
        %p5382 = pneg %p254
      $region62: #{transformer_forward.1} parent=59 // pred_check_branch
        %5384 = sbr.rel (%p5382) target = $region64
      $region63: #{transformer_forward.1} parent=59 // pred_region
        %s5385 = smul.u32 2, %s21
      $region64: #{transformer_forward.1} parent=59 // pred_fallthru
        _
    $region60: #{transformer_forward.1} parent=5 // pred_fallthru
      _
    %p5386 = scmp.le.s32.totalorder 2, %s16
    // Predicated region
    $region65: #{transformer_forward.1} parent=5 // pred_check
      %p5387 = pneg %p5386
    $region66: #{transformer_forward.1} parent=5 // pred_check_branch
      %5389 = sbr.rel (%p5387) target = $region68
    $region67: #{transformer_forward.1} parent=5 // pred_region
      %s5390 = ssub.s32 %s16, 2
      // Predicated region
      $region69: #{transformer_forward.1} parent=67 // pred_check
        %p5391 = pneg %p260
      $region70: #{transformer_forward.1} parent=67 // pred_check_branch
        %5393 = sbr.rel (%p5391) target = $region72
      $region71: #{transformer_forward.1} parent=67 // pred_region
        %s5394 = smul.u32 2, %s22
        %p5395 = scmp.lt.s32.totalorder %s5394, 3
        %s5396 = scalar_select %p5395, %s5394, 3
        %s5397 = smul.addr %s5396, 2
        %s5398 = smul.addr %s5397, 8
        %s5399 = scalar_lea.vmem %s10, %s5398
      $region72: #{transformer_forward.1} parent=67 // pred_fallthru
        _
    $region68: #{transformer_forward.1} parent=5 // pred_fallthru
      _
  $region6: #{transformer_forward.1} parent=0 // loop_footer
    %s20 = sadd.s32 1, %s16
  $region7: #{transformer_forward.1} parent=0 // loop_footer_branch
    %15 = sbr.rel target = $region3
  $region8: #{transformer_forward.1} parent=0 // loop_exit
    _

</llo_original>
